<compile_context>
chip_gen: v6e
topology: v6e:2x2x1
jax: 0.10.0
libtpu: 0.0.40
codegen_flags: <defaults>
</compile_context>

<pallas_src>
import functools

import jax
import jax.numpy as jnp
import numpy as np
from jax import lax
from jax.experimental import pallas as pl
from jax.experimental.pallas import tpu as pltpu

OUT_CHANNELS = 256
BN_EPS = 1e-5


# ----------------------------- fused Pallas kernel --------------------------

def _aspp_fused_kernel(x_ref, w0_ref, wat_ref, wproj_ref,
                       scb_ref, shb_ref, scp_ref, shp_ref, pc_ref, o_ref, *,
                       rates, dmax, tile_h, width, cin):
    """One (batch, row-tile) step of the fully fused ASPP forward.

    x_ref    : (1, H+2*dmax, W+2*dmax, Cin)  bf16  halo-padded input (resident)
    w0_ref   : (Cin, 256)                    bf16  1x1 branch weight
    wat_ref  : (3, 9*Cin, 256)               bf16  atrous weights (tap-major)
    wproj_ref: (4*256, 256)                  bf16  projection rows for branches 0-3
    scb/shb  : (4, 256)                      f32   folded BN per branch 0-3
    scp/shp  : (1, 256)                      f32   folded BN of projection
    pc_ref   : (1, 1, 256)                   f32   pooled-branch @ proj (per batch)
    o_ref    : (TH*W, 256)                   f32   final output tile
    """
    rt = pl.program_id(1)
    row0 = pl.multiple_of(rt * tile_h, tile_h)      # output row offset (unpadded)
    m = tile_h * width

    def window(dy, dx):
        # (1, TH, W, Cin) spatially shifted slab of the padded input.
        return x_ref[:, pl.ds(row0 + dmax + dy, tile_h),
                     pl.ds(dmax + dx, width), :]

    def bn_relu(y, i):
        return jnp.maximum(y * scb_ref[i:i + 1, :] + shb_ref[i:i + 1, :], 0.0)

    # --- branch 0: 1x1 conv + BN + ReLU ---
    xc = window(0, 0).reshape(m, cin)
    ys = [bn_relu(jnp.dot(xc, w0_ref[...],
                          preferred_element_type=jnp.float32), 0)]

    # --- branches 1..3: 3x3 atrous conv as a single K = 9*Cin contraction ---
    for bi, d in enumerate(rates):
        taps = jnp.concatenate(
            [window((ky - 1) * d, (kx - 1) * d)
             for ky in range(3) for kx in range(3)], axis=-1)   # (1,TH,W,9*Cin)
        taps = taps.reshape(m, 9 * cin)
        ys.append(bn_relu(jnp.dot(taps, wat_ref[bi],
                                  preferred_element_type=jnp.float32), bi + 1))

    # --- fused 1x1 projection: one K = 4*256 matmul + pooled-branch add ---
    cat = jnp.concatenate(ys, axis=-1).astype(jnp.bfloat16)      # (m, 1024)
    acc = jnp.dot(cat, wproj_ref[...], preferred_element_type=jnp.float32)
    acc = acc + pc_ref[0]                                        # (1,256) bcast
    o_ref[...] = jnp.maximum(acc * scp_ref[...] + shp_ref[...], 0.0)


# ----------------------------- wrapper ---------------------------------------

def aspp_forward(x_nchw, p, tile_rows=8):
    co = OUT_CHANNELS
    x = jnp.transpose(x_nchw, (0, 2, 3, 1)).astype(jnp.float32)   # NHWC
    N, H, W, Cin = x.shape
    rates = tuple(p['rates'])
    dmax = max(rates)

    # ---- pooled branch (tiny) + its projection contribution, in plain JAX ----
    pooled = jnp.mean(x, axis=(1, 2)).astype(jnp.bfloat16)        # (N, Cin)
    sc_pl, sh_pl = p['bn_pool']
    y_pool = jnp.maximum(
        jnp.dot(pooled, p['w_pool'].astype(jnp.bfloat16),
                preferred_element_type=jnp.float32) * sc_pl + sh_pl, 0.0)
    pc = jnp.dot(y_pool.astype(jnp.bfloat16),
                 p['w_proj'][4 * co:].astype(jnp.bfloat16),
                 preferred_element_type=jnp.float32).reshape(N, 1, co)

    # ---- operands for the fused kernel (bf16 activations / weights) ----
    x_pad = jnp.pad(x.astype(jnp.bfloat16),
                    ((0, 0), (dmax, dmax), (dmax, dmax), (0, 0)))
    Hp, Wp = H + 2 * dmax, W + 2 * dmax
    w0 = p['w0'].astype(jnp.bfloat16)                              # (Cin, 256)
    wat = jnp.stack([p['w_atrous'][i].reshape(9 * Cin, co)
                     for i in range(3)]).astype(jnp.bfloat16)      # (3, 9Cin, 256)
    wproj = p['w_proj'][:4 * co].astype(jnp.bfloat16)              # (1024, 256)
    scb = jnp.stack([p['bn0'][0]] + [p['bn_atrous'][i][0] for i in range(3)])
    shb = jnp.stack([p['bn0'][1]] + [p['bn_atrous'][i][1] for i in range(3)])
    scp = p['bn_proj'][0].reshape(1, co)
    shp = p['bn_proj'][1].reshape(1, co)

    # Row tile: largest divisor of H <= tile_rows (remainder-free tiling).
    th = max(d for d in range(1, min(tile_rows, H) + 1) if H % d == 0)
    n_rt = H // th
    tm = th * W                       # rows of output per grid step
    M = N * H * W

    kernel = functools.partial(_aspp_fused_kernel, rates=rates, dmax=dmax,
                               tile_h=th, width=W, cin=Cin)

    out2d = pl.pallas_call(
        kernel,
        out_shape=jax.ShapeDtypeStruct((M, co), jnp.float32),
        grid=(N, n_rt),
        in_specs=[
            # padded input: resident across row tiles of the same batch element
            pl.BlockSpec((1, Hp, Wp, Cin), lambda b, r: (b, 0, 0, 0)),
            # weights / BN params: grid-invariant (loaded once, stay in VMEM)
            pl.BlockSpec((Cin, co), lambda b, r: (0, 0)),
            pl.BlockSpec((3, 9 * Cin, co), lambda b, r: (0, 0, 0)),
            pl.BlockSpec((4 * co, co), lambda b, r: (0, 0)),
            pl.BlockSpec((4, co), lambda b, r: (0, 0)),
            pl.BlockSpec((4, co), lambda b, r: (0, 0)),
            pl.BlockSpec((1, co), lambda b, r: (0, 0)),
            pl.BlockSpec((1, co), lambda b, r: (0, 0)),
            # pooled-branch projection contribution: per batch element
            pl.BlockSpec((1, 1, co), lambda b, r: (b, 0, 0)),
        ],
        out_specs=pl.BlockSpec((tm, co), lambda b, r: (b * n_rt + r, 0)),
        compiler_params=pltpu.CompilerParams(
            dimension_semantics=("parallel", "parallel")),
    )(x_pad, w0, wat, wproj, scb, shb, scp, shp, pc)

    out = out2d.reshape(N, H, W, co)
    # TODO(synk): Dropout(0.1) is identity in eval mode; training-mode mask not implemented.
    return jnp.transpose(out, (0, 3, 1, 2))                        # NCHW


# ----------------------------- reference (same precision policy) ------------

def aspp_reference(x_nchw, p):
    co = OUT_CHANNELS
    x = jnp.transpose(x_nchw, (0, 2, 3, 1)).astype(jnp.float32)
    N, H, W, Cin = x.shape
    xb = x.astype(jnp.bfloat16)
    dn = ('NHWC', 'HWIO', 'NHWC')

    def bnrelu(y, sc, sh):
        return jnp.maximum(y * sc + sh, 0.0)

    outs = []
    w0 = p['w0'].astype(jnp.bfloat16).reshape(1, 1, Cin, co)
    y0 = lax.conv_general_dilated(xb, w0, (1, 1), 'VALID',
                                  dimension_numbers=dn,
                                  preferred_element_type=jnp.float32)
    outs.append(bnrelu(y0, *p['bn0']))
    for i, d in enumerate(p['rates']):
        wi = p['w_atrous'][i].astype(jnp.bfloat16)
        yi = lax.conv_general_dilated(xb, wi, (1, 1), [(d, d), (d, d)],
                                      rhs_dilation=(d, d),
                                      dimension_numbers=dn,
                                      preferred_element_type=jnp.float32)
        outs.append(bnrelu(yi, *p['bn_atrous'][i]))
    pooled = jnp.mean(x, axis=(1, 2)).astype(jnp.bfloat16)
    yp = bnrelu(jnp.dot(pooled, p['w_pool'].astype(jnp.bfloat16),
                        preferred_element_type=jnp.float32), *p['bn_pool'])
    outs.append(jnp.broadcast_to(yp[:, None, None, :], (N, H, W, co)))
    cat = jnp.concatenate(outs, axis=-1).astype(jnp.bfloat16)      # (N,H,W,1280)
    proj = jnp.dot(cat.reshape(N * H * W, 5 * co),
                   p['w_proj'].astype(jnp.bfloat16),
                   preferred_element_type=jnp.float32).reshape(N, H, W, co)
    out = bnrelu(proj, *p['bn_proj'])
    return jnp.transpose(out, (0, 3, 1, 2))


# ----------------------------- parameter init -------------------------------

def _init_bn(key, c):
    k1, k2, k3, k4 = jax.random.split(key, 4)
    gamma = jax.random.uniform(k1, (c,), minval=0.5, maxval=1.5)
    beta = 0.1 * jax.random.normal(k2, (c,))
    mean = 0.1 * jax.random.normal(k3, (c,))
    var = jax.random.uniform(k4, (c,), minval=0.5, maxval=1.5)
    scale = gamma / jnp.sqrt(var + BN_EPS)
    shift = beta - mean * scale
    return scale.astype(jnp.float32), shift.astype(jnp.float32)


def init_params(key, in_channels, rates):
    ks = jax.random.split(key, 16)
    co = OUT_CHANNELS

    def he(k, shape, fan_in):
        return (jnp.sqrt(2.0 / fan_in) *
                jax.random.normal(k, shape)).astype(jnp.float32)

    return {
        'rates': tuple(rates),
        'w0': he(ks[0], (in_channels, co), in_channels),
        'bn0': _init_bn(ks[1], co),
        'w_atrous': [he(ks[2 + i], (3, 3, in_channels, co), 9 * in_channels)
                     for i in range(3)],
        'bn_atrous': [_init_bn(ks[5 + i], co) for i in range(3)],
        'w_pool': he(ks[8], (in_channels, co), in_channels),
        'bn_pool': _init_bn(ks[9], co),
        'w_proj': he(ks[10], (5 * co, co), 5 * co),
        'bn_proj': _init_bn(ks[11], co),
    }


# ----------------------------- main ------------------------------------------

if __name__ == "__main__":
    key = jax.random.PRNGKey(0)
    k_x, k_p = jax.random.split(key)

    N, Cin, H, W = 2, 4, 16, 16
    atrous_rates = (2, 4, 6)

    x = jax.random.normal(k_x, (N, Cin, H, W), dtype=jnp.float32)   # NCHW input
    params = init_params(k_p, Cin, atrous_rates)

    fwd = jax.jit(functools.partial(aspp_forward, p=params))
    out = jax.block_until_ready(fwd(x))

    ref = jax.block_until_ready(aspp_reference(x, params))
    assert out.shape == (N, OUT_CHANNELS, H, W), out.shape
    assert np.all(np.isfinite(np.asarray(out)))
    np.testing.assert_allclose(np.asarray(out), np.asarray(ref),
                               rtol=2e-2, atol=2e-2)

    print("KERNEL_OK")
</pallas_src>

<mosaic_0001>
module attributes {stable_mosaic.version = 11 : i64} {
  func.func @_aspp_fused_kernel(%arg0: i32, %arg1: i32, %arg2: memref<1x28x28x4xbf16, #tpu.memory_space<vmem>>, %arg3: memref<4x256xbf16, #tpu.memory_space<vmem>>, %arg4: memref<3x36x256xbf16, #tpu.memory_space<vmem>>, %arg5: memref<1024x256xbf16, #tpu.memory_space<vmem>>, %arg6: memref<4x256xf32, #tpu.memory_space<vmem>>, %arg7: memref<4x256xf32, #tpu.memory_space<vmem>>, %arg8: memref<1x256xf32, #tpu.memory_space<vmem>>, %arg9: memref<1x256xf32, #tpu.memory_space<vmem>>, %arg10: memref<1x1x256xf32, #tpu.memory_space<vmem>>, %arg11: memref<128x256xf32, #tpu.memory_space<vmem>>) attributes {dimension_semantics = [#tpu.dimension_semantics<parallel>, #tpu.dimension_semantics<parallel>], iteration_bounds = array<i64: 2, 2>, scalar_prefetch = 0 : i64, scratch_operands = 0 : i64, tpu.core_type = #tpu.core_type<tc>, window_params = [{transform_indices = @transform_0, window_bounds = array<i64: 1, 28, 28, 4>}, {pipeline_mode = #tpu.pipeline_mode<synchronous>, transform_indices = @transform_1, window_bounds = array<i64: 4, 256>}, {pipeline_mode = #tpu.pipeline_mode<synchronous>, transform_indices = @transform_2, window_bounds = array<i64: 3, 36, 256>}, {pipeline_mode = #tpu.pipeline_mode<synchronous>, transform_indices = @transform_3, window_bounds = array<i64: 1024, 256>}, {pipeline_mode = #tpu.pipeline_mode<synchronous>, transform_indices = @transform_4, window_bounds = array<i64: 4, 256>}, {pipeline_mode = #tpu.pipeline_mode<synchronous>, transform_indices = @transform_5, window_bounds = array<i64: 4, 256>}, {pipeline_mode = #tpu.pipeline_mode<synchronous>, transform_indices = @transform_6, window_bounds = array<i64: 1, 256>}, {pipeline_mode = #tpu.pipeline_mode<synchronous>, transform_indices = @transform_7, window_bounds = array<i64: 1, 256>}, {transform_indices = @transform_8, window_bounds = array<i64: 1, 1, 256>}, {transform_indices = @transform_9, window_bounds = array<i64: 128, 256>}]} {
    %c8_i32 = arith.constant 8 : i32
    %0 = arith.muli %arg1, %c8_i32 : i32
    %1 = tpu.assume_multiple %0, 8 : i32
    %c6_i32 = arith.constant 6 : i32
    %2 = arith.addi %1, %c6_i32 : i32
    %c0_i32 = arith.constant 0 : i32
    %3 = arith.addi %2, %c0_i32 : i32
    %c0 = arith.constant 0 : index
    %4 = arith.index_cast %3 : i32 to index
    %c6 = arith.constant 6 : index
    %c0_0 = arith.constant 0 : index
    %5 = vector.load %arg2[%c0, %4, %c6, %c0_0] : memref<1x28x28x4xbf16, #tpu.memory_space<vmem>>, vector<1x8x16x4xbf16>
    %6 = vector.shape_cast %5 : vector<1x8x16x4xbf16> to vector<128x4xbf16>
    %c0_1 = arith.constant 0 : index
    %c0_2 = arith.constant 0 : index
    %7 = vector.load %arg3[%c0_1, %c0_2] : memref<4x256xbf16, #tpu.memory_space<vmem>>, vector<4x256xbf16>
    %cst = arith.constant dense<0.000000e+00> : vector<128x256xf32>
    %8 = tpu.matmul %6, %7, %cst {dimension_numbers = #tpu.dot_dimension_numbers<[1], [0], [0], [1], [0, 0, 1, 1], [], []>} : vector<128x4xbf16>, vector<4x256xbf16>, vector<128x256xf32> -> vector<128x256xf32>
    %c0_3 = arith.constant 0 : index
    %c0_4 = arith.constant 0 : index
    %9 = vector.load %arg6[%c0_3, %c0_4] : memref<4x256xf32, #tpu.memory_space<vmem>>, vector<1x256xf32>
    %10 = vector.broadcast %9 : vector<1x256xf32> to vector<128x256xf32>
    %11 = arith.mulf %8, %10 : vector<128x256xf32>
    %c0_5 = arith.constant 0 : index
    %c0_6 = arith.constant 0 : index
    %12 = vector.load %arg7[%c0_5, %c0_6] : memref<4x256xf32, #tpu.memory_space<vmem>>, vector<1x256xf32>
    %13 = vector.broadcast %12 : vector<1x256xf32> to vector<128x256xf32>
    %14 = arith.addf %11, %13 : vector<128x256xf32>
    %cst_7 = arith.constant 0.000000e+00 : f32
    %15 = vector.broadcast %cst_7 : f32 to vector<128x256xf32>
    %16 = arith.maximumf %14, %15 : vector<128x256xf32>
    %c6_i32_8 = arith.constant 6 : i32
    %17 = arith.addi %1, %c6_i32_8 : i32
    %c-2_i32 = arith.constant -2 : i32
    %18 = arith.addi %17, %c-2_i32 : i32
    %c0_9 = arith.constant 0 : index
    %19 = arith.index_cast %18 : i32 to index
    %c4 = arith.constant 4 : index
    %c0_10 = arith.constant 0 : index
    %20 = vector.load %arg2[%c0_9, %19, %c4, %c0_10] : memref<1x28x28x4xbf16, #tpu.memory_space<vmem>>, vector<1x8x16x4xbf16>
    %c6_i32_11 = arith.constant 6 : i32
    %21 = arith.addi %1, %c6_i32_11 : i32
    %c-2_i32_12 = arith.constant -2 : i32
    %22 = arith.addi %21, %c-2_i32_12 : i32
    %c0_13 = arith.constant 0 : index
    %23 = arith.index_cast %22 : i32 to index
    %c6_14 = arith.constant 6 : index
    %c0_15 = arith.constant 0 : index
    %24 = vector.load %arg2[%c0_13, %23, %c6_14, %c0_15] : memref<1x28x28x4xbf16, #tpu.memory_space<vmem>>, vector<1x8x16x4xbf16>
    %c6_i32_16 = arith.constant 6 : i32
    %25 = arith.addi %1, %c6_i32_16 : i32
    %c-2_i32_17 = arith.constant -2 : i32
    %26 = arith.addi %25, %c-2_i32_17 : i32
    %c0_18 = arith.constant 0 : index
    %27 = arith.index_cast %26 : i32 to index
    %c8 = arith.constant 8 : index
    %c0_19 = arith.constant 0 : index
    %28 = vector.load %arg2[%c0_18, %27, %c8, %c0_19] : memref<1x28x28x4xbf16, #tpu.memory_space<vmem>>, vector<1x8x16x4xbf16>
    %c6_i32_20 = arith.constant 6 : i32
    %29 = arith.addi %1, %c6_i32_20 : i32
    %c0_i32_21 = arith.constant 0 : i32
    %30 = arith.addi %29, %c0_i32_21 : i32
    %c0_22 = arith.constant 0 : index
    %31 = arith.index_cast %30 : i32 to index
    %c4_23 = arith.constant 4 : index
    %c0_24 = arith.constant 0 : index
    %32 = vector.load %arg2[%c0_22, %31, %c4_23, %c0_24] : memref<1x28x28x4xbf16, #tpu.memory_space<vmem>>, vector<1x8x16x4xbf16>
    %c6_i32_25 = arith.constant 6 : i32
    %33 = arith.addi %1, %c6_i32_25 : i32
    %c0_i32_26 = arith.constant 0 : i32
    %34 = arith.addi %33, %c0_i32_26 : i32
    %c0_27 = arith.constant 0 : index
    %35 = arith.index_cast %34 : i32 to index
    %c6_28 = arith.constant 6 : index
    %c0_29 = arith.constant 0 : index
    %36 = vector.load %arg2[%c0_27, %35, %c6_28, %c0_29] : memref<1x28x28x4xbf16, #tpu.memory_space<vmem>>, vector<1x8x16x4xbf16>
    %c6_i32_30 = arith.constant 6 : i32
    %37 = arith.addi %1, %c6_i32_30 : i32
    %c0_i32_31 = arith.constant 0 : i32
    %38 = arith.addi %37, %c0_i32_31 : i32
    %c0_32 = arith.constant 0 : index
    %39 = arith.index_cast %38 : i32 to index
    %c8_33 = arith.constant 8 : index
    %c0_34 = arith.constant 0 : index
    %40 = vector.load %arg2[%c0_32, %39, %c8_33, %c0_34] : memref<1x28x28x4xbf16, #tpu.memory_space<vmem>>, vector<1x8x16x4xbf16>
    %c6_i32_35 = arith.constant 6 : i32
    %41 = arith.addi %1, %c6_i32_35 : i32
    %c2_i32 = arith.constant 2 : i32
    %42 = arith.addi %41, %c2_i32 : i32
    %c0_36 = arith.constant 0 : index
    %43 = arith.index_cast %42 : i32 to index
    %c4_37 = arith.constant 4 : index
    %c0_38 = arith.constant 0 : index
    %44 = vector.load %arg2[%c0_36, %43, %c4_37, %c0_38] : memref<1x28x28x4xbf16, #tpu.memory_space<vmem>>, vector<1x8x16x4xbf16>
    %c6_i32_39 = arith.constant 6 : i32
    %45 = arith.addi %1, %c6_i32_39 : i32
    %c2_i32_40 = arith.constant 2 : i32
    %46 = arith.addi %45, %c2_i32_40 : i32
    %c0_41 = arith.constant 0 : index
    %47 = arith.index_cast %46 : i32 to index
    %c6_42 = arith.constant 6 : index
    %c0_43 = arith.constant 0 : index
    %48 = vector.load %arg2[%c0_41, %47, %c6_42, %c0_43] : memref<1x28x28x4xbf16, #tpu.memory_space<vmem>>, vector<1x8x16x4xbf16>
    %c6_i32_44 = arith.constant 6 : i32
    %49 = arith.addi %1, %c6_i32_44 : i32
    %c2_i32_45 = arith.constant 2 : i32
    %50 = arith.addi %49, %c2_i32_45 : i32
    %c0_46 = arith.constant 0 : index
    %51 = arith.index_cast %50 : i32 to index
    %c8_47 = arith.constant 8 : index
    %c0_48 = arith.constant 0 : index
    %52 = vector.load %arg2[%c0_46, %51, %c8_47, %c0_48] : memref<1x28x28x4xbf16, #tpu.memory_space<vmem>>, vector<1x8x16x4xbf16>
    %53 = tpu.concatenate %20, %24, %28, %32, %36, %40, %44, %48, %52 in 3 : vector<1x8x16x4xbf16>, vector<1x8x16x4xbf16>, vector<1x8x16x4xbf16>, vector<1x8x16x4xbf16>, vector<1x8x16x4xbf16>, vector<1x8x16x4xbf16>, vector<1x8x16x4xbf16>, vector<1x8x16x4xbf16>, vector<1x8x16x4xbf16> -> vector<1x8x16x36xbf16>
    %54 = vector.shape_cast %53 : vector<1x8x16x36xbf16> to vector<128x36xbf16>
    %c0_49 = arith.constant 0 : index
    %c0_50 = arith.constant 0 : index
    %c0_51 = arith.constant 0 : index
    %55 = vector.load %arg4[%c0_49, %c0_50, %c0_51] : memref<3x36x256xbf16, #tpu.memory_space<vmem>>, vector<1x36x256xbf16>
    %56 = vector.shape_cast %55 : vector<1x36x256xbf16> to vector<36x256xbf16>
    %cst_52 = arith.constant dense<0.000000e+00> : vector<128x256xf32>
    %57 = tpu.matmul %54, %56, %cst_52 {dimension_numbers = #tpu.dot_dimension_numbers<[1], [0], [0], [1], [0, 0, 1, 1], [], []>} : vector<128x36xbf16>, vector<36x256xbf16>, vector<128x256xf32> -> vector<128x256xf32>
    %c1 = arith.constant 1 : index
    %c0_53 = arith.constant 0 : index
    %58 = vector.load %arg6[%c1, %c0_53] : memref<4x256xf32, #tpu.memory_space<vmem>>, vector<1x256xf32>
    %59 = vector.broadcast %58 : vector<1x256xf32> to vector<128x256xf32>
    %60 = arith.mulf %57, %59 : vector<128x256xf32>
    %c1_54 = arith.constant 1 : index
    %c0_55 = arith.constant 0 : index
    %61 = vector.load %arg7[%c1_54, %c0_55] : memref<4x256xf32, #tpu.memory_space<vmem>>, vector<1x256xf32>
    %62 = vector.broadcast %61 : vector<1x256xf32> to vector<128x256xf32>
    %63 = arith.addf %60, %62 : vector<128x256xf32>
    %cst_56 = arith.constant 0.000000e+00 : f32
    %64 = vector.broadcast %cst_56 : f32 to vector<128x256xf32>
    %65 = arith.maximumf %63, %64 : vector<128x256xf32>
    %c6_i32_57 = arith.constant 6 : i32
    %66 = arith.addi %1, %c6_i32_57 : i32
    %c-4_i32 = arith.constant -4 : i32
    %67 = arith.addi %66, %c-4_i32 : i32
    %c0_58 = arith.constant 0 : index
    %68 = arith.index_cast %67 : i32 to index
    %c2 = arith.constant 2 : index
    %c0_59 = arith.constant 0 : index
    %69 = vector.load %arg2[%c0_58, %68, %c2, %c0_59] : memref<1x28x28x4xbf16, #tpu.memory_space<vmem>>, vector<1x8x16x4xbf16>
    %c6_i32_60 = arith.constant 6 : i32
    %70 = arith.addi %1, %c6_i32_60 : i32
    %c-4_i32_61 = arith.constant -4 : i32
    %71 = arith.addi %70, %c-4_i32_61 : i32
    %c0_62 = arith.constant 0 : index
    %72 = arith.index_cast %71 : i32 to index
    %c6_63 = arith.constant 6 : index
    %c0_64 = arith.constant 0 : index
    %73 = vector.load %arg2[%c0_62, %72, %c6_63, %c0_64] : memref<1x28x28x4xbf16, #tpu.memory_space<vmem>>, vector<1x8x16x4xbf16>
    %c6_i32_65 = arith.constant 6 : i32
    %74 = arith.addi %1, %c6_i32_65 : i32
    %c-4_i32_66 = arith.constant -4 : i32
    %75 = arith.addi %74, %c-4_i32_66 : i32
    %c0_67 = arith.constant 0 : index
    %76 = arith.index_cast %75 : i32 to index
    %c10 = arith.constant 10 : index
    %c0_68 = arith.constant 0 : index
    %77 = vector.load %arg2[%c0_67, %76, %c10, %c0_68] : memref<1x28x28x4xbf16, #tpu.memory_space<vmem>>, vector<1x8x16x4xbf16>
    %c6_i32_69 = arith.constant 6 : i32
    %78 = arith.addi %1, %c6_i32_69 : i32
    %c0_i32_70 = arith.constant 0 : i32
    %79 = arith.addi %78, %c0_i32_70 : i32
    %c0_71 = arith.constant 0 : index
    %80 = arith.index_cast %79 : i32 to index
    %c2_72 = arith.constant 2 : index
    %c0_73 = arith.constant 0 : index
    %81 = vector.load %arg2[%c0_71, %80, %c2_72, %c0_73] : memref<1x28x28x4xbf16, #tpu.memory_space<vmem>>, vector<1x8x16x4xbf16>
    %c6_i32_74 = arith.constant 6 : i32
    %82 = arith.addi %1, %c6_i32_74 : i32
    %c0_i32_75 = arith.constant 0 : i32
    %83 = arith.addi %82, %c0_i32_75 : i32
    %c0_76 = arith.constant 0 : index
    %84 = arith.index_cast %83 : i32 to index
    %c6_77 = arith.constant 6 : index
    %c0_78 = arith.constant 0 : index
    %85 = vector.load %arg2[%c0_76, %84, %c6_77, %c0_78] : memref<1x28x28x4xbf16, #tpu.memory_space<vmem>>, vector<1x8x16x4xbf16>
    %c6_i32_79 = arith.constant 6 : i32
    %86 = arith.addi %1, %c6_i32_79 : i32
    %c0_i32_80 = arith.constant 0 : i32
    %87 = arith.addi %86, %c0_i32_80 : i32
    %c0_81 = arith.constant 0 : index
    %88 = arith.index_cast %87 : i32 to index
    %c10_82 = arith.constant 10 : index
    %c0_83 = arith.constant 0 : index
    %89 = vector.load %arg2[%c0_81, %88, %c10_82, %c0_83] : memref<1x28x28x4xbf16, #tpu.memory_space<vmem>>, vector<1x8x16x4xbf16>
    %c6_i32_84 = arith.constant 6 : i32
    %90 = arith.addi %1, %c6_i32_84 : i32
    %c4_i32 = arith.constant 4 : i32
    %91 = arith.addi %90, %c4_i32 : i32
    %c0_85 = arith.constant 0 : index
    %92 = arith.index_cast %91 : i32 to index
    %c2_86 = arith.constant 2 : index
    %c0_87 = arith.constant 0 : index
    %93 = vector.load %arg2[%c0_85, %92, %c2_86, %c0_87] : memref<1x28x28x4xbf16, #tpu.memory_space<vmem>>, vector<1x8x16x4xbf16>
    %c6_i32_88 = arith.constant 6 : i32
    %94 = arith.addi %1, %c6_i32_88 : i32
    %c4_i32_89 = arith.constant 4 : i32
    %95 = arith.addi %94, %c4_i32_89 : i32
    %c0_90 = arith.constant 0 : index
    %96 = arith.index_cast %95 : i32 to index
    %c6_91 = arith.constant 6 : index
    %c0_92 = arith.constant 0 : index
    %97 = vector.load %arg2[%c0_90, %96, %c6_91, %c0_92] : memref<1x28x28x4xbf16, #tpu.memory_space<vmem>>, vector<1x8x16x4xbf16>
    %c6_i32_93 = arith.constant 6 : i32
    %98 = arith.addi %1, %c6_i32_93 : i32
    %c4_i32_94 = arith.constant 4 : i32
    %99 = arith.addi %98, %c4_i32_94 : i32
    %c0_95 = arith.constant 0 : index
    %100 = arith.index_cast %99 : i32 to index
    %c10_96 = arith.constant 10 : index
    %c0_97 = arith.constant 0 : index
    %101 = vector.load %arg2[%c0_95, %100, %c10_96, %c0_97] : memref<1x28x28x4xbf16, #tpu.memory_space<vmem>>, vector<1x8x16x4xbf16>
    %102 = tpu.concatenate %69, %73, %77, %81, %85, %89, %93, %97, %101 in 3 : vector<1x8x16x4xbf16>, vector<1x8x16x4xbf16>, vector<1x8x16x4xbf16>, vector<1x8x16x4xbf16>, vector<1x8x16x4xbf16>, vector<1x8x16x4xbf16>, vector<1x8x16x4xbf16>, vector<1x8x16x4xbf16>, vector<1x8x16x4xbf16> -> vector<1x8x16x36xbf16>
    %103 = vector.shape_cast %102 : vector<1x8x16x36xbf16> to vector<128x36xbf16>
    %c1_98 = arith.constant 1 : index
    %c0_99 = arith.constant 0 : index
    %c0_100 = arith.constant 0 : index
    %104 = vector.load %arg4[%c1_98, %c0_99, %c0_100] : memref<3x36x256xbf16, #tpu.memory_space<vmem>>, vector<1x36x256xbf16>
    %105 = vector.shape_cast %104 : vector<1x36x256xbf16> to vector<36x256xbf16>
    %cst_101 = arith.constant dense<0.000000e+00> : vector<128x256xf32>
    %106 = tpu.matmul %103, %105, %cst_101 {dimension_numbers = #tpu.dot_dimension_numbers<[1], [0], [0], [1], [0, 0, 1, 1], [], []>} : vector<128x36xbf16>, vector<36x256xbf16>, vector<128x256xf32> -> vector<128x256xf32>
    %c2_102 = arith.constant 2 : index
    %c0_103 = arith.constant 0 : index
    %107 = vector.load %arg6[%c2_102, %c0_103] : memref<4x256xf32, #tpu.memory_space<vmem>>, vector<1x256xf32>
    %108 = vector.broadcast %107 : vector<1x256xf32> to vector<128x256xf32>
    %109 = arith.mulf %106, %108 : vector<128x256xf32>
    %c2_104 = arith.constant 2 : index
    %c0_105 = arith.constant 0 : index
    %110 = vector.load %arg7[%c2_104, %c0_105] : memref<4x256xf32, #tpu.memory_space<vmem>>, vector<1x256xf32>
    %111 = vector.broadcast %110 : vector<1x256xf32> to vector<128x256xf32>
    %112 = arith.addf %109, %111 : vector<128x256xf32>
    %cst_106 = arith.constant 0.000000e+00 : f32
    %113 = vector.broadcast %cst_106 : f32 to vector<128x256xf32>
    %114 = arith.maximumf %112, %113 : vector<128x256xf32>
    %c6_i32_107 = arith.constant 6 : i32
    %115 = arith.addi %1, %c6_i32_107 : i32
    %c-6_i32 = arith.constant -6 : i32
    %116 = arith.addi %115, %c-6_i32 : i32
    %c0_108 = arith.constant 0 : index
    %117 = arith.index_cast %116 : i32 to index
    %c0_109 = arith.constant 0 : index
    %c0_110 = arith.constant 0 : index
    %118 = vector.load %arg2[%c0_108, %117, %c0_109, %c0_110] : memref<1x28x28x4xbf16, #tpu.memory_space<vmem>>, vector<1x8x16x4xbf16>
    %c6_i32_111 = arith.constant 6 : i32
    %119 = arith.addi %1, %c6_i32_111 : i32
    %c-6_i32_112 = arith.constant -6 : i32
    %120 = arith.addi %119, %c-6_i32_112 : i32
    %c0_113 = arith.constant 0 : index
    %121 = arith.index_cast %120 : i32 to index
    %c6_114 = arith.constant 6 : index
    %c0_115 = arith.constant 0 : index
    %122 = vector.load %arg2[%c0_113, %121, %c6_114, %c0_115] : memref<1x28x28x4xbf16, #tpu.memory_space<vmem>>, vector<1x8x16x4xbf16>
    %c6_i32_116 = arith.constant 6 : i32
    %123 = arith.addi %1, %c6_i32_116 : i32
    %c-6_i32_117 = arith.constant -6 : i32
    %124 = arith.addi %123, %c-6_i32_117 : i32
    %c0_118 = arith.constant 0 : index
    %125 = arith.index_cast %124 : i32 to index
    %c12 = arith.constant 12 : index
    %c0_119 = arith.constant 0 : index
    %126 = vector.load %arg2[%c0_118, %125, %c12, %c0_119] : memref<1x28x28x4xbf16, #tpu.memory_space<vmem>>, vector<1x8x16x4xbf16>
    %c6_i32_120 = arith.constant 6 : i32
    %127 = arith.addi %1, %c6_i32_120 : i32
    %c0_i32_121 = arith.constant 0 : i32
    %128 = arith.addi %127, %c0_i32_121 : i32
    %c0_122 = arith.constant 0 : index
    %129 = arith.index_cast %128 : i32 to index
    %c0_123 = arith.constant 0 : index
    %c0_124 = arith.constant 0 : index
    %130 = vector.load %arg2[%c0_122, %129, %c0_123, %c0_124] : memref<1x28x28x4xbf16, #tpu.memory_space<vmem>>, vector<1x8x16x4xbf16>
    %c6_i32_125 = arith.constant 6 : i32
    %131 = arith.addi %1, %c6_i32_125 : i32
    %c0_i32_126 = arith.constant 0 : i32
    %132 = arith.addi %131, %c0_i32_126 : i32
    %c0_127 = arith.constant 0 : index
    %133 = arith.index_cast %132 : i32 to index
    %c6_128 = arith.constant 6 : index
    %c0_129 = arith.constant 0 : index
    %134 = vector.load %arg2[%c0_127, %133, %c6_128, %c0_129] : memref<1x28x28x4xbf16, #tpu.memory_space<vmem>>, vector<1x8x16x4xbf16>
    %c6_i32_130 = arith.constant 6 : i32
    %135 = arith.addi %1, %c6_i32_130 : i32
    %c0_i32_131 = arith.constant 0 : i32
    %136 = arith.addi %135, %c0_i32_131 : i32
    %c0_132 = arith.constant 0 : index
    %137 = arith.index_cast %136 : i32 to index
    %c12_133 = arith.constant 12 : index
    %c0_134 = arith.constant 0 : index
    %138 = vector.load %arg2[%c0_132, %137, %c12_133, %c0_134] : memref<1x28x28x4xbf16, #tpu.memory_space<vmem>>, vector<1x8x16x4xbf16>
    %c6_i32_135 = arith.constant 6 : i32
    %139 = arith.addi %1, %c6_i32_135 : i32
    %c6_i32_136 = arith.constant 6 : i32
    %140 = arith.addi %139, %c6_i32_136 : i32
    %c0_137 = arith.constant 0 : index
    %141 = arith.index_cast %140 : i32 to index
    %c0_138 = arith.constant 0 : index
    %c0_139 = arith.constant 0 : index
    %142 = vector.load %arg2[%c0_137, %141, %c0_138, %c0_139] : memref<1x28x28x4xbf16, #tpu.memory_space<vmem>>, vector<1x8x16x4xbf16>
    %c6_i32_140 = arith.constant 6 : i32
    %143 = arith.addi %1, %c6_i32_140 : i32
    %c6_i32_141 = arith.constant 6 : i32
    %144 = arith.addi %143, %c6_i32_141 : i32
    %c0_142 = arith.constant 0 : index
    %145 = arith.index_cast %144 : i32 to index
    %c6_143 = arith.constant 6 : index
    %c0_144 = arith.constant 0 : index
    %146 = vector.load %arg2[%c0_142, %145, %c6_143, %c0_144] : memref<1x28x28x4xbf16, #tpu.memory_space<vmem>>, vector<1x8x16x4xbf16>
    %c6_i32_145 = arith.constant 6 : i32
    %147 = arith.addi %1, %c6_i32_145 : i32
    %c6_i32_146 = arith.constant 6 : i32
    %148 = arith.addi %147, %c6_i32_146 : i32
    %c0_147 = arith.constant 0 : index
    %149 = arith.index_cast %148 : i32 to index
    %c12_148 = arith.constant 12 : index
    %c0_149 = arith.constant 0 : index
    %150 = vector.load %arg2[%c0_147, %149, %c12_148, %c0_149] : memref<1x28x28x4xbf16, #tpu.memory_space<vmem>>, vector<1x8x16x4xbf16>
    %151 = tpu.concatenate %118, %122, %126, %130, %134, %138, %142, %146, %150 in 3 : vector<1x8x16x4xbf16>, vector<1x8x16x4xbf16>, vector<1x8x16x4xbf16>, vector<1x8x16x4xbf16>, vector<1x8x16x4xbf16>, vector<1x8x16x4xbf16>, vector<1x8x16x4xbf16>, vector<1x8x16x4xbf16>, vector<1x8x16x4xbf16> -> vector<1x8x16x36xbf16>
    %152 = vector.shape_cast %151 : vector<1x8x16x36xbf16> to vector<128x36xbf16>
    %c2_150 = arith.constant 2 : index
    %c0_151 = arith.constant 0 : index
    %c0_152 = arith.constant 0 : index
    %153 = vector.load %arg4[%c2_150, %c0_151, %c0_152] : memref<3x36x256xbf16, #tpu.memory_space<vmem>>, vector<1x36x256xbf16>
    %154 = vector.shape_cast %153 : vector<1x36x256xbf16> to vector<36x256xbf16>
    %cst_153 = arith.constant dense<0.000000e+00> : vector<128x256xf32>
    %155 = tpu.matmul %152, %154, %cst_153 {dimension_numbers = #tpu.dot_dimension_numbers<[1], [0], [0], [1], [0, 0, 1, 1], [], []>} : vector<128x36xbf16>, vector<36x256xbf16>, vector<128x256xf32> -> vector<128x256xf32>
    %c3 = arith.constant 3 : index
    %c0_154 = arith.constant 0 : index
    %156 = vector.load %arg6[%c3, %c0_154] : memref<4x256xf32, #tpu.memory_space<vmem>>, vector<1x256xf32>
    %157 = vector.broadcast %156 : vector<1x256xf32> to vector<128x256xf32>
    %158 = arith.mulf %155, %157 : vector<128x256xf32>
    %c3_155 = arith.constant 3 : index
    %c0_156 = arith.constant 0 : index
    %159 = vector.load %arg7[%c3_155, %c0_156] : memref<4x256xf32, #tpu.memory_space<vmem>>, vector<1x256xf32>
    %160 = vector.broadcast %159 : vector<1x256xf32> to vector<128x256xf32>
    %161 = arith.addf %158, %160 : vector<128x256xf32>
    %cst_157 = arith.constant 0.000000e+00 : f32
    %162 = vector.broadcast %cst_157 : f32 to vector<128x256xf32>
    %163 = arith.maximumf %161, %162 : vector<128x256xf32>
    %164 = tpu.concatenate %16, %65, %114, %163 in 1 : vector<128x256xf32>, vector<128x256xf32>, vector<128x256xf32>, vector<128x256xf32> -> vector<128x1024xf32>
    %165 = arith.truncf %164 : vector<128x1024xf32> to vector<128x1024xbf16>
    %c0_158 = arith.constant 0 : index
    %c0_159 = arith.constant 0 : index
    %166 = vector.load %arg5[%c0_158, %c0_159] : memref<1024x256xbf16, #tpu.memory_space<vmem>>, vector<1024x256xbf16>
    %cst_160 = arith.constant dense<0.000000e+00> : vector<128x256xf32>
    %167 = tpu.matmul %165, %166, %cst_160 {dimension_numbers = #tpu.dot_dimension_numbers<[1], [0], [0], [1], [0, 0, 1, 1], [], []>} : vector<128x1024xbf16>, vector<1024x256xbf16>, vector<128x256xf32> -> vector<128x256xf32>
    %c0_161 = arith.constant 0 : index
    %c0_162 = arith.constant 0 : index
    %c0_163 = arith.constant 0 : index
    %168 = vector.load %arg10[%c0_161, %c0_162, %c0_163] : memref<1x1x256xf32, #tpu.memory_space<vmem>>, vector<1x1x256xf32>
    %169 = vector.shape_cast %168 : vector<1x1x256xf32> to vector<1x256xf32>
    %170 = vector.broadcast %169 : vector<1x256xf32> to vector<128x256xf32>
    %171 = arith.addf %167, %170 : vector<128x256xf32>
    %c0_164 = arith.constant 0 : index
    %c0_165 = arith.constant 0 : index
    %172 = vector.load %arg8[%c0_164, %c0_165] : memref<1x256xf32, #tpu.memory_space<vmem>>, vector<1x256xf32>
    %173 = vector.broadcast %172 : vector<1x256xf32> to vector<128x256xf32>
    %174 = arith.mulf %171, %173 : vector<128x256xf32>
    %c0_166 = arith.constant 0 : index
    %c0_167 = arith.constant 0 : index
    %175 = vector.load %arg9[%c0_166, %c0_167] : memref<1x256xf32, #tpu.memory_space<vmem>>, vector<1x256xf32>
    %176 = vector.broadcast %175 : vector<1x256xf32> to vector<128x256xf32>
    %177 = arith.addf %174, %176 : vector<128x256xf32>
    %cst_168 = arith.constant 0.000000e+00 : f32
    %178 = vector.broadcast %cst_168 : f32 to vector<128x256xf32>
    %179 = arith.maximumf %177, %178 : vector<128x256xf32>
    %c0_169 = arith.constant 0 : index
    %c0_170 = arith.constant 0 : index
    %180 = vector.load %arg11[%c0_169, %c0_170] : memref<128x256xf32, #tpu.memory_space<vmem>>, vector<128x256xf32>
    tpu.vector_store %arg11[%c0_169, %c0_170], %179 {strides = array<i32>} : memref<128x256xf32, #tpu.memory_space<vmem>>, vector<128x256xf32>,
    return
  }
  func.func @transform_0(%arg0: i32, %arg1: i32) -> (i32, i32, i32, i32) {
    %c0_i32 = arith.constant 0 : i32
    %c0_i32_0 = arith.constant 0 : i32
    %c0_i32_1 = arith.constant 0 : i32
    %c0_i32_2 = arith.constant 0 : i32
    return %arg0, %c0_i32, %c0_i32_0, %c0_i32_1 : i32, i32, i32, i32
  }
  func.func @transform_1(%arg0: i32, %arg1: i32) -> (i32, i32) {
    %c0_i32 = arith.constant 0 : i32
    %c0_i32_0 = arith.constant 0 : i32
    %c0_i32_1 = arith.constant 0 : i32
    return %c0_i32, %c0_i32_0 : i32, i32
  }
  func.func @transform_2(%arg0: i32, %arg1: i32) -> (i32, i32, i32) {
    %c0_i32 = arith.constant 0 : i32
    %c0_i32_0 = arith.constant 0 : i32
    %c0_i32_1 = arith.constant 0 : i32
    %c0_i32_2 = arith.constant 0 : i32
    return %c0_i32, %c0_i32_0, %c0_i32_1 : i32, i32, i32
  }
  func.func @transform_3(%arg0: i32, %arg1: i32) -> (i32, i32) {
    %c0_i32 = arith.constant 0 : i32
    %c0_i32_0 = arith.constant 0 : i32
    %c0_i32_1 = arith.constant 0 : i32
    return %c0_i32, %c0_i32_0 : i32, i32
  }
  func.func @transform_4(%arg0: i32, %arg1: i32) -> (i32, i32) {
    %c0_i32 = arith.constant 0 : i32
    %c0_i32_0 = arith.constant 0 : i32
    %c0_i32_1 = arith.constant 0 : i32
    return %c0_i32, %c0_i32_0 : i32, i32
  }
  func.func @transform_5(%arg0: i32, %arg1: i32) -> (i32, i32) {
    %c0_i32 = arith.constant 0 : i32
    %c0_i32_0 = arith.constant 0 : i32
    %c0_i32_1 = arith.constant 0 : i32
    return %c0_i32, %c0_i32_0 : i32, i32
  }
  func.func @transform_6(%arg0: i32, %arg1: i32) -> (i32, i32) {
    %c0_i32 = arith.constant 0 : i32
    %c0_i32_0 = arith.constant 0 : i32
    %c0_i32_1 = arith.constant 0 : i32
    return %c0_i32, %c0_i32_0 : i32, i32
  }
  func.func @transform_7(%arg0: i32, %arg1: i32) -> (i32, i32) {
    %c0_i32 = arith.constant 0 : i32
    %c0_i32_0 = arith.constant 0 : i32
    %c0_i32_1 = arith.constant 0 : i32
    return %c0_i32, %c0_i32_0 : i32, i32
  }
  func.func @transform_8(%arg0: i32, %arg1: i32) -> (i32, i32, i32) {
    %c0_i32 = arith.constant 0 : i32
    %c0_i32_0 = arith.constant 0 : i32
    %c0_i32_1 = arith.constant 0 : i32
    return %arg0, %c0_i32, %c0_i32_0 : i32, i32, i32
  }
  func.func @transform_9(%arg0: i32, %arg1: i32) -> (i32, i32) {
    %c2_i32 = arith.constant 2 : i32
    %0 = arith.muli %arg0, %c2_i32 : i32
    %1 = arith.addi %0, %arg1 : i32
    %c0_i32 = arith.constant 0 : i32
    %c0_i32_0 = arith.constant 0 : i32
    return %1, %c0_i32 : i32, i32
  }
}

</mosaic_0001>

<llo_original>
// kernel: aspp_forward.1
$region0: #{aspp_forward.1}
  #allocation0 [shape = 'u32[]', space=smem, size = 0x4, offset = 0x4, fixed_abs, tag = 'smem constant byte address 0x4 - core index']
  #allocation1 [shape = 'u32[144,128]{1,0:T(1,128)}', space=vmem, size = 0x12000, scoped, tag = 'internal scratch']
  %s0 = inlined_call_operand.vmem [shape: bf16[2,28,28,4], index: 0, kind: input, shape index: {}]
  %s1 = inlined_call_operand.vmem [shape: bf16[4,256], index: 1, kind: input, shape index: {}]
  %s2 = inlined_call_operand.vmem [shape: bf16[3,36,256], index: 2, kind: input, shape index: {}]
  %s3 = inlined_call_operand.vmem [shape: bf16[1024,256], index: 3, kind: input, shape index: {}]
  %s4 = inlined_call_operand.vmem [shape: f32[4,256], index: 4, kind: input, shape index: {}]
  %s5 = inlined_call_operand.vmem [shape: f32[4,256], index: 5, kind: input, shape index: {}]
  %s6 = inlined_call_operand.vmem [shape: f32[1,256], index: 6, kind: input, shape index: {}]
  %s7 = inlined_call_operand.vmem [shape: f32[1,256], index: 7, kind: input, shape index: {}]
  %s8 = inlined_call_operand.vmem [shape: f32[2,1,256], index: 8, kind: input, shape index: {}]
  %s9 = inlined_call_operand.hbm [shape: f32[512,256], index: 9, kind: output, shape index: {}]
  %s10 = sld [smem:[#allocation0]]
  $region69: #{aspp_forward.1} parent=0
    _
  %s12 = ssub.s32 1, %s10
  %s13 = scalar_select 0, %s12, %s10
  $region1: #{aspp_forward.1} parent=0
    #allocation2 [shape = 'u8[262144]{0}', space=vmem, size = 0x40000, scoped, tag = 'output window, operand 0']
    #allocation3 [shape = 's32[2]{0}', space=sflag, size = 0x8, scoped, tag = 'scoped memory for aspp_forward.1']
    %14 = vsyncpa [#allocation3], 0
    %s15 = scalar_lea.sflag [#allocation3], 1
    %16 = vsyncpa %s15, 0
    loop: start=0, step=1, limit=6
    $region2: #{aspp_forward.1} parent=1 // loop_pre_header
      _
    $region3: #{aspp_forward.1} parent=1 // loop_header
      %s18 = sphi 0, %s22
      %p19 = scmp.ge.s32.totalorder %s18, 6
      %s25 = sphi 0, %s37
      %s26 = sphi 0, %s33
      %s27 = sphi 0, %s25
      %s28 = sphi 0, %s26
      %s29 = sphi 0, %s27
      %s30 = sphi 0, %s28
      %s40 = sphi 0, %s42
      %s43 = sphi 0, %s40
      %s44 = sphi 0, %s43
      %s60 = sphi 0, %s44
      %s64 = sphi 0, %s64
      %s66 = sphi 0, %s64
      %s67 = sphi 0, %s66
      %s81 = sphi 0, %s67
      %s85 = sphi 0, %s85
      %s87 = sphi 0, %s85
      %s88 = sphi 0, %s87
      %s102 = sphi 0, %s88
      %s106 = sphi 0, %s106
      %s108 = sphi 0, %s106
      %s109 = sphi 0, %s108
      %s123 = sphi 0, %s109
      %s127 = sphi 0, %s127
      %s129 = sphi 0, %s127
      %s130 = sphi 0, %s129
      %s144 = sphi 0, %s130
      %s148 = sphi 0, %s148
      %s150 = sphi 0, %s148
      %s151 = sphi 0, %s150
      %s165 = sphi 0, %s151
      %s169 = sphi 0, %s169
      %s171 = sphi 0, %s169
      %s172 = sphi 0, %s171
      %s186 = sphi 0, %s172
      %s190 = sphi 0, %s190
      %s192 = sphi 0, %s190
      %s193 = sphi 0, %s192
      %s207 = sphi 0, %s193
      %s213 = sphi 0, %s215
      %s216 = sphi 0, %s213
      %s217 = sphi 0, %s216
      %s233 = sphi 0, %s217
      %s243 = sphi 0, %s245
      %s246 = sphi 0, %s243
      %s247 = sphi 0, %s246
      %s263 = sphi 0, %s247
    $region4: #{aspp_forward.1} parent=1 // loop_header_branch
      %21 = sbr.rel (%p19) target = $region8
    $region5: #{aspp_forward.1} parent=1 // loop_body
      %s23 = ssub.s32 %s18, 1
      %s24 = ssub.s32 %s18, 2
      %s31 = sadd.s32 1, %s26
      %p32 = scmp.ge.s32.totalorder %s31, 2
      %s33 = scalar_select %p32, 0, %s31
      %s34 = sadd.s32 1, %s25
      %s35 = scalar_select %p32, %s34, %s25
      %p36 = scmp.ge.s32.totalorder %s35, 2
      %s37 = scalar_select %p36, 0, %s35
      %s38 = ssub.s32 %s25, %s37
      %p39 = scmp.eq.s32.totalorder %s38, 0
      %s41 = sadd.s32 %s40, 1
      %s42 = scalar_select %p39, %s40, %s41
      %p45 = pneg %p39
      %p46 = scmp.eq.s32.totalorder %s18, 3
      %p47 = por %p45, %p46
      %p48 = scmp.ne.s32.totalorder %s40, %s43
      %p49 = scmp.eq.s32.totalorder %s18, 0
      %p50 = por %p48, %p49
      %p51 = scmp.ne.s32.totalorder %s40, %s43
      %p52 = scmp.eq.s32.totalorder %s23, 3
      %p53 = por %p51, %p52
      %p54 = scmp.ne.s32.totalorder %s43, %s44
      %p55 = scmp.eq.s32.totalorder %s23, 0
      %p56 = por %p54, %p55
      %p57 = scmp.ne.s32.totalorder %s43, %s44
      %p58 = scmp.eq.s32.totalorder %s24, 3
      %p59 = por %p57, %p58
      %p61 = scmp.ne.s32.totalorder %s44, %s60
      %p62 = scmp.eq.s32.totalorder %s24, 0
      %p63 = por %p61, %p62
      %s65 = sadd.s32 %s64, 1
      %p68 = scmp.eq.s32.totalorder %s18, 3
      %p69 = scmp.ne.s32.totalorder %s64, %s66
      %p70 = scmp.eq.s32.totalorder %s18, 0
      %p71 = por %p69, %p70
      %p72 = scmp.ne.s32.totalorder %s64, %s66
      %p73 = scmp.eq.s32.totalorder %s23, 3
      %p74 = por %p72, %p73
      %p75 = scmp.ne.s32.totalorder %s66, %s67
      %p76 = scmp.eq.s32.totalorder %s23, 0
      %p77 = por %p75, %p76
      %p78 = scmp.ne.s32.totalorder %s66, %s67
      %p79 = scmp.eq.s32.totalorder %s24, 3
      %p80 = por %p78, %p79
      %p82 = scmp.ne.s32.totalorder %s67, %s81
      %p83 = scmp.eq.s32.totalorder %s24, 0
      %p84 = por %p82, %p83
      %s86 = sadd.s32 %s85, 1
      %p89 = scmp.eq.s32.totalorder %s18, 3
      %p90 = scmp.ne.s32.totalorder %s85, %s87
      %p91 = scmp.eq.s32.totalorder %s18, 0
      %p92 = por %p90, %p91
      %p93 = scmp.ne.s32.totalorder %s85, %s87
      %p94 = scmp.eq.s32.totalorder %s23, 3
      %p95 = por %p93, %p94
      %p96 = scmp.ne.s32.totalorder %s87, %s88
      %p97 = scmp.eq.s32.totalorder %s23, 0
      %p98 = por %p96, %p97
      %p99 = scmp.ne.s32.totalorder %s87, %s88
      %p100 = scmp.eq.s32.totalorder %s24, 3
      %p101 = por %p99, %p100
      %p103 = scmp.ne.s32.totalorder %s88, %s102
      %p104 = scmp.eq.s32.totalorder %s24, 0
      %p105 = por %p103, %p104
      %s107 = sadd.s32 %s106, 1
      %p110 = scmp.eq.s32.totalorder %s18, 3
      %p111 = scmp.ne.s32.totalorder %s106, %s108
      %p112 = scmp.eq.s32.totalorder %s18, 0
      %p113 = por %p111, %p112
      %p114 = scmp.ne.s32.totalorder %s106, %s108
      %p115 = scmp.eq.s32.totalorder %s23, 3
      %p116 = por %p114, %p115
      %p117 = scmp.ne.s32.totalorder %s108, %s109
      %p118 = scmp.eq.s32.totalorder %s23, 0
      %p119 = por %p117, %p118
      %p120 = scmp.ne.s32.totalorder %s108, %s109
      %p121 = scmp.eq.s32.totalorder %s24, 3
      %p122 = por %p120, %p121
      %p124 = scmp.ne.s32.totalorder %s109, %s123
      %p125 = scmp.eq.s32.totalorder %s24, 0
      %p126 = por %p124, %p125
      %s128 = sadd.s32 %s127, 1
      %p131 = scmp.eq.s32.totalorder %s18, 3
      %p132 = scmp.ne.s32.totalorder %s127, %s129
      %p133 = scmp.eq.s32.totalorder %s18, 0
      %p134 = por %p132, %p133
      %p135 = scmp.ne.s32.totalorder %s127, %s129
      %p136 = scmp.eq.s32.totalorder %s23, 3
      %p137 = por %p135, %p136
      %p138 = scmp.ne.s32.totalorder %s129, %s130
      %p139 = scmp.eq.s32.totalorder %s23, 0
      %p140 = por %p138, %p139
      %p141 = scmp.ne.s32.totalorder %s129, %s130
      %p142 = scmp.eq.s32.totalorder %s24, 3
      %p143 = por %p141, %p142
      %p145 = scmp.ne.s32.totalorder %s130, %s144
      %p146 = scmp.eq.s32.totalorder %s24, 0
      %p147 = por %p145, %p146
      %s149 = sadd.s32 %s148, 1
      %p152 = scmp.eq.s32.totalorder %s18, 3
      %p153 = scmp.ne.s32.totalorder %s148, %s150
      %p154 = scmp.eq.s32.totalorder %s18, 0
      %p155 = por %p153, %p154
      %p156 = scmp.ne.s32.totalorder %s148, %s150
      %p157 = scmp.eq.s32.totalorder %s23, 3
      %p158 = por %p156, %p157
      %p159 = scmp.ne.s32.totalorder %s150, %s151
      %p160 = scmp.eq.s32.totalorder %s23, 0
      %p161 = por %p159, %p160
      %p162 = scmp.ne.s32.totalorder %s150, %s151
      %p163 = scmp.eq.s32.totalorder %s24, 3
      %p164 = por %p162, %p163
      %p166 = scmp.ne.s32.totalorder %s151, %s165
      %p167 = scmp.eq.s32.totalorder %s24, 0
      %p168 = por %p166, %p167
      %s170 = sadd.s32 %s169, 1
      %p173 = scmp.eq.s32.totalorder %s18, 3
      %p174 = scmp.ne.s32.totalorder %s169, %s171
      %p175 = scmp.eq.s32.totalorder %s18, 0
      %p176 = por %p174, %p175
      %p177 = scmp.ne.s32.totalorder %s169, %s171
      %p178 = scmp.eq.s32.totalorder %s23, 3
      %p179 = por %p177, %p178
      %p180 = scmp.ne.s32.totalorder %s171, %s172
      %p181 = scmp.eq.s32.totalorder %s23, 0
      %p182 = por %p180, %p181
      %p183 = scmp.ne.s32.totalorder %s171, %s172
      %p184 = scmp.eq.s32.totalorder %s24, 3
      %p185 = por %p183, %p184
      %p187 = scmp.ne.s32.totalorder %s172, %s186
      %p188 = scmp.eq.s32.totalorder %s24, 0
      %p189 = por %p187, %p188
      %s191 = sadd.s32 %s190, 1
      %p194 = scmp.eq.s32.totalorder %s18, 3
      %p195 = scmp.ne.s32.totalorder %s190, %s192
      %p196 = scmp.eq.s32.totalorder %s18, 0
      %p197 = por %p195, %p196
      %p198 = scmp.ne.s32.totalorder %s190, %s192
      %p199 = scmp.eq.s32.totalorder %s23, 3
      %p200 = por %p198, %p199
      %p201 = scmp.ne.s32.totalorder %s192, %s193
      %p202 = scmp.eq.s32.totalorder %s23, 0
      %p203 = por %p201, %p202
      %p204 = scmp.ne.s32.totalorder %s192, %s193
      %p205 = scmp.eq.s32.totalorder %s24, 3
      %p206 = por %p204, %p205
      %p208 = scmp.ne.s32.totalorder %s193, %s207
      %p209 = scmp.eq.s32.totalorder %s24, 0
      %p210 = por %p208, %p209
      %s211 = ssub.s32 %s25, %s37
      %p212 = scmp.eq.s32.totalorder %s211, 0
      %s214 = sadd.s32 %s213, 1
      %s215 = scalar_select %p212, %s213, %s214
      %p218 = pneg %p212
      %p219 = scmp.eq.s32.totalorder %s18, 3
      %p220 = por %p218, %p219
      %p221 = scmp.ne.s32.totalorder %s213, %s216
      %p222 = scmp.eq.s32.totalorder %s18, 0
      %p223 = por %p221, %p222
      %p224 = scmp.ne.s32.totalorder %s213, %s216
      %p225 = scmp.eq.s32.totalorder %s23, 3
      %p226 = por %p224, %p225
      %p227 = scmp.ne.s32.totalorder %s216, %s217
      %p228 = scmp.eq.s32.totalorder %s23, 0
      %p229 = por %p227, %p228
      %p230 = scmp.ne.s32.totalorder %s216, %s217
      %p231 = scmp.eq.s32.totalorder %s24, 3
      %p232 = por %p230, %p231
      %p234 = scmp.ne.s32.totalorder %s217, %s233
      %p235 = scmp.eq.s32.totalorder %s24, 0
      %p236 = por %p234, %p235
      %s237 = smul.u32 %s25, 2
      %s238 = sadd.s32 %s237, %s26
      %s239 = smul.u32 %s37, 2
      %s240 = sadd.s32 %s239, %s33
      %s241 = ssub.s32 %s238, %s240
      %p242 = scmp.eq.s32.totalorder %s241, 0
      %s244 = sadd.s32 %s243, 1
      %s245 = scalar_select %p242, %s243, %s244
      %p248 = pneg %p242
      %p249 = scmp.eq.s32.totalorder %s18, 3
      %p250 = por %p248, %p249
      %p251 = scmp.ne.s32.totalorder %s243, %s246
      %p252 = scmp.eq.s32.totalorder %s18, 0
      %p253 = por %p251, %p252
      %p254 = scmp.ne.s32.totalorder %s243, %s246
      %p255 = scmp.eq.s32.totalorder %s23, 3
      %p256 = por %p254, %p255
      %p257 = scmp.ne.s32.totalorder %s246, %s247
      %p258 = scmp.eq.s32.totalorder %s23, 0
      %p259 = por %p257, %p258
      %p260 = scmp.ne.s32.totalorder %s246, %s247
      %p261 = scmp.eq.s32.totalorder %s24, 3
      %p262 = por %p260, %p261
      %p264 = scmp.ne.s32.totalorder %s247, %s263
      %p265 = scmp.eq.s32.totalorder %s24, 0
      %p266 = por %p264, %p265
      %p267 = scmp.le.s32.totalorder 1, %s18
      %p268 = scmp.lt.s32.totalorder %s18, 5
      %p269 = pnand %p267, %p268
      %p270 = pneg %p269
      // Predicated region
      $region9: #{aspp_forward.1} parent=5 // pred_check
        _
      $region10: #{aspp_forward.1} parent=5 // pred_check_branch
        %272 = sbr.rel (%p269) target = $region12
      $region11: #{aspp_forward.1} parent=5 // pred_region
        %s273 = ssub.s32 %s18, 1
        // Predicated region
        $region13: #{aspp_forward.1} parent=11 // pred_check
          %p274 = pneg %p77
        $region14: #{aspp_forward.1} parent=11 // pred_check_branch
          %276 = sbr.rel (%p274) target = $region16
        $region15: #{aspp_forward.1} parent=11 // pred_region
          _
        $region16: #{aspp_forward.1} parent=11 // pred_fallthru
          _
        // Predicated region
        $region17: #{aspp_forward.1} parent=11 // pred_check
          %p277 = pneg %p98
        $region18: #{aspp_forward.1} parent=11 // pred_check_branch
          %279 = sbr.rel (%p277) target = $region20
        $region19: #{aspp_forward.1} parent=11 // pred_region
          _
        $region20: #{aspp_forward.1} parent=11 // pred_fallthru
          _
        // Predicated region
        $region21: #{aspp_forward.1} parent=11 // pred_check
          %p280 = pneg %p119
        $region22: #{aspp_forward.1} parent=11 // pred_check_branch
          %282 = sbr.rel (%p280) target = $region24
        $region23: #{aspp_forward.1} parent=11 // pred_region
          _
        $region24: #{aspp_forward.1} parent=11 // pred_fallthru
          _
        // Predicated region
        $region25: #{aspp_forward.1} parent=11 // pred_check
          %p283 = pneg %p140
        $region26: #{aspp_forward.1} parent=11 // pred_check_branch
          %285 = sbr.rel (%p283) target = $region28
        $region27: #{aspp_forward.1} parent=11 // pred_region
          _
        $region28: #{aspp_forward.1} parent=11 // pred_fallthru
          _
        // Predicated region
        $region29: #{aspp_forward.1} parent=11 // pred_check
          %p286 = pneg %p161
        $region30: #{aspp_forward.1} parent=11 // pred_check_branch
          %288 = sbr.rel (%p286) target = $region32
        $region31: #{aspp_forward.1} parent=11 // pred_region
          _
        $region32: #{aspp_forward.1} parent=11 // pred_fallthru
          _
        // Predicated region
        $region33: #{aspp_forward.1} parent=11 // pred_check
          %p289 = pneg %p182
        $region34: #{aspp_forward.1} parent=11 // pred_check_branch
          %291 = sbr.rel (%p289) target = $region36
        $region35: #{aspp_forward.1} parent=11 // pred_region
          _
        $region36: #{aspp_forward.1} parent=11 // pred_fallthru
          _
        // Predicated region
        $region37: #{aspp_forward.1} parent=11 // pred_check
          %p292 = pneg %p203
        $region38: #{aspp_forward.1} parent=11 // pred_check_branch
          %294 = sbr.rel (%p292) target = $region40
        $region39: #{aspp_forward.1} parent=11 // pred_region
          _
        $region40: #{aspp_forward.1} parent=11 // pred_fallthru
          _
      $region12: #{aspp_forward.1} parent=5 // pred_fallthru
        _
      %p295 = scmp.lt.s32.totalorder %s18, 4
      // Predicated region
      $region41: #{aspp_forward.1} parent=5 // pred_check
        %p296 = pneg %p295
      $region42: #{aspp_forward.1} parent=5 // pred_check_branch
        %298 = sbr.rel (%p296) target = $region44
      $region43: #{aspp_forward.1} parent=5 // pred_region
        // Predicated region
        $region45: #{aspp_forward.1} parent=43 // pred_check
          %p299 = pneg %p50
        $region46: #{aspp_forward.1} parent=43 // pred_check_branch
          %301 = sbr.rel (%p299) target = $region48
        $region47: #{aspp_forward.1} parent=43 // pred_region
          %p302 = scmp.lt.s32.totalorder %s25, 1
          %s303 = scalar_select %p302, %s25, 1
          %s304 = smul.addr %s303, 112
          %s305 = smul.addr %s304, 4
          %s306 = scalar_lea.vmem %s0, %s305
        $region48: #{aspp_forward.1} parent=43 // pred_fallthru
          _
        // Predicated region
        $region49: #{aspp_forward.1} parent=43 // pred_check
          %p307 = pneg %p223
        $region50: #{aspp_forward.1} parent=43 // pred_check_branch
          %309 = sbr.rel (%p307) target = $region52
        $region51: #{aspp_forward.1} parent=43 // pred_region
          %p310 = scmp.lt.s32.totalorder %s25, 1
          %s311 = scalar_select %p310, %s25, 1
          %s312 = smul.addr %s311, 2
          %s313 = scalar_lea.vmem %s8, %s312
        $region52: #{aspp_forward.1} parent=43 // pred_fallthru
          _
      $region44: #{aspp_forward.1} parent=5 // pred_fallthru
        _
      %p314 = scmp.le.s32.totalorder 1, %s18
      %p315 = scmp.lt.s32.totalorder %s18, 5
      %p316 = pnand %p314, %p315
      %p317 = pneg %p316
      // Predicated region
      $region53: #{aspp_forward.1} parent=5 // pred_check
        _
      $region54: #{aspp_forward.1} parent=5 // pred_check_branch
        %319 = sbr.rel (%p316) target = $region56
      $region55: #{aspp_forward.1} parent=5 // pred_region
        %s320 = ssub.s32 %s18, 1
        %p321 = scmp.lt.s32.totalorder %s27, 1
        %s322 = scalar_select %p321, %s27, 1
        %s323 = smul.addr %s322, 112
        %s324 = smul.addr %s323, 4
        %s325 = scalar_lea.vmem %s0, %s324
        %p326 = pneg %p56
        %p327 = pneg %p53
        %p328 = pneg %p77
        %p329 = pneg %p74
        %p330 = pneg %p98
        %p331 = pneg %p95
        %p332 = pneg %p119
        %p333 = pneg %p116
        %p334 = pneg %p140
        %p335 = pneg %p137
        %p336 = pneg %p161
        %p337 = pneg %p158
        %p338 = pneg %p182
        %p339 = pneg %p179
        %p340 = pneg %p203
        %p341 = pneg %p200
        %p342 = scmp.lt.s32.totalorder %s27, 1
        %s343 = scalar_select %p342, %s27, 1
        %s344 = smul.addr %s343, 2
        %s345 = scalar_lea.vmem %s8, %s344
        %p346 = pneg %p229
        %p347 = pneg %p226
        %p348 = pneg %p259
        %p349 = pneg %p256
        %s350 = sand.u32 %s246, 1
        %s351 = scalar_lea.sflag [#allocation3], %s350
        %s352 = sand.u32 %s246, 1
        %s353 = smul.addr %s352, 256
        %s354 = scalar_lea.vmem [#allocation2], %s353
        %p355 = scmp.lt.s32.totalorder %s27, 1
        %s356 = scalar_select %p355, %s27, 1
        %s357 = smul.addr %s356, 112
        %s358 = smul.addr %s357, 4
        %s359 = scalar_lea.vmem %s0, %s358
        %p360 = scmp.lt.s32.totalorder %s27, 1
        %s361 = scalar_select %p360, %s27, 1
        %s362 = smul.addr %s361, 2
        %s363 = scalar_lea.vmem %s8, %s362
        %s364 = smul.u32 %s27, 2
        %s365 = sadd.s32 %s364, %s28
        %s366 = smul.u32 16, %s365
        %s368 = smul.u32 %s28, 8
        %s369 = sadd.s32 %s368, 6
        %s370 = smul.u32 %s369, 4
        %s371 = smul.addr %s370, 4
        %s372 = scalar_lea.vmem %s359, %s371
        %v373 = vld [vmem:[%s372] sm:$0x8]
        %v374 = vld [vmem:[%s372 + $0x4] sm:$0xf]
        %v375 = vld [vmem:[%s372 + $0x8] sm:$0x7]
        %v376 = vld [vmem:[%s372 + $0x10] sm:$0x8]
        %v377 = vld [vmem:[%s372 + $0x14] sm:$0xf]
        %v378 = vld [vmem:[%s372 + $0x18] sm:$0x7]
        %v379 = vld [vmem:[%s372 + $0x20] sm:$0x8]
        %v380 = vld [vmem:[%s372 + $0x24] sm:$0xf]
        %v381 = vld [vmem:[%s372 + $0x28] sm:$0x7]
        %v382 = vld [vmem:[%s372 + $0x30] sm:$0x8]
        %v383 = vld [vmem:[%s372 + $0x34] sm:$0xf]
        %v384 = vld [vmem:[%s372 + $0x38] sm:$0x7]
        %v385 = vld [vmem:[%s372 + $0x40] sm:$0x8]
        %v386 = vld [vmem:[%s372 + $0x44] sm:$0xf]
        %v387 = vld [vmem:[%s372 + $0x48] sm:$0x7]
        %v388 = vld [vmem:[%s372 + $0x50] sm:$0x8]
        %v389 = vld [vmem:[%s372 + $0x54] sm:$0xf]
        %v390 = vld [vmem:[%s372 + $0x58] sm:$0x7]
        %v391 = vld [vmem:[%s372 + $0x60] sm:$0x8]
        %v392 = vld [vmem:[%s372 + $0x64] sm:$0xf]
        %v393 = vld [vmem:[%s372 + $0x68] sm:$0x7]
        %v394 = vld [vmem:[%s372 + $0x70] sm:$0x8]
        %v395 = vld [vmem:[%s372 + $0x74] sm:$0xf]
        %v396 = vld [vmem:[%s372 + $0x78] sm:$0x7]
        %vm421 = vcmask 1040384
        %vm422 = vcmask 1044484
        %vm423 = vmor %vm421, %vm422
        %v424 = vrot.slane %v373, 7
        %v425 = vrot.slane %v424, 4
        %v426 = vrot.slane %v374, 7
        %v427 = vsel %vm423, %v425, %v426
        %v428 = vrot.slane %v426, 4
        %v429 = vrot.slane %v375, 7
        %v430 = vsel %vm423, %v428, %v429
        %v431 = vrot.slane %v376, 7
        %v432 = vrot.slane %v431, 4
        %v433 = vrot.slane %v377, 7
        %v434 = vsel %vm423, %v432, %v433
        %v435 = vrot.slane %v433, 4
        %v436 = vrot.slane %v378, 7
        %v437 = vsel %vm423, %v435, %v436
        %v438 = vrot.slane %v379, 7
        %v439 = vrot.slane %v438, 4
        %v440 = vrot.slane %v380, 7
        %v441 = vsel %vm423, %v439, %v440
        %v442 = vrot.slane %v440, 4
        %v443 = vrot.slane %v381, 7
        %v444 = vsel %vm423, %v442, %v443
        %v445 = vrot.slane %v382, 7
        %v446 = vrot.slane %v445, 4
        %v447 = vrot.slane %v383, 7
        %v448 = vsel %vm423, %v446, %v447
        %v449 = vrot.slane %v447, 4
        %v450 = vrot.slane %v384, 7
        %v451 = vsel %vm423, %v449, %v450
        %v452 = vrot.slane %v385, 7
        %v453 = vrot.slane %v452, 4
        %v454 = vrot.slane %v386, 7
        %v455 = vsel %vm423, %v453, %v454
        %v456 = vrot.slane %v454, 4
        %v457 = vrot.slane %v387, 7
        %v458 = vsel %vm423, %v456, %v457
        %v459 = vrot.slane %v388, 7
        %v460 = vrot.slane %v459, 4
        %v461 = vrot.slane %v389, 7
        %v462 = vsel %vm423, %v460, %v461
        %v463 = vrot.slane %v461, 4
        %v464 = vrot.slane %v390, 7
        %v465 = vsel %vm423, %v463, %v464
        %v466 = vrot.slane %v391, 7
        %v467 = vrot.slane %v466, 4
        %v468 = vrot.slane %v392, 7
        %v469 = vsel %vm423, %v467, %v468
        %v470 = vrot.slane %v468, 4
        %v471 = vrot.slane %v393, 7
        %v472 = vsel %vm423, %v470, %v471
        %v473 = vrot.slane %v394, 7
        %v474 = vrot.slane %v473, 4
        %v475 = vrot.slane %v395, 7
        %v476 = vsel %vm423, %v474, %v475
        %v477 = vrot.slane %v475, 4
        %v478 = vrot.slane %v396, 7
        %v479 = vsel %vm423, %v477, %v478
        %v480 = vld [vmem:[%s1] sm:$0xf]
        %v481 = vunpack.c.l.b16 %v427
        %v482 = vunpack.c.l.b16 %v430
        %v483 = vunpack.c.l.b16 %v434
        %v484 = vunpack.c.l.b16 %v437
        %v485 = vunpack.c.l.b16 %v441
        %v486 = vunpack.c.l.b16 %v444
        %v487 = vunpack.c.l.b16 %v448
        %v488 = vunpack.c.l.b16 %v451
        %v489 = vunpack.c.l.b16 %v455
        %v490 = vunpack.c.l.b16 %v458
        %v491 = vunpack.c.l.b16 %v462
        %v492 = vunpack.c.l.b16 %v465
        %v493 = vunpack.c.l.b16 %v469
        %v494 = vunpack.c.l.b16 %v472
        %v495 = vunpack.c.l.b16 %v476
        %v496 = vunpack.c.l.b16 %v479
        %v497 = vpack.c.b16 %v482, %v481
        %v498 = vpack.c.b16 %v484, %v483
        %v499 = vpack.c.b16 %v486, %v485
        %v500 = vpack.c.b16 %v488, %v487
        %v501 = vpack.c.b16 %v490, %v489
        %v502 = vpack.c.b16 %v492, %v491
        %v503 = vpack.c.b16 %v494, %v493
        %v504 = vpack.c.b16 %v496, %v495
        %v507 = vunpack.c.l.s4 1983009808
        %v508 = vunpack.c.0.s8 %v507
        %v509 = vlaneseq
        %v510 = vshrl.u32 %v509, 7
        %v511 = vsub.s32 %v508, %v510
        %v512 = vrot.slane %v480, %v511
        %v513 = vcombine.high %v512, %v512
        %vm514 = vcmask 31744
        %v516 = vsel %vm514, %v497, 0
        %v519 = vsel %vm514, %v498, 0
        %v522 = vsel %vm514, %v499, 0
        %v525 = vsel %vm514, %v500, 0
        %v528 = vsel %vm514, %v501, 0
        %v531 = vsel %vm514, %v502, 0
        %v534 = vsel %vm514, %v503, 0
        %v537 = vsel %vm514, %v504, 0
        %vm539 = vcmask 1041408
        %v541 = vsel %vm539, %v512, 0
        %v544 = vsel %vm539, %v513, 0
        %546 = vmatprep.subr.bf16.mxu0 0
        %547 = vmatpush1.bf16.msra.mxu0 0
        %548 = vmatprep.subr.bf16.mxu0 0
        %549 = vmatpush1.bf16.msra.mxu0 0
        %550 = vmatprep.subr.bf16.mxu0 0
        %551 = vmatpush1.bf16.msra.mxu0 0
        %552 = vmatprep.subr.bf16.mxu0 0
        %553 = vmatpush1.bf16.msra.mxu0 0
        %554 = vmatprep.subr.bf16.mxu0 0
        %555 = vmatpush1.bf16.msra.mxu0 0
        %556 = vmatprep.subr.bf16.mxu0 0
        %557 = vmatpush1.bf16.msra.mxu0 0
        %558 = vmatprep.subr.bf16.mxu0 0
        %559 = vmatpush1.bf16.msra.mxu0 0
        %560 = vmatprep.subr.bf16.mxu0 %v544
        %561 = vmatpush1.bf16.msra.mxu0 %v541
        %562 = vmatprep.subr.bf16.mxu0 0
        %563 = vmatpush2.bf16.msra.mxu0 0
        %564 = vmatprep.subr.bf16.mxu0 0
        %565 = vmatpush2.bf16.msra.mxu0 0
        %566 = vmatprep.subr.bf16.mxu0 0
        %567 = vmatpush2.bf16.msra.mxu0 0
        %568 = vmatprep.subr.bf16.mxu0 0
        %569 = vmatpush2.bf16.msra.mxu0 0
        %570 = vmatprep.subr.bf16.mxu0 0
        %571 = vmatpush2.bf16.msra.mxu0 0
        %572 = vmatprep.subr.bf16.mxu0 0
        %573 = vmatpush2.bf16.msra.mxu0 0
        %574 = vmatprep.subr.bf16.mxu0 0
        %575 = vmatpush2.bf16.msra.mxu0 0
        %576 = vmatprep.subr.bf16.mxu0 0
        %577 = vmatpush2.bf16.msra.mxu0 0
        %578 = vmatprep.mubr.bf16.mxu0 0
        %579 = vmatmul.mubr.bf16.gmra.mxu0 %v516
        %v580 = vpop.f32.mrf.mxu0
        %v581 = vadd.f32 0.0, %v580
        %v582 = vpop.f32.mrf.mxu0
        %v583 = vadd.f32 0.0, %v582
        %v584 = vpop.f32.mrf.mxu0
        %v585 = vadd.f32 0.0, %v584
        %v586 = vpop.f32.mrf.mxu0
        %v587 = vadd.f32 0.0, %v586
        %588 = vmatprep.mubr.bf16.mxu0 0
        %589 = vmatmul.mubr.bf16.gmra.mxu0 %v519
        %v590 = vpop.f32.mrf.mxu0
        %v591 = vadd.f32 0.0, %v590
        %v592 = vpop.f32.mrf.mxu0
        %v593 = vadd.f32 0.0, %v592
        %v594 = vpop.f32.mrf.mxu0
        %v595 = vadd.f32 0.0, %v594
        %v596 = vpop.f32.mrf.mxu0
        %v597 = vadd.f32 0.0, %v596
        %598 = vmatprep.mubr.bf16.mxu0 0
        %599 = vmatmul.mubr.bf16.gmra.mxu0 %v522
        %v600 = vpop.f32.mrf.mxu0
        %v601 = vadd.f32 0.0, %v600
        %v602 = vpop.f32.mrf.mxu0
        %v603 = vadd.f32 0.0, %v602
        %v604 = vpop.f32.mrf.mxu0
        %v605 = vadd.f32 0.0, %v604
        %v606 = vpop.f32.mrf.mxu0
        %v607 = vadd.f32 0.0, %v606
        %608 = vmatprep.mubr.bf16.mxu0 0
        %609 = vmatmul.mubr.bf16.gmra.mxu0 %v525
        %v610 = vpop.f32.mrf.mxu0
        %v611 = vadd.f32 0.0, %v610
        %v612 = vpop.f32.mrf.mxu0
        %v613 = vadd.f32 0.0, %v612
        %v614 = vpop.f32.mrf.mxu0
        %v615 = vadd.f32 0.0, %v614
        %v616 = vpop.f32.mrf.mxu0
        %v617 = vadd.f32 0.0, %v616
        %618 = vmatprep.mubr.bf16.mxu0 0
        %619 = vmatmul.mubr.bf16.gmra.mxu0 %v528
        %v620 = vpop.f32.mrf.mxu0
        %v621 = vadd.f32 0.0, %v620
        %v622 = vpop.f32.mrf.mxu0
        %v623 = vadd.f32 0.0, %v622
        %v624 = vpop.f32.mrf.mxu0
        %v625 = vadd.f32 0.0, %v624
        %v626 = vpop.f32.mrf.mxu0
        %v627 = vadd.f32 0.0, %v626
        %628 = vmatprep.mubr.bf16.mxu0 0
        %629 = vmatmul.mubr.bf16.gmra.mxu0 %v531
        %v630 = vpop.f32.mrf.mxu0
        %v631 = vadd.f32 0.0, %v630
        %v632 = vpop.f32.mrf.mxu0
        %v633 = vadd.f32 0.0, %v632
        %v634 = vpop.f32.mrf.mxu0
        %v635 = vadd.f32 0.0, %v634
        %v636 = vpop.f32.mrf.mxu0
        %v637 = vadd.f32 0.0, %v636
        %638 = vmatprep.mubr.bf16.mxu0 0
        %639 = vmatmul.mubr.bf16.gmra.mxu0 %v534
        %v640 = vpop.f32.mrf.mxu0
        %v641 = vadd.f32 0.0, %v640
        %v642 = vpop.f32.mrf.mxu0
        %v643 = vadd.f32 0.0, %v642
        %v644 = vpop.f32.mrf.mxu0
        %v645 = vadd.f32 0.0, %v644
        %v646 = vpop.f32.mrf.mxu0
        %v647 = vadd.f32 0.0, %v646
        %648 = vmatprep.mubr.bf16.mxu0 0
        %649 = vmatmul.mubr.bf16.gmra.mxu0 %v537
        %v650 = vpop.f32.mrf.mxu0
        %v651 = vadd.f32 0.0, %v650
        %v652 = vpop.f32.mrf.mxu0
        %v653 = vadd.f32 0.0, %v652
        %v654 = vpop.f32.mrf.mxu0
        %v655 = vadd.f32 0.0, %v654
        %v656 = vpop.f32.mrf.mxu0
        %v657 = vadd.f32 0.0, %v656
        %658 = vdwg.mxu0
        %v659 = vld [vmem:[%s4] ss:$4 sm:$0x3]
        %v661 = vlaneseq
        %v662 = vshrl.u32 %v661, 7
        %v663 = vsub.s32 0, %v662
        %v664 = vrot.slane %v659, %v663
        %v665 = vlaneseq
        %v666 = vshrl.u32 %v665, 7
        %v667 = vsub.s32 1, %v666
        %v668 = vrot.slane %v659, %v667
        %v671 = vmul.f32 %v581, %v664
        %v672 = vmul.f32 %v583, %v668
        %v673 = vmul.f32 %v585, %v664
        %v674 = vmul.f32 %v587, %v668
        %v675 = vmul.f32 %v591, %v664
        %v676 = vmul.f32 %v593, %v668
        %v677 = vmul.f32 %v595, %v664
        %v678 = vmul.f32 %v597, %v668
        %v679 = vmul.f32 %v601, %v664
        %v680 = vmul.f32 %v603, %v668
        %v681 = vmul.f32 %v605, %v664
        %v682 = vmul.f32 %v607, %v668
        %v683 = vmul.f32 %v611, %v664
        %v684 = vmul.f32 %v613, %v668
        %v685 = vmul.f32 %v615, %v664
        %v686 = vmul.f32 %v617, %v668
        %v687 = vmul.f32 %v621, %v664
        %v688 = vmul.f32 %v623, %v668
        %v689 = vmul.f32 %v625, %v664
        %v690 = vmul.f32 %v627, %v668
        %v691 = vmul.f32 %v631, %v664
        %v692 = vmul.f32 %v633, %v668
        %v693 = vmul.f32 %v635, %v664
        %v694 = vmul.f32 %v637, %v668
        %v695 = vmul.f32 %v641, %v664
        %v696 = vmul.f32 %v643, %v668
        %v697 = vmul.f32 %v645, %v664
        %v698 = vmul.f32 %v647, %v668
        %v699 = vmul.f32 %v651, %v664
        %v700 = vmul.f32 %v653, %v668
        %v701 = vmul.f32 %v655, %v664
        %v702 = vmul.f32 %v657, %v668
        %v703 = vld [vmem:[%s5] ss:$4 sm:$0x3]
        %v705 = vlaneseq
        %v706 = vshrl.u32 %v705, 7
        %v707 = vsub.s32 0, %v706
        %v708 = vrot.slane %v703, %v707
        %v709 = vlaneseq
        %v710 = vshrl.u32 %v709, 7
        %v711 = vsub.s32 1, %v710
        %v712 = vrot.slane %v703, %v711
        %v715 = vadd.f32 %v671, %v708
        %v716 = vadd.f32 %v672, %v712
        %v717 = vadd.f32 %v673, %v708
        %v718 = vadd.f32 %v674, %v712
        %v719 = vadd.f32 %v675, %v708
        %v720 = vadd.f32 %v676, %v712
        %v721 = vadd.f32 %v677, %v708
        %v722 = vadd.f32 %v678, %v712
        %v723 = vadd.f32 %v679, %v708
        %v724 = vadd.f32 %v680, %v712
        %v725 = vadd.f32 %v681, %v708
        %v726 = vadd.f32 %v682, %v712
        %v727 = vadd.f32 %v683, %v708
        %v728 = vadd.f32 %v684, %v712
        %v729 = vadd.f32 %v685, %v708
        %v730 = vadd.f32 %v686, %v712
        %v731 = vadd.f32 %v687, %v708
        %v732 = vadd.f32 %v688, %v712
        %v733 = vadd.f32 %v689, %v708
        %v734 = vadd.f32 %v690, %v712
        %v735 = vadd.f32 %v691, %v708
        %v736 = vadd.f32 %v692, %v712
        %v737 = vadd.f32 %v693, %v708
        %v738 = vadd.f32 %v694, %v712
        %v739 = vadd.f32 %v695, %v708
        %v740 = vadd.f32 %v696, %v712
        %v741 = vadd.f32 %v697, %v708
        %v742 = vadd.f32 %v698, %v712
        %v743 = vadd.f32 %v699, %v708
        %v744 = vadd.f32 %v700, %v712
        %v745 = vadd.f32 %v701, %v708
        %v746 = vadd.f32 %v702, %v712
        %v747 = vmax.f32 %v715, 0.0
        %v748 = vmax.f32 %v716, 0.0
        %v749 = vmax.f32 %v717, 0.0
        %v750 = vmax.f32 %v718, 0.0
        %v751 = vmax.f32 %v719, 0.0
        %v752 = vmax.f32 %v720, 0.0
        %v753 = vmax.f32 %v721, 0.0
        %v754 = vmax.f32 %v722, 0.0
        %v755 = vmax.f32 %v723, 0.0
        %v756 = vmax.f32 %v724, 0.0
        %v757 = vmax.f32 %v725, 0.0
        %v758 = vmax.f32 %v726, 0.0
        %v759 = vmax.f32 %v727, 0.0
        %v760 = vmax.f32 %v728, 0.0
        %v761 = vmax.f32 %v729, 0.0
        %v762 = vmax.f32 %v730, 0.0
        %v763 = vmax.f32 %v731, 0.0
        %v764 = vmax.f32 %v732, 0.0
        %v765 = vmax.f32 %v733, 0.0
        %v766 = vmax.f32 %v734, 0.0
        %v767 = vmax.f32 %v735, 0.0
        %v768 = vmax.f32 %v736, 0.0
        %v769 = vmax.f32 %v737, 0.0
        %v770 = vmax.f32 %v738, 0.0
        %v771 = vmax.f32 %v739, 0.0
        %v772 = vmax.f32 %v740, 0.0
        %v773 = vmax.f32 %v741, 0.0
        %v774 = vmax.f32 %v742, 0.0
        %v775 = vmax.f32 %v743, 0.0
        %v776 = vmax.f32 %v744, 0.0
        %v777 = vmax.f32 %v745, 0.0
        %v778 = vmax.f32 %v746, 0.0
        %s779 = sadd.s32 %s368, 4
        %s780 = smul.u32 %s779, 4
        %s781 = smul.addr %s780, 4
        %s782 = scalar_lea.vmem %s359, %s781
        %v783 = vld [vmem:[%s782] sm:$0xc]
        %v784 = vld [vmem:[%s782 + $0x4] sm:$0xf]
        %v785 = vld [vmem:[%s782 + $0x8] sm:$0x3]
        %v786 = vld [vmem:[%s782 + $0x10] sm:$0xc]
        %v787 = vld [vmem:[%s782 + $0x14] sm:$0xf]
        %v788 = vld [vmem:[%s782 + $0x18] sm:$0x3]
        %v789 = vld [vmem:[%s782 + $0x20] sm:$0xc]
        %v790 = vld [vmem:[%s782 + $0x24] sm:$0xf]
        %v791 = vld [vmem:[%s782 + $0x28] sm:$0x3]
        %v792 = vld [vmem:[%s782 + $0x30] sm:$0xc]
        %v793 = vld [vmem:[%s782 + $0x34] sm:$0xf]
        %v794 = vld [vmem:[%s782 + $0x38] sm:$0x3]
        %v795 = vld [vmem:[%s782 + $0x40] sm:$0xc]
        %v796 = vld [vmem:[%s782 + $0x44] sm:$0xf]
        %v797 = vld [vmem:[%s782 + $0x48] sm:$0x3]
        %v798 = vld [vmem:[%s782 + $0x50] sm:$0xc]
        %v799 = vld [vmem:[%s782 + $0x54] sm:$0xf]
        %v800 = vld [vmem:[%s782 + $0x58] sm:$0x3]
        %v801 = vld [vmem:[%s782 + $0x60] sm:$0xc]
        %v802 = vld [vmem:[%s782 + $0x64] sm:$0xf]
        %v803 = vld [vmem:[%s782 + $0x68] sm:$0x3]
        %v804 = vld [vmem:[%s782 + $0x70] sm:$0xc]
        %v805 = vld [vmem:[%s782 + $0x74] sm:$0xf]
        %v806 = vld [vmem:[%s782 + $0x78] sm:$0x3]
        %v807 = vld [vmem:[%s782] sm:$0x8]
        %v808 = vld [vmem:[%s782 + $0x8] sm:$0x7]
        %v809 = vld [vmem:[%s782 + $0x10] sm:$0x8]
        %v810 = vld [vmem:[%s782 + $0x18] sm:$0x7]
        %v811 = vld [vmem:[%s782 + $0x20] sm:$0x8]
        %v812 = vld [vmem:[%s782 + $0x28] sm:$0x7]
        %v813 = vld [vmem:[%s782 + $0x30] sm:$0x8]
        %v814 = vld [vmem:[%s782 + $0x38] sm:$0x7]
        %v815 = vld [vmem:[%s782 + $0x40] sm:$0x8]
        %v816 = vld [vmem:[%s782 + $0x48] sm:$0x7]
        %v817 = vld [vmem:[%s782 + $0x50] sm:$0x8]
        %v818 = vld [vmem:[%s782 + $0x58] sm:$0x7]
        %v819 = vld [vmem:[%s782 + $0x60] sm:$0x8]
        %v820 = vld [vmem:[%s782 + $0x68] sm:$0x7]
        %v821 = vld [vmem:[%s782 + $0x70] sm:$0x8]
        %v822 = vld [vmem:[%s782 + $0x78] sm:$0x7]
        %v823 = vld [vmem:[%s782 + $0x8] sm:$0xf]
        %v824 = vld [vmem:[%s782 + $0x18] sm:$0xf]
        %v825 = vld [vmem:[%s782 + $0x28] sm:$0xf]
        %v826 = vld [vmem:[%s782 + $0x38] sm:$0xf]
        %v827 = vld [vmem:[%s782 + $0x48] sm:$0xf]
        %v828 = vld [vmem:[%s782 + $0x58] sm:$0xf]
        %v829 = vld [vmem:[%s782 + $0x68] sm:$0xf]
        %v830 = vld [vmem:[%s782 + $0x78] sm:$0xf]
        %v831 = vld [vmem:[%s372] sm:$0xc]
        %v832 = vld [vmem:[%s372 + $0x4] sm:$0xf]
        %v833 = vld [vmem:[%s372 + $0x8] sm:$0x3]
        %v834 = vld [vmem:[%s372 + $0x10] sm:$0xc]
        %v835 = vld [vmem:[%s372 + $0x14] sm:$0xf]
        %v836 = vld [vmem:[%s372 + $0x18] sm:$0x3]
        %v837 = vld [vmem:[%s372 + $0x20] sm:$0xc]
        %v838 = vld [vmem:[%s372 + $0x24] sm:$0xf]
        %v839 = vld [vmem:[%s372 + $0x28] sm:$0x3]
        %v840 = vld [vmem:[%s372 + $0x30] sm:$0xc]
        %v841 = vld [vmem:[%s372 + $0x34] sm:$0xf]
        %v842 = vld [vmem:[%s372 + $0x38] sm:$0x3]
        %v843 = vld [vmem:[%s372 + $0x40] sm:$0xc]
        %v844 = vld [vmem:[%s372 + $0x44] sm:$0xf]
        %v845 = vld [vmem:[%s372 + $0x48] sm:$0x3]
        %v846 = vld [vmem:[%s372 + $0x50] sm:$0xc]
        %v847 = vld [vmem:[%s372 + $0x54] sm:$0xf]
        %v848 = vld [vmem:[%s372 + $0x58] sm:$0x3]
        %v849 = vld [vmem:[%s372 + $0x60] sm:$0xc]
        %v850 = vld [vmem:[%s372 + $0x64] sm:$0xf]
        %v851 = vld [vmem:[%s372 + $0x68] sm:$0x3]
        %v852 = vld [vmem:[%s372 + $0x70] sm:$0xc]
        %v853 = vld [vmem:[%s372 + $0x74] sm:$0xf]
        %v854 = vld [vmem:[%s372 + $0x78] sm:$0x3]
        %v855 = vld [vmem:[%s372 + $0x8] sm:$0xf]
        %v856 = vld [vmem:[%s372 + $0x18] sm:$0xf]
        %v857 = vld [vmem:[%s372 + $0x28] sm:$0xf]
        %v858 = vld [vmem:[%s372 + $0x38] sm:$0xf]
        %v859 = vld [vmem:[%s372 + $0x48] sm:$0xf]
        %v860 = vld [vmem:[%s372 + $0x58] sm:$0xf]
        %v861 = vld [vmem:[%s372 + $0x68] sm:$0xf]
        %v862 = vld [vmem:[%s372 + $0x78] sm:$0xf]
        %s863 = sadd.s32 %s368, 8
        %s864 = smul.u32 %s863, 4
        %s865 = smul.addr %s864, 4
        %s866 = scalar_lea.vmem %s359, %s865
        %v867 = vld [vmem:[%s866] sm:$0xc]
        %v868 = vld [vmem:[%s866 + $0x4] sm:$0xf]
        %v869 = vld [vmem:[%s866 + $0x8] sm:$0x3]
        %v870 = vld [vmem:[%s866 + $0x10] sm:$0xc]
        %v871 = vld [vmem:[%s866 + $0x14] sm:$0xf]
        %v872 = vld [vmem:[%s866 + $0x18] sm:$0x3]
        %v873 = vld [vmem:[%s866 + $0x20] sm:$0xc]
        %v874 = vld [vmem:[%s866 + $0x24] sm:$0xf]
        %v875 = vld [vmem:[%s866 + $0x28] sm:$0x3]
        %v876 = vld [vmem:[%s866 + $0x30] sm:$0xc]
        %v877 = vld [vmem:[%s866 + $0x34] sm:$0xf]
        %v878 = vld [vmem:[%s866 + $0x38] sm:$0x3]
        %v879 = vld [vmem:[%s866 + $0x40] sm:$0xc]
        %v880 = vld [vmem:[%s866 + $0x44] sm:$0xf]
        %v881 = vld [vmem:[%s866 + $0x48] sm:$0x3]
        %v882 = vld [vmem:[%s866 + $0x50] sm:$0xc]
        %v883 = vld [vmem:[%s866 + $0x54] sm:$0xf]
        %v884 = vld [vmem:[%s866 + $0x58] sm:$0x3]
        %v885 = vld [vmem:[%s866 + $0x60] sm:$0xc]
        %v886 = vld [vmem:[%s866 + $0x64] sm:$0xf]
        %v887 = vld [vmem:[%s866 + $0x68] sm:$0x3]
        %v888 = vld [vmem:[%s866 + $0x70] sm:$0xc]
        %v889 = vld [vmem:[%s866 + $0x74] sm:$0xf]
        %v890 = vld [vmem:[%s866 + $0x78] sm:$0x3]
        %v891 = vld [vmem:[%s866] sm:$0x8]
        %v892 = vld [vmem:[%s866 + $0x8] sm:$0x7]
        %v893 = vld [vmem:[%s866 + $0x10] sm:$0x8]
        %v894 = vld [vmem:[%s866 + $0x18] sm:$0x7]
        %v895 = vld [vmem:[%s866 + $0x20] sm:$0x8]
        %v896 = vld [vmem:[%s866 + $0x28] sm:$0x7]
        %v897 = vld [vmem:[%s866 + $0x30] sm:$0x8]
        %v898 = vld [vmem:[%s866 + $0x38] sm:$0x7]
        %v899 = vld [vmem:[%s866 + $0x40] sm:$0x8]
        %v900 = vld [vmem:[%s866 + $0x48] sm:$0x7]
        %v901 = vld [vmem:[%s866 + $0x50] sm:$0x8]
        %v902 = vld [vmem:[%s866 + $0x58] sm:$0x7]
        %v903 = vld [vmem:[%s866 + $0x60] sm:$0x8]
        %v904 = vld [vmem:[%s866 + $0x68] sm:$0x7]
        %v905 = vld [vmem:[%s866 + $0x70] sm:$0x8]
        %v906 = vld [vmem:[%s866 + $0x78] sm:$0x7]
        %v907 = vld [vmem:[%s866 + $0x8] sm:$0xf]
        %v908 = vld [vmem:[%s866 + $0x18] sm:$0xf]
        %v909 = vld [vmem:[%s866 + $0x28] sm:$0xf]
        %v910 = vld [vmem:[%s866 + $0x38] sm:$0xf]
        %v911 = vld [vmem:[%s866 + $0x48] sm:$0xf]
        %v912 = vld [vmem:[%s866 + $0x58] sm:$0xf]
        %v913 = vld [vmem:[%s866 + $0x68] sm:$0xf]
        %v914 = vld [vmem:[%s866 + $0x78] sm:$0xf]
        %v939 = vunpack.c.l.b16 %v783
        %v940 = vunpack.c.l.b16 %v784
        %v941 = vunpack.c.l.b16 %v785
        %v942 = vunpack.c.l.b16 %v786
        %v943 = vunpack.c.l.b16 %v787
        %v944 = vunpack.c.l.b16 %v788
        %v945 = vunpack.c.l.b16 %v789
        %v946 = vunpack.c.l.b16 %v790
        %v947 = vunpack.c.l.b16 %v791
        %v948 = vunpack.c.l.b16 %v792
        %v949 = vunpack.c.l.b16 %v793
        %v950 = vunpack.c.l.b16 %v794
        %v951 = vunpack.c.l.b16 %v795
        %v952 = vunpack.c.l.b16 %v796
        %v953 = vunpack.c.l.b16 %v797
        %v954 = vunpack.c.l.b16 %v798
        %v955 = vunpack.c.l.b16 %v799
        %v956 = vunpack.c.l.b16 %v800
        %v957 = vunpack.c.l.b16 %v801
        %v958 = vunpack.c.l.b16 %v802
        %v959 = vunpack.c.l.b16 %v803
        %v960 = vunpack.c.l.b16 %v804
        %v961 = vunpack.c.l.b16 %v805
        %v962 = vunpack.c.l.b16 %v806
        %v963 = vpack.c.b16 %v940, %v939
        %v964 = vpack.c.b16 %v941, %v941
        %v965 = vpack.c.b16 %v943, %v942
        %v966 = vpack.c.b16 %v944, %v944
        %v967 = vpack.c.b16 %v946, %v945
        %v968 = vpack.c.b16 %v947, %v947
        %v969 = vpack.c.b16 %v949, %v948
        %v970 = vpack.c.b16 %v950, %v950
        %v971 = vpack.c.b16 %v952, %v951
        %v972 = vpack.c.b16 %v953, %v953
        %v973 = vpack.c.b16 %v955, %v954
        %v974 = vpack.c.b16 %v956, %v956
        %v975 = vpack.c.b16 %v958, %v957
        %v976 = vpack.c.b16 %v959, %v959
        %v977 = vpack.c.b16 %v961, %v960
        %v978 = vpack.c.b16 %v962, %v962
        %v995 = vunpack.c.l.b16 %v807
        %v996 = vunpack.c.l.b16 %v808
        %v997 = vunpack.c.l.b16 %v809
        %v998 = vunpack.c.l.b16 %v810
        %v999 = vunpack.c.l.b16 %v811
        %v1000 = vunpack.c.l.b16 %v812
        %v1001 = vunpack.c.l.b16 %v813
        %v1002 = vunpack.c.l.b16 %v814
        %v1003 = vunpack.c.l.b16 %v815
        %v1004 = vunpack.c.l.b16 %v816
        %v1005 = vunpack.c.l.b16 %v817
        %v1006 = vunpack.c.l.b16 %v818
        %v1007 = vunpack.c.l.b16 %v819
        %v1008 = vunpack.c.l.b16 %v820
        %v1009 = vunpack.c.l.b16 %v821
        %v1010 = vunpack.c.l.b16 %v822
        %v1011 = vpack.c.b16 %v940, %v995
        %v1012 = vpack.c.b16 %v996, %v996
        %v1013 = vpack.c.b16 %v943, %v997
        %v1014 = vpack.c.b16 %v998, %v998
        %v1015 = vpack.c.b16 %v946, %v999
        %v1016 = vpack.c.b16 %v1000, %v1000
        %v1017 = vpack.c.b16 %v949, %v1001
        %v1018 = vpack.c.b16 %v1002, %v1002
        %v1019 = vpack.c.b16 %v952, %v1003
        %v1020 = vpack.c.b16 %v1004, %v1004
        %v1021 = vpack.c.b16 %v955, %v1005
        %v1022 = vpack.c.b16 %v1006, %v1006
        %v1023 = vpack.c.b16 %v958, %v1007
        %v1024 = vpack.c.b16 %v1008, %v1008
        %v1025 = vpack.c.b16 %v961, %v1009
        %v1026 = vpack.c.b16 %v1010, %v1010
        %vm1027 = vcmask 1046528
        %v1028 = vrot.slane %v1011, 1
        %v1029 = vrot.slane %v1012, 1
        %v1030 = vsel %vm1027, %v1028, %v1029
        %v1031 = vrot.slane %v1013, 1
        %v1032 = vrot.slane %v1014, 1
        %v1033 = vsel %vm1027, %v1031, %v1032
        %v1034 = vrot.slane %v1015, 1
        %v1035 = vrot.slane %v1016, 1
        %v1036 = vsel %vm1027, %v1034, %v1035
        %v1037 = vrot.slane %v1017, 1
        %v1038 = vrot.slane %v1018, 1
        %v1039 = vsel %vm1027, %v1037, %v1038
        %v1040 = vrot.slane %v1019, 1
        %v1041 = vrot.slane %v1020, 1
        %v1042 = vsel %vm1027, %v1040, %v1041
        %v1043 = vrot.slane %v1021, 1
        %v1044 = vrot.slane %v1022, 1
        %v1045 = vsel %vm1027, %v1043, %v1044
        %v1046 = vrot.slane %v1023, 1
        %v1047 = vrot.slane %v1024, 1
        %v1048 = vsel %vm1027, %v1046, %v1047
        %v1049 = vrot.slane %v1025, 1
        %v1050 = vrot.slane %v1026, 1
        %v1051 = vsel %vm1027, %v1049, %v1050
        %1052 = vrot.lane.b32.xlu0 %v1030, 4
        %v1053 = vpop.permute.xlu0 %1052
        %1054 = vrot.lane.b32.xlu0 %v1029, 4
        %v1055 = vpop.permute.xlu0 %1054
        %1056 = vrot.lane.b32.xlu0 %v1033, 4
        %v1057 = vpop.permute.xlu0 %1056
        %1058 = vrot.lane.b32.xlu0 %v1032, 4
        %v1059 = vpop.permute.xlu0 %1058
        %1060 = vrot.lane.b32.xlu0 %v1036, 4
        %v1061 = vpop.permute.xlu0 %1060
        %1062 = vrot.lane.b32.xlu0 %v1035, 4
        %v1063 = vpop.permute.xlu0 %1062
        %1064 = vrot.lane.b32.xlu0 %v1039, 4
        %v1065 = vpop.permute.xlu0 %1064
        %1066 = vrot.lane.b32.xlu0 %v1038, 4
        %v1067 = vpop.permute.xlu0 %1066
        %1068 = vrot.lane.b32.xlu0 %v1042, 4
        %v1069 = vpop.permute.xlu0 %1068
        %1070 = vrot.lane.b32.xlu0 %v1041, 4
        %v1071 = vpop.permute.xlu0 %1070
        %1072 = vrot.lane.b32.xlu0 %v1045, 4
        %v1073 = vpop.permute.xlu0 %1072
        %1074 = vrot.lane.b32.xlu0 %v1044, 4
        %v1075 = vpop.permute.xlu0 %1074
        %1076 = vrot.lane.b32.xlu0 %v1048, 4
        %v1077 = vpop.permute.xlu0 %1076
        %1078 = vrot.lane.b32.xlu0 %v1047, 4
        %v1079 = vpop.permute.xlu0 %1078
        %1080 = vrot.lane.b32.xlu0 %v1051, 4
        %v1081 = vpop.permute.xlu0 %1080
        %1082 = vrot.lane.b32.xlu0 %v1050, 4
        %v1083 = vpop.permute.xlu0 %1082
        %v1092 = vunpack.c.l.b16 %v823
        %v1093 = vunpack.c.l.b16 %v824
        %v1094 = vunpack.c.l.b16 %v825
        %v1095 = vunpack.c.l.b16 %v826
        %v1096 = vunpack.c.l.b16 %v827
        %v1097 = vunpack.c.l.b16 %v828
        %v1098 = vunpack.c.l.b16 %v829
        %v1099 = vunpack.c.l.b16 %v830
        %v1100 = vpack.c.b16 %v1092, %v940
        %v1101 = vpack.c.b16 %v1093, %v943
        %v1102 = vpack.c.b16 %v1094, %v946
        %v1103 = vpack.c.b16 %v1095, %v949
        %v1104 = vpack.c.b16 %v1096, %v952
        %v1105 = vpack.c.b16 %v1097, %v955
        %v1106 = vpack.c.b16 %v1098, %v958
        %v1107 = vpack.c.b16 %v1099, %v961
        %v1108 = vrot.slane %v1100, 6
        %v1109 = vrot.slane %v1101, 6
        %v1110 = vrot.slane %v1102, 6
        %v1111 = vrot.slane %v1103, 6
        %v1112 = vrot.slane %v1104, 6
        %v1113 = vrot.slane %v1105, 6
        %v1114 = vrot.slane %v1106, 6
        %v1115 = vrot.slane %v1107, 6
        %1116 = vrot.lane.b32.xlu0 %v1108, 8
        %v1117 = vpop.permute.xlu0 %1116
        %1118 = vrot.lane.b32.xlu0 %v1109, 8
        %v1119 = vpop.permute.xlu0 %1118
        %1120 = vrot.lane.b32.xlu0 %v1110, 8
        %v1121 = vpop.permute.xlu0 %1120
        %1122 = vrot.lane.b32.xlu0 %v1111, 8
        %v1123 = vpop.permute.xlu0 %1122
        %1124 = vrot.lane.b32.xlu0 %v1112, 8
        %v1125 = vpop.permute.xlu0 %1124
        %1126 = vrot.lane.b32.xlu0 %v1113, 8
        %v1127 = vpop.permute.xlu0 %1126
        %1128 = vrot.lane.b32.xlu0 %v1114, 8
        %v1129 = vpop.permute.xlu0 %1128
        %1130 = vrot.lane.b32.xlu0 %v1115, 8
        %v1131 = vpop.permute.xlu0 %1130
        %v1156 = vunpack.c.l.b16 %v831
        %v1157 = vunpack.c.l.b16 %v832
        %v1158 = vunpack.c.l.b16 %v833
        %v1159 = vunpack.c.l.b16 %v834
        %v1160 = vunpack.c.l.b16 %v835
        %v1161 = vunpack.c.l.b16 %v836
        %v1162 = vunpack.c.l.b16 %v837
        %v1163 = vunpack.c.l.b16 %v838
        %v1164 = vunpack.c.l.b16 %v839
        %v1165 = vunpack.c.l.b16 %v840
        %v1166 = vunpack.c.l.b16 %v841
        %v1167 = vunpack.c.l.b16 %v842
        %v1168 = vunpack.c.l.b16 %v843
        %v1169 = vunpack.c.l.b16 %v844
        %v1170 = vunpack.c.l.b16 %v845
        %v1171 = vunpack.c.l.b16 %v846
        %v1172 = vunpack.c.l.b16 %v847
        %v1173 = vunpack.c.l.b16 %v848
        %v1174 = vunpack.c.l.b16 %v849
        %v1175 = vunpack.c.l.b16 %v850
        %v1176 = vunpack.c.l.b16 %v851
        %v1177 = vunpack.c.l.b16 %v852
        %v1178 = vunpack.c.l.b16 %v853
        %v1179 = vunpack.c.l.b16 %v854
        %v1180 = vpack.c.b16 %v1157, %v1156
        %v1181 = vpack.c.b16 %v1158, %v1158
        %v1182 = vpack.c.b16 %v1160, %v1159
        %v1183 = vpack.c.b16 %v1161, %v1161
        %v1184 = vpack.c.b16 %v1163, %v1162
        %v1185 = vpack.c.b16 %v1164, %v1164
        %v1186 = vpack.c.b16 %v1166, %v1165
        %v1187 = vpack.c.b16 %v1167, %v1167
        %v1188 = vpack.c.b16 %v1169, %v1168
        %v1189 = vpack.c.b16 %v1170, %v1170
        %v1190 = vpack.c.b16 %v1172, %v1171
        %v1191 = vpack.c.b16 %v1173, %v1173
        %v1192 = vpack.c.b16 %v1175, %v1174
        %v1193 = vpack.c.b16 %v1176, %v1176
        %v1194 = vpack.c.b16 %v1178, %v1177
        %v1195 = vpack.c.b16 %v1179, %v1179
        %1196 = vrot.lane.b32.xlu0 %v1180, 12
        %v1197 = vpop.permute.xlu0 %1196
        %1198 = vrot.lane.b32.xlu0 %v1181, 12
        %v1199 = vpop.permute.xlu0 %1198
        %1200 = vrot.lane.b32.xlu0 %v1182, 12
        %v1201 = vpop.permute.xlu0 %1200
        %1202 = vrot.lane.b32.xlu0 %v1183, 12
        %v1203 = vpop.permute.xlu0 %1202
        %1204 = vrot.lane.b32.xlu0 %v1184, 12
        %v1205 = vpop.permute.xlu0 %1204
        %1206 = vrot.lane.b32.xlu0 %v1185, 12
        %v1207 = vpop.permute.xlu0 %1206
        %1208 = vrot.lane.b32.xlu0 %v1186, 12
        %v1209 = vpop.permute.xlu0 %1208
        %1210 = vrot.lane.b32.xlu0 %v1187, 12
        %v1211 = vpop.permute.xlu0 %1210
        %1212 = vrot.lane.b32.xlu0 %v1188, 12
        %v1213 = vpop.permute.xlu0 %1212
        %1214 = vrot.lane.b32.xlu0 %v1189, 12
        %v1215 = vpop.permute.xlu0 %1214
        %1216 = vrot.lane.b32.xlu0 %v1190, 12
        %v1217 = vpop.permute.xlu0 %1216
        %1218 = vrot.lane.b32.xlu0 %v1191, 12
        %v1219 = vpop.permute.xlu0 %1218
        %1220 = vrot.lane.b32.xlu0 %v1192, 12
        %v1221 = vpop.permute.xlu0 %1220
        %1222 = vrot.lane.b32.xlu0 %v1193, 12
        %v1223 = vpop.permute.xlu0 %1222
        %1224 = vrot.lane.b32.xlu0 %v1194, 12
        %v1225 = vpop.permute.xlu0 %1224
        %1226 = vrot.lane.b32.xlu0 %v1195, 12
        %v1227 = vpop.permute.xlu0 %1226
        %v1228 = vunpack.c.l.b16 %v373
        %v1229 = vunpack.c.l.b16 %v374
        %v1230 = vunpack.c.l.b16 %v375
        %v1231 = vunpack.c.l.b16 %v376
        %v1232 = vunpack.c.l.b16 %v377
        %v1233 = vunpack.c.l.b16 %v378
        %v1234 = vunpack.c.l.b16 %v379
        %v1235 = vunpack.c.l.b16 %v380
        %v1236 = vunpack.c.l.b16 %v381
        %v1237 = vunpack.c.l.b16 %v382
        %v1238 = vunpack.c.l.b16 %v383
        %v1239 = vunpack.c.l.b16 %v384
        %v1240 = vunpack.c.l.b16 %v385
        %v1241 = vunpack.c.l.b16 %v386
        %v1242 = vunpack.c.l.b16 %v387
        %v1243 = vunpack.c.l.b16 %v388
        %v1244 = vunpack.c.l.b16 %v389
        %v1245 = vunpack.c.l.b16 %v390
        %v1246 = vunpack.c.l.b16 %v391
        %v1247 = vunpack.c.l.b16 %v392
        %v1248 = vunpack.c.l.b16 %v393
        %v1249 = vunpack.c.l.b16 %v394
        %v1250 = vunpack.c.l.b16 %v395
        %v1251 = vunpack.c.l.b16 %v396
        %v1252 = vpack.c.b16 %v1229, %v1228
        %v1253 = vpack.c.b16 %v1230, %v1230
        %v1254 = vpack.c.b16 %v1232, %v1231
        %v1255 = vpack.c.b16 %v1233, %v1233
        %v1256 = vpack.c.b16 %v1235, %v1234
        %v1257 = vpack.c.b16 %v1236, %v1236
        %v1258 = vpack.c.b16 %v1238, %v1237
        %v1259 = vpack.c.b16 %v1239, %v1239
        %v1260 = vpack.c.b16 %v1241, %v1240
        %v1261 = vpack.c.b16 %v1242, %v1242
        %v1262 = vpack.c.b16 %v1244, %v1243
        %v1263 = vpack.c.b16 %v1245, %v1245
        %v1264 = vpack.c.b16 %v1247, %v1246
        %v1265 = vpack.c.b16 %v1248, %v1248
        %v1266 = vpack.c.b16 %v1250, %v1249
        %v1267 = vpack.c.b16 %v1251, %v1251
        %v1268 = vrot.slane %v1252, 1
        %v1269 = vrot.slane %v1253, 1
        %v1270 = vsel %vm1027, %v1268, %v1269
        %v1271 = vrot.slane %v1254, 1
        %v1272 = vrot.slane %v1255, 1
        %v1273 = vsel %vm1027, %v1271, %v1272
        %v1274 = vrot.slane %v1256, 1
        %v1275 = vrot.slane %v1257, 1
        %v1276 = vsel %vm1027, %v1274, %v1275
        %v1277 = vrot.slane %v1258, 1
        %v1278 = vrot.slane %v1259, 1
        %v1279 = vsel %vm1027, %v1277, %v1278
        %v1280 = vrot.slane %v1260, 1
        %v1281 = vrot.slane %v1261, 1
        %v1282 = vsel %vm1027, %v1280, %v1281
        %v1283 = vrot.slane %v1262, 1
        %v1284 = vrot.slane %v1263, 1
        %v1285 = vsel %vm1027, %v1283, %v1284
        %v1286 = vrot.slane %v1264, 1
        %v1287 = vrot.slane %v1265, 1
        %v1288 = vsel %vm1027, %v1286, %v1287
        %v1289 = vrot.slane %v1266, 1
        %v1290 = vrot.slane %v1267, 1
        %v1291 = vsel %vm1027, %v1289, %v1290
        %1292 = vrot.lane.b32.xlu0 %v1270, 16
        %v1293 = vpop.permute.xlu0 %1292
        %1294 = vrot.lane.b32.xlu0 %v1269, 16
        %v1295 = vpop.permute.xlu0 %1294
        %1296 = vrot.lane.b32.xlu0 %v1273, 16
        %v1297 = vpop.permute.xlu0 %1296
        %1298 = vrot.lane.b32.xlu0 %v1272, 16
        %v1299 = vpop.permute.xlu0 %1298
        %1300 = vrot.lane.b32.xlu0 %v1276, 16
        %v1301 = vpop.permute.xlu0 %1300
        %1302 = vrot.lane.b32.xlu0 %v1275, 16
        %v1303 = vpop.permute.xlu0 %1302
        %1304 = vrot.lane.b32.xlu0 %v1279, 16
        %v1305 = vpop.permute.xlu0 %1304
        %1306 = vrot.lane.b32.xlu0 %v1278, 16
        %v1307 = vpop.permute.xlu0 %1306
        %1308 = vrot.lane.b32.xlu0 %v1282, 16
        %v1309 = vpop.permute.xlu0 %1308
        %1310 = vrot.lane.b32.xlu0 %v1281, 16
        %v1311 = vpop.permute.xlu0 %1310
        %1312 = vrot.lane.b32.xlu0 %v1285, 16
        %v1313 = vpop.permute.xlu0 %1312
        %1314 = vrot.lane.b32.xlu0 %v1284, 16
        %v1315 = vpop.permute.xlu0 %1314
        %1316 = vrot.lane.b32.xlu0 %v1288, 16
        %v1317 = vpop.permute.xlu0 %1316
        %1318 = vrot.lane.b32.xlu0 %v1287, 16
        %v1319 = vpop.permute.xlu0 %1318
        %1320 = vrot.lane.b32.xlu0 %v1291, 16
        %v1321 = vpop.permute.xlu0 %1320
        %1322 = vrot.lane.b32.xlu0 %v1290, 16
        %v1323 = vpop.permute.xlu0 %1322
        %v1332 = vunpack.c.l.b16 %v855
        %v1333 = vunpack.c.l.b16 %v856
        %v1334 = vunpack.c.l.b16 %v857
        %v1335 = vunpack.c.l.b16 %v858
        %v1336 = vunpack.c.l.b16 %v859
        %v1337 = vunpack.c.l.b16 %v860
        %v1338 = vunpack.c.l.b16 %v861
        %v1339 = vunpack.c.l.b16 %v862
        %v1340 = vpack.c.b16 %v1332, %v1157
        %v1341 = vpack.c.b16 %v1333, %v1160
        %v1342 = vpack.c.b16 %v1334, %v1163
        %v1343 = vpack.c.b16 %v1335, %v1166
        %v1344 = vpack.c.b16 %v1336, %v1169
        %v1345 = vpack.c.b16 %v1337, %v1172
        %v1346 = vpack.c.b16 %v1338, %v1175
        %v1347 = vpack.c.b16 %v1339, %v1178
        %v1348 = vrot.slane %v1340, 6
        %v1349 = vrot.slane %v1341, 6
        %v1350 = vrot.slane %v1342, 6
        %v1351 = vrot.slane %v1343, 6
        %v1352 = vrot.slane %v1344, 6
        %v1353 = vrot.slane %v1345, 6
        %v1354 = vrot.slane %v1346, 6
        %v1355 = vrot.slane %v1347, 6
        %1356 = vrot.lane.b32.xlu0 %v1348, 20
        %v1357 = vpop.permute.xlu0 %1356
        %1358 = vrot.lane.b32.xlu0 %v1349, 20
        %v1359 = vpop.permute.xlu0 %1358
        %1360 = vrot.lane.b32.xlu0 %v1350, 20
        %v1361 = vpop.permute.xlu0 %1360
        %1362 = vrot.lane.b32.xlu0 %v1351, 20
        %v1363 = vpop.permute.xlu0 %1362
        %1364 = vrot.lane.b32.xlu0 %v1352, 20
        %v1365 = vpop.permute.xlu0 %1364
        %1366 = vrot.lane.b32.xlu0 %v1353, 20
        %v1367 = vpop.permute.xlu0 %1366
        %1368 = vrot.lane.b32.xlu0 %v1354, 20
        %v1369 = vpop.permute.xlu0 %1368
        %1370 = vrot.lane.b32.xlu0 %v1355, 20
        %v1371 = vpop.permute.xlu0 %1370
        %v1396 = vunpack.c.l.b16 %v867
        %v1397 = vunpack.c.l.b16 %v868
        %v1398 = vunpack.c.l.b16 %v869
        %v1399 = vunpack.c.l.b16 %v870
        %v1400 = vunpack.c.l.b16 %v871
        %v1401 = vunpack.c.l.b16 %v872
        %v1402 = vunpack.c.l.b16 %v873
        %v1403 = vunpack.c.l.b16 %v874
        %v1404 = vunpack.c.l.b16 %v875
        %v1405 = vunpack.c.l.b16 %v876
        %v1406 = vunpack.c.l.b16 %v877
        %v1407 = vunpack.c.l.b16 %v878
        %v1408 = vunpack.c.l.b16 %v879
        %v1409 = vunpack.c.l.b16 %v880
        %v1410 = vunpack.c.l.b16 %v881
        %v1411 = vunpack.c.l.b16 %v882
        %v1412 = vunpack.c.l.b16 %v883
        %v1413 = vunpack.c.l.b16 %v884
        %v1414 = vunpack.c.l.b16 %v885
        %v1415 = vunpack.c.l.b16 %v886
        %v1416 = vunpack.c.l.b16 %v887
        %v1417 = vunpack.c.l.b16 %v888
        %v1418 = vunpack.c.l.b16 %v889
        %v1419 = vunpack.c.l.b16 %v890
        %v1420 = vpack.c.b16 %v1397, %v1396
        %v1421 = vpack.c.b16 %v1398, %v1398
        %v1422 = vpack.c.b16 %v1400, %v1399
        %v1423 = vpack.c.b16 %v1401, %v1401
        %v1424 = vpack.c.b16 %v1403, %v1402
        %v1425 = vpack.c.b16 %v1404, %v1404
        %v1426 = vpack.c.b16 %v1406, %v1405
        %v1427 = vpack.c.b16 %v1407, %v1407
        %v1428 = vpack.c.b16 %v1409, %v1408
        %v1429 = vpack.c.b16 %v1410, %v1410
        %v1430 = vpack.c.b16 %v1412, %v1411
        %v1431 = vpack.c.b16 %v1413, %v1413
        %v1432 = vpack.c.b16 %v1415, %v1414
        %v1433 = vpack.c.b16 %v1416, %v1416
        %v1434 = vpack.c.b16 %v1418, %v1417
        %v1435 = vpack.c.b16 %v1419, %v1419
        %1436 = vrot.lane.b32.xlu0 %v1420, 24
        %v1437 = vpop.permute.xlu0 %1436
        %1438 = vrot.lane.b32.xlu0 %v1421, 24
        %v1439 = vpop.permute.xlu0 %1438
        %1440 = vrot.lane.b32.xlu0 %v1422, 24
        %v1441 = vpop.permute.xlu0 %1440
        %1442 = vrot.lane.b32.xlu0 %v1423, 24
        %v1443 = vpop.permute.xlu0 %1442
        %1444 = vrot.lane.b32.xlu0 %v1424, 24
        %v1445 = vpop.permute.xlu0 %1444
        %1446 = vrot.lane.b32.xlu0 %v1425, 24
        %v1447 = vpop.permute.xlu0 %1446
        %1448 = vrot.lane.b32.xlu0 %v1426, 24
        %v1449 = vpop.permute.xlu0 %1448
        %1450 = vrot.lane.b32.xlu0 %v1427, 24
        %v1451 = vpop.permute.xlu0 %1450
        %1452 = vrot.lane.b32.xlu0 %v1428, 24
        %v1453 = vpop.permute.xlu0 %1452
        %1454 = vrot.lane.b32.xlu0 %v1429, 24
        %v1455 = vpop.permute.xlu0 %1454
        %1456 = vrot.lane.b32.xlu0 %v1430, 24
        %v1457 = vpop.permute.xlu0 %1456
        %1458 = vrot.lane.b32.xlu0 %v1431, 24
        %v1459 = vpop.permute.xlu0 %1458
        %1460 = vrot.lane.b32.xlu0 %v1432, 24
        %v1461 = vpop.permute.xlu0 %1460
        %1462 = vrot.lane.b32.xlu0 %v1433, 24
        %v1463 = vpop.permute.xlu0 %1462
        %1464 = vrot.lane.b32.xlu0 %v1434, 24
        %v1465 = vpop.permute.xlu0 %1464
        %1466 = vrot.lane.b32.xlu0 %v1435, 24
        %v1467 = vpop.permute.xlu0 %1466
        %v1484 = vunpack.c.l.b16 %v891
        %v1485 = vunpack.c.l.b16 %v892
        %v1486 = vunpack.c.l.b16 %v893
        %v1487 = vunpack.c.l.b16 %v894
        %v1488 = vunpack.c.l.b16 %v895
        %v1489 = vunpack.c.l.b16 %v896
        %v1490 = vunpack.c.l.b16 %v897
        %v1491 = vunpack.c.l.b16 %v898
        %v1492 = vunpack.c.l.b16 %v899
        %v1493 = vunpack.c.l.b16 %v900
        %v1494 = vunpack.c.l.b16 %v901
        %v1495 = vunpack.c.l.b16 %v902
        %v1496 = vunpack.c.l.b16 %v903
        %v1497 = vunpack.c.l.b16 %v904
        %v1498 = vunpack.c.l.b16 %v905
        %v1499 = vunpack.c.l.b16 %v906
        %v1500 = vpack.c.b16 %v1397, %v1484
        %v1501 = vpack.c.b16 %v1485, %v1485
        %v1502 = vpack.c.b16 %v1400, %v1486
        %v1503 = vpack.c.b16 %v1487, %v1487
        %v1504 = vpack.c.b16 %v1403, %v1488
        %v1505 = vpack.c.b16 %v1489, %v1489
        %v1506 = vpack.c.b16 %v1406, %v1490
        %v1507 = vpack.c.b16 %v1491, %v1491
        %v1508 = vpack.c.b16 %v1409, %v1492
        %v1509 = vpack.c.b16 %v1493, %v1493
        %v1510 = vpack.c.b16 %v1412, %v1494
        %v1511 = vpack.c.b16 %v1495, %v1495
        %v1512 = vpack.c.b16 %v1415, %v1496
        %v1513 = vpack.c.b16 %v1497, %v1497
        %v1514 = vpack.c.b16 %v1418, %v1498
        %v1515 = vpack.c.b16 %v1499, %v1499
        %v1516 = vrot.slane %v1500, 1
        %v1517 = vrot.slane %v1501, 1
        %v1518 = vsel %vm1027, %v1516, %v1517
        %v1519 = vrot.slane %v1502, 1
        %v1520 = vrot.slane %v1503, 1
        %v1521 = vsel %vm1027, %v1519, %v1520
        %v1522 = vrot.slane %v1504, 1
        %v1523 = vrot.slane %v1505, 1
        %v1524 = vsel %vm1027, %v1522, %v1523
        %v1525 = vrot.slane %v1506, 1
        %v1526 = vrot.slane %v1507, 1
        %v1527 = vsel %vm1027, %v1525, %v1526
        %v1528 = vrot.slane %v1508, 1
        %v1529 = vrot.slane %v1509, 1
        %v1530 = vsel %vm1027, %v1528, %v1529
        %v1531 = vrot.slane %v1510, 1
        %v1532 = vrot.slane %v1511, 1
        %v1533 = vsel %vm1027, %v1531, %v1532
        %v1534 = vrot.slane %v1512, 1
        %v1535 = vrot.slane %v1513, 1
        %v1536 = vsel %vm1027, %v1534, %v1535
        %v1537 = vrot.slane %v1514, 1
        %v1538 = vrot.slane %v1515, 1
        %v1539 = vsel %vm1027, %v1537, %v1538
        %1540 = vrot.lane.b32.xlu0 %v1518, 28
        %v1541 = vpop.permute.xlu0 %1540
        %1542 = vrot.lane.b32.xlu0 %v1517, 28
        %v1543 = vpop.permute.xlu0 %1542
        %1544 = vrot.lane.b32.xlu0 %v1521, 28
        %v1545 = vpop.permute.xlu0 %1544
        %1546 = vrot.lane.b32.xlu0 %v1520, 28
        %v1547 = vpop.permute.xlu0 %1546
        %1548 = vrot.lane.b32.xlu0 %v1524, 28
        %v1549 = vpop.permute.xlu0 %1548
        %1550 = vrot.lane.b32.xlu0 %v1523, 28
        %v1551 = vpop.permute.xlu0 %1550
        %1552 = vrot.lane.b32.xlu0 %v1527, 28
        %v1553 = vpop.permute.xlu0 %1552
        %1554 = vrot.lane.b32.xlu0 %v1526, 28
        %v1555 = vpop.permute.xlu0 %1554
        %1556 = vrot.lane.b32.xlu0 %v1530, 28
        %v1557 = vpop.permute.xlu0 %1556
        %1558 = vrot.lane.b32.xlu0 %v1529, 28
        %v1559 = vpop.permute.xlu0 %1558
        %1560 = vrot.lane.b32.xlu0 %v1533, 28
        %v1561 = vpop.permute.xlu0 %1560
        %1562 = vrot.lane.b32.xlu0 %v1532, 28
        %v1563 = vpop.permute.xlu0 %1562
        %1564 = vrot.lane.b32.xlu0 %v1536, 28
        %v1565 = vpop.permute.xlu0 %1564
        %1566 = vrot.lane.b32.xlu0 %v1535, 28
        %v1567 = vpop.permute.xlu0 %1566
        %1568 = vrot.lane.b32.xlu0 %v1539, 28
        %v1569 = vpop.permute.xlu0 %1568
        %1570 = vrot.lane.b32.xlu0 %v1538, 28
        %v1571 = vpop.permute.xlu0 %1570
        %v1580 = vunpack.c.l.b16 %v907
        %v1581 = vunpack.c.l.b16 %v908
        %v1582 = vunpack.c.l.b16 %v909
        %v1583 = vunpack.c.l.b16 %v910
        %v1584 = vunpack.c.l.b16 %v911
        %v1585 = vunpack.c.l.b16 %v912
        %v1586 = vunpack.c.l.b16 %v913
        %v1587 = vunpack.c.l.b16 %v914
        %v1588 = vpack.c.b16 %v1580, %v1397
        %v1589 = vpack.c.b16 %v1581, %v1400
        %v1590 = vpack.c.b16 %v1582, %v1403
        %v1591 = vpack.c.b16 %v1583, %v1406
        %v1592 = vpack.c.b16 %v1584, %v1409
        %v1593 = vpack.c.b16 %v1585, %v1412
        %v1594 = vpack.c.b16 %v1586, %v1415
        %v1595 = vpack.c.b16 %v1587, %v1418
        %v1596 = vrot.slane %v1588, 6
        %v1597 = vrot.slane %v1589, 6
        %v1598 = vrot.slane %v1590, 6
        %v1599 = vrot.slane %v1591, 6
        %v1600 = vrot.slane %v1592, 6
        %v1601 = vrot.slane %v1593, 6
        %v1602 = vrot.slane %v1594, 6
        %v1603 = vrot.slane %v1595, 6
        %1604 = vrot.lane.b32.xlu0 %v1596, 32
        %v1605 = vpop.permute.xlu0 %1604
        %1606 = vrot.lane.b32.xlu0 %v1597, 32
        %v1607 = vpop.permute.xlu0 %1606
        %1608 = vrot.lane.b32.xlu0 %v1598, 32
        %v1609 = vpop.permute.xlu0 %1608
        %1610 = vrot.lane.b32.xlu0 %v1599, 32
        %v1611 = vpop.permute.xlu0 %1610
        %1612 = vrot.lane.b32.xlu0 %v1600, 32
        %v1613 = vpop.permute.xlu0 %1612
        %1614 = vrot.lane.b32.xlu0 %v1601, 32
        %v1615 = vpop.permute.xlu0 %1614
        %1616 = vrot.lane.b32.xlu0 %v1602, 32
        %v1617 = vpop.permute.xlu0 %1616
        %1618 = vrot.lane.b32.xlu0 %v1603, 32
        %v1619 = vpop.permute.xlu0 %1618
        %v1622 = vsel %vm514, %v963, %v1053
        %v1625 = vsel %vm514, %v964, %v1055
        %v1628 = vsel %vm514, %v965, %v1057
        %v1631 = vsel %vm514, %v966, %v1059
        %v1634 = vsel %vm514, %v967, %v1061
        %v1637 = vsel %vm514, %v968, %v1063
        %v1640 = vsel %vm514, %v969, %v1065
        %v1643 = vsel %vm514, %v970, %v1067
        %v1646 = vsel %vm514, %v971, %v1069
        %v1649 = vsel %vm514, %v972, %v1071
        %v1652 = vsel %vm514, %v973, %v1073
        %v1655 = vsel %vm514, %v974, %v1075
        %v1658 = vsel %vm514, %v975, %v1077
        %v1661 = vsel %vm514, %v976, %v1079
        %v1664 = vsel %vm514, %v977, %v1081
        %v1667 = vsel %vm514, %v978, %v1083
        %vm1668 = vcmask 64512
        %v1670 = vsel %vm1668, %v1622, %v1117
        %v1671 = vsel %vm1668, %v1625, %v1117
        %v1673 = vsel %vm1668, %v1628, %v1119
        %v1674 = vsel %vm1668, %v1631, %v1119
        %v1676 = vsel %vm1668, %v1634, %v1121
        %v1677 = vsel %vm1668, %v1637, %v1121
        %v1679 = vsel %vm1668, %v1640, %v1123
        %v1680 = vsel %vm1668, %v1643, %v1123
        %v1682 = vsel %vm1668, %v1646, %v1125
        %v1683 = vsel %vm1668, %v1649, %v1125
        %v1685 = vsel %vm1668, %v1652, %v1127
        %v1686 = vsel %vm1668, %v1655, %v1127
        %v1688 = vsel %vm1668, %v1658, %v1129
        %v1689 = vsel %vm1668, %v1661, %v1129
        %v1691 = vsel %vm1668, %v1664, %v1131
        %v1692 = vsel %vm1668, %v1667, %v1131
        %vm1693 = vcmask 97280
        %v1695 = vsel %vm1693, %v1670, %v1197
        %v1697 = vsel %vm1693, %v1671, %v1199
        %v1699 = vsel %vm1693, %v1673, %v1201
        %v1701 = vsel %vm1693, %v1674, %v1203
        %v1703 = vsel %vm1693, %v1676, %v1205
        %v1705 = vsel %vm1693, %v1677, %v1207
        %v1707 = vsel %vm1693, %v1679, %v1209
        %v1709 = vsel %vm1693, %v1680, %v1211
        %v1711 = vsel %vm1693, %v1682, %v1213
        %v1713 = vsel %vm1693, %v1683, %v1215
        %v1715 = vsel %vm1693, %v1685, %v1217
        %v1717 = vsel %vm1693, %v1686, %v1219
        %v1719 = vsel %vm1693, %v1688, %v1221
        %v1721 = vsel %vm1693, %v1689, %v1223
        %v1723 = vsel %vm1693, %v1691, %v1225
        %v1725 = vsel %vm1693, %v1692, %v1227
        %vm1726 = vcmask 130048
        %v1728 = vsel %vm1726, %v1695, %v1293
        %v1730 = vsel %vm1726, %v1697, %v1295
        %v1732 = vsel %vm1726, %v1699, %v1297
        %v1734 = vsel %vm1726, %v1701, %v1299
        %v1736 = vsel %vm1726, %v1703, %v1301
        %v1738 = vsel %vm1726, %v1705, %v1303
        %v1740 = vsel %vm1726, %v1707, %v1305
        %v1742 = vsel %vm1726, %v1709, %v1307
        %v1744 = vsel %vm1726, %v1711, %v1309
        %v1746 = vsel %vm1726, %v1713, %v1311
        %v1748 = vsel %vm1726, %v1715, %v1313
        %v1750 = vsel %vm1726, %v1717, %v1315
        %v1752 = vsel %vm1726, %v1719, %v1317
        %v1754 = vsel %vm1726, %v1721, %v1319
        %v1756 = vsel %vm1726, %v1723, %v1321
        %v1758 = vsel %vm1726, %v1725, %v1323
        %vm1759 = vcmask 162816
        %v1761 = vsel %vm1759, %v1728, %v1357
        %v1762 = vsel %vm1759, %v1730, %v1357
        %v1764 = vsel %vm1759, %v1732, %v1359
        %v1765 = vsel %vm1759, %v1734, %v1359
        %v1767 = vsel %vm1759, %v1736, %v1361
        %v1768 = vsel %vm1759, %v1738, %v1361
        %v1770 = vsel %vm1759, %v1740, %v1363
        %v1771 = vsel %vm1759, %v1742, %v1363
        %v1773 = vsel %vm1759, %v1744, %v1365
        %v1774 = vsel %vm1759, %v1746, %v1365
        %v1776 = vsel %vm1759, %v1748, %v1367
        %v1777 = vsel %vm1759, %v1750, %v1367
        %v1779 = vsel %vm1759, %v1752, %v1369
        %v1780 = vsel %vm1759, %v1754, %v1369
        %v1782 = vsel %vm1759, %v1756, %v1371
        %v1783 = vsel %vm1759, %v1758, %v1371
        %vm1784 = vcmask 195584
        %v1786 = vsel %vm1784, %v1761, %v1437
        %v1788 = vsel %vm1784, %v1762, %v1439
        %v1790 = vsel %vm1784, %v1764, %v1441
        %v1792 = vsel %vm1784, %v1765, %v1443
        %v1794 = vsel %vm1784, %v1767, %v1445
        %v1796 = vsel %vm1784, %v1768, %v1447
        %v1798 = vsel %vm1784, %v1770, %v1449
        %v1800 = vsel %vm1784, %v1771, %v1451
        %v1802 = vsel %vm1784, %v1773, %v1453
        %v1804 = vsel %vm1784, %v1774, %v1455
        %v1806 = vsel %vm1784, %v1776, %v1457
        %v1808 = vsel %vm1784, %v1777, %v1459
        %v1810 = vsel %vm1784, %v1779, %v1461
        %v1812 = vsel %vm1784, %v1780, %v1463
        %v1814 = vsel %vm1784, %v1782, %v1465
        %v1816 = vsel %vm1784, %v1783, %v1467
        %vm1817 = vcmask 228352
        %v1819 = vsel %vm1817, %v1786, %v1541
        %v1821 = vsel %vm1817, %v1788, %v1543
        %v1823 = vsel %vm1817, %v1790, %v1545
        %v1825 = vsel %vm1817, %v1792, %v1547
        %v1827 = vsel %vm1817, %v1794, %v1549
        %v1829 = vsel %vm1817, %v1796, %v1551
        %v1831 = vsel %vm1817, %v1798, %v1553
        %v1833 = vsel %vm1817, %v1800, %v1555
        %v1835 = vsel %vm1817, %v1802, %v1557
        %v1837 = vsel %vm1817, %v1804, %v1559
        %v1839 = vsel %vm1817, %v1806, %v1561
        %v1841 = vsel %vm1817, %v1808, %v1563
        %v1843 = vsel %vm1817, %v1810, %v1565
        %v1845 = vsel %vm1817, %v1812, %v1567
        %v1847 = vsel %vm1817, %v1814, %v1569
        %v1849 = vsel %vm1817, %v1816, %v1571
        %vm1850 = vcmask 261120
        %v1852 = vsel %vm1850, %v1819, %v1605
        %v1853 = vsel %vm1850, %v1821, %v1605
        %v1855 = vsel %vm1850, %v1823, %v1607
        %v1856 = vsel %vm1850, %v1825, %v1607
        %v1858 = vsel %vm1850, %v1827, %v1609
        %v1859 = vsel %vm1850, %v1829, %v1609
        %v1861 = vsel %vm1850, %v1831, %v1611
        %v1862 = vsel %vm1850, %v1833, %v1611
        %v1864 = vsel %vm1850, %v1835, %v1613
        %v1865 = vsel %vm1850, %v1837, %v1613
        %v1867 = vsel %vm1850, %v1839, %v1615
        %v1868 = vsel %vm1850, %v1841, %v1615
        %v1870 = vsel %vm1850, %v1843, %v1617
        %v1871 = vsel %vm1850, %v1845, %v1617
        %v1873 = vsel %vm1850, %v1847, %v1619
        %v1874 = vsel %vm1850, %v1849, %v1619
        %vm1891 = vcmask 1045504
        %v1892 = vrot.slane %v1852, 2
        %v1893 = vrot.slane %v1853, 2
        %v1894 = vsel %vm1891, %v1892, %v1893
        %v1895 = vrot.slane %v1855, 2
        %v1896 = vrot.slane %v1856, 2
        %v1897 = vsel %vm1891, %v1895, %v1896
        %v1898 = vrot.slane %v1858, 2
        %v1899 = vrot.slane %v1859, 2
        %v1900 = vsel %vm1891, %v1898, %v1899
        %v1901 = vrot.slane %v1861, 2
        %v1902 = vrot.slane %v1862, 2
        %v1903 = vsel %vm1891, %v1901, %v1902
        %v1904 = vrot.slane %v1864, 2
        %v1905 = vrot.slane %v1865, 2
        %v1906 = vsel %vm1891, %v1904, %v1905
        %v1907 = vrot.slane %v1867, 2
        %v1908 = vrot.slane %v1868, 2
        %v1909 = vsel %vm1891, %v1907, %v1908
        %v1910 = vrot.slane %v1870, 2
        %v1911 = vrot.slane %v1871, 2
        %v1912 = vsel %vm1891, %v1910, %v1911
        %v1913 = vrot.slane %v1873, 2
        %v1914 = vrot.slane %v1874, 2
        %v1915 = vsel %vm1891, %v1913, %v1914
        %v1916 = vld [vmem:[%s2] sm:$0xff]
        %v1917 = vld [vmem:[%s2 + $0x8] sm:$0xff]
        %v1918 = vld [vmem:[%s2 + $0x10] sm:$0xff]
        %v1919 = vld [vmem:[%s2 + $0x18] sm:$0xff]
        %v1920 = vld [vmem:[%s2 + $0x20] sm:$0x33]
        %v1926 = vunpack.c.l.b16 %v1916
        %v1927 = vunpack.c.h.b16 %v1916
        %v1928 = vunpack.c.l.b16 %v1917
        %v1929 = vunpack.c.h.b16 %v1917
        %v1930 = vunpack.c.l.b16 %v1918
        %v1931 = vunpack.c.h.b16 %v1918
        %v1932 = vunpack.c.l.b16 %v1919
        %v1933 = vunpack.c.h.b16 %v1919
        %v1934 = vunpack.c.l.b16 %v1920
        %v1935 = vunpack.c.h.b16 %v1920
        %v1936 = vpack.c.b16 %v1928, %v1926
        %v1937 = vpack.c.b16 %v1929, %v1927
        %v1938 = vpack.c.b16 %v1932, %v1930
        %v1939 = vpack.c.b16 %v1933, %v1931
        %v1940 = vpack.c.b16 %v1934, %v1934
        %v1941 = vpack.c.b16 %v1935, %v1935
        %vm1946 = vcmask 293888
        %v1948 = vsel %vm1946, %v1894, 0
        %v1951 = vsel %vm1946, %v1897, 0
        %v1954 = vsel %vm1946, %v1900, 0
        %v1957 = vsel %vm1946, %v1903, 0
        %v1960 = vsel %vm1946, %v1906, 0
        %v1963 = vsel %vm1946, %v1909, 0
        %v1966 = vsel %vm1946, %v1912, 0
        %v1969 = vsel %vm1946, %v1915, 0
        %v1972 = vsel %vm539, %v1940, 0
        %v1975 = vsel %vm539, %v1941, 0
        %1977 = vmatprep.subr.bf16.mxu0 0
        %1978 = vmatpush1.bf16.msra.mxu0 0
        %1979 = vmatprep.subr.bf16.mxu0 0
        %1980 = vmatpush1.bf16.msra.mxu0 0
        %1981 = vmatprep.subr.bf16.mxu0 0
        %1982 = vmatpush1.bf16.msra.mxu0 0
        %1983 = vmatprep.subr.bf16.mxu0 0
        %1984 = vmatpush1.bf16.msra.mxu0 0
        %1985 = vmatprep.subr.bf16.mxu0 0
        %1986 = vmatpush1.bf16.msra.mxu0 0
        %1987 = vmatprep.subr.bf16.mxu0 %v1975
        %1988 = vmatpush1.bf16.msra.mxu0 %v1972
        %1989 = vmatprep.subr.bf16.mxu0 %v1939
        %1990 = vmatpush1.bf16.msra.mxu0 %v1938
        %1991 = vmatprep.subr.bf16.mxu0 %v1937
        %1992 = vmatpush1.bf16.msra.mxu0 %v1936
        %1993 = vmatprep.subr.bf16.mxu0 0
        %1994 = vmatpush2.bf16.msra.mxu0 0
        %1995 = vmatprep.subr.bf16.mxu0 0
        %1996 = vmatpush2.bf16.msra.mxu0 0
        %1997 = vmatprep.subr.bf16.mxu0 0
        %1998 = vmatpush2.bf16.msra.mxu0 0
        %1999 = vmatprep.subr.bf16.mxu0 0
        %2000 = vmatpush2.bf16.msra.mxu0 0
        %2001 = vmatprep.subr.bf16.mxu0 0
        %2002 = vmatpush2.bf16.msra.mxu0 0
        %2003 = vmatprep.subr.bf16.mxu0 0
        %2004 = vmatpush2.bf16.msra.mxu0 0
        %2005 = vmatprep.subr.bf16.mxu0 0
        %2006 = vmatpush2.bf16.msra.mxu0 0
        %2007 = vmatprep.subr.bf16.mxu0 0
        %2008 = vmatpush2.bf16.msra.mxu0 0
        %2009 = vmatprep.mubr.bf16.mxu0 0
        %2010 = vmatmul.mubr.bf16.gmra.mxu0 %v1948
        %v2011 = vpop.f32.mrf.mxu0
        %v2012 = vadd.f32 0.0, %v2011
        %v2013 = vpop.f32.mrf.mxu0
        %v2014 = vadd.f32 0.0, %v2013
        %v2015 = vpop.f32.mrf.mxu0
        %v2016 = vadd.f32 0.0, %v2015
        %v2017 = vpop.f32.mrf.mxu0
        %v2018 = vadd.f32 0.0, %v2017
        %2019 = vmatprep.mubr.bf16.mxu0 0
        %2020 = vmatmul.mubr.bf16.gmra.mxu0 %v1951
        %v2021 = vpop.f32.mrf.mxu0
        %v2022 = vadd.f32 0.0, %v2021
        %v2023 = vpop.f32.mrf.mxu0
        %v2024 = vadd.f32 0.0, %v2023
        %v2025 = vpop.f32.mrf.mxu0
        %v2026 = vadd.f32 0.0, %v2025
        %v2027 = vpop.f32.mrf.mxu0
        %v2028 = vadd.f32 0.0, %v2027
        %2029 = vmatprep.mubr.bf16.mxu0 0
        %2030 = vmatmul.mubr.bf16.gmra.mxu0 %v1954
        %v2031 = vpop.f32.mrf.mxu0
        %v2032 = vadd.f32 0.0, %v2031
        %v2033 = vpop.f32.mrf.mxu0
        %v2034 = vadd.f32 0.0, %v2033
        %v2035 = vpop.f32.mrf.mxu0
        %v2036 = vadd.f32 0.0, %v2035
        %v2037 = vpop.f32.mrf.mxu0
        %v2038 = vadd.f32 0.0, %v2037
        %2039 = vmatprep.mubr.bf16.mxu0 0
        %2040 = vmatmul.mubr.bf16.gmra.mxu0 %v1957
        %v2041 = vpop.f32.mrf.mxu0
        %v2042 = vadd.f32 0.0, %v2041
        %v2043 = vpop.f32.mrf.mxu0
        %v2044 = vadd.f32 0.0, %v2043
        %v2045 = vpop.f32.mrf.mxu0
        %v2046 = vadd.f32 0.0, %v2045
        %v2047 = vpop.f32.mrf.mxu0
        %v2048 = vadd.f32 0.0, %v2047
        %2049 = vmatprep.mubr.bf16.mxu0 0
        %2050 = vmatmul.mubr.bf16.gmra.mxu0 %v1960
        %v2051 = vpop.f32.mrf.mxu0
        %v2052 = vadd.f32 0.0, %v2051
        %v2053 = vpop.f32.mrf.mxu0
        %v2054 = vadd.f32 0.0, %v2053
        %v2055 = vpop.f32.mrf.mxu0
        %v2056 = vadd.f32 0.0, %v2055
        %v2057 = vpop.f32.mrf.mxu0
        %v2058 = vadd.f32 0.0, %v2057
        %2059 = vmatprep.mubr.bf16.mxu0 0
        %2060 = vmatmul.mubr.bf16.gmra.mxu0 %v1963
        %v2061 = vpop.f32.mrf.mxu0
        %v2062 = vadd.f32 0.0, %v2061
        %v2063 = vpop.f32.mrf.mxu0
        %v2064 = vadd.f32 0.0, %v2063
        %v2065 = vpop.f32.mrf.mxu0
        %v2066 = vadd.f32 0.0, %v2065
        %v2067 = vpop.f32.mrf.mxu0
        %v2068 = vadd.f32 0.0, %v2067
        %2069 = vmatprep.mubr.bf16.mxu0 0
        %2070 = vmatmul.mubr.bf16.gmra.mxu0 %v1966
        %v2071 = vpop.f32.mrf.mxu0
        %v2072 = vadd.f32 0.0, %v2071
        %v2073 = vpop.f32.mrf.mxu0
        %v2074 = vadd.f32 0.0, %v2073
        %v2075 = vpop.f32.mrf.mxu0
        %v2076 = vadd.f32 0.0, %v2075
        %v2077 = vpop.f32.mrf.mxu0
        %v2078 = vadd.f32 0.0, %v2077
        %2079 = vmatprep.mubr.bf16.mxu0 0
        %2080 = vmatmul.mubr.bf16.gmra.mxu0 %v1969
        %v2081 = vpop.f32.mrf.mxu0
        %v2082 = vadd.f32 0.0, %v2081
        %v2083 = vpop.f32.mrf.mxu0
        %v2084 = vadd.f32 0.0, %v2083
        %v2085 = vpop.f32.mrf.mxu0
        %v2086 = vadd.f32 0.0, %v2085
        %v2087 = vpop.f32.mrf.mxu0
        %v2088 = vadd.f32 0.0, %v2087
        %2089 = vdwg.mxu0
        %s2090 = scalar_lea.vmem %s4, 1
        %v2091 = vld [vmem:[%s2090] ss:$4 sm:$0x3]
        %v2093 = vlaneseq
        %v2094 = vshrl.u32 %v2093, 7
        %v2095 = vsub.s32 0, %v2094
        %v2096 = vrot.slane %v2091, %v2095
        %v2097 = vlaneseq
        %v2098 = vshrl.u32 %v2097, 7
        %v2099 = vsub.s32 1, %v2098
        %v2100 = vrot.slane %v2091, %v2099
        %v2103 = vmul.f32 %v2012, %v2096
        %v2104 = vmul.f32 %v2014, %v2100
        %v2105 = vmul.f32 %v2016, %v2096
        %v2106 = vmul.f32 %v2018, %v2100
        %v2107 = vmul.f32 %v2022, %v2096
        %v2108 = vmul.f32 %v2024, %v2100
        %v2109 = vmul.f32 %v2026, %v2096
        %v2110 = vmul.f32 %v2028, %v2100
        %v2111 = vmul.f32 %v2032, %v2096
        %v2112 = vmul.f32 %v2034, %v2100
        %v2113 = vmul.f32 %v2036, %v2096
        %v2114 = vmul.f32 %v2038, %v2100
        %v2115 = vmul.f32 %v2042, %v2096
        %v2116 = vmul.f32 %v2044, %v2100
        %v2117 = vmul.f32 %v2046, %v2096
        %v2118 = vmul.f32 %v2048, %v2100
        %v2119 = vmul.f32 %v2052, %v2096
        %v2120 = vmul.f32 %v2054, %v2100
        %v2121 = vmul.f32 %v2056, %v2096
        %v2122 = vmul.f32 %v2058, %v2100
        %v2123 = vmul.f32 %v2062, %v2096
        %v2124 = vmul.f32 %v2064, %v2100
        %v2125 = vmul.f32 %v2066, %v2096
        %v2126 = vmul.f32 %v2068, %v2100
        %v2127 = vmul.f32 %v2072, %v2096
        %v2128 = vmul.f32 %v2074, %v2100
        %v2129 = vmul.f32 %v2076, %v2096
        %v2130 = vmul.f32 %v2078, %v2100
        %v2131 = vmul.f32 %v2082, %v2096
        %v2132 = vmul.f32 %v2084, %v2100
        %v2133 = vmul.f32 %v2086, %v2096
        %v2134 = vmul.f32 %v2088, %v2100
        %s2135 = scalar_lea.vmem %s5, 1
        %v2136 = vld [vmem:[%s2135] ss:$4 sm:$0x3]
        %v2138 = vlaneseq
        %v2139 = vshrl.u32 %v2138, 7
        %v2140 = vsub.s32 0, %v2139
        %v2141 = vrot.slane %v2136, %v2140
        %v2142 = vlaneseq
        %v2143 = vshrl.u32 %v2142, 7
        %v2144 = vsub.s32 1, %v2143
        %v2145 = vrot.slane %v2136, %v2144
        %v2148 = vadd.f32 %v2103, %v2141
        %v2149 = vadd.f32 %v2104, %v2145
        %v2150 = vadd.f32 %v2105, %v2141
        %v2151 = vadd.f32 %v2106, %v2145
        %v2152 = vadd.f32 %v2107, %v2141
        %v2153 = vadd.f32 %v2108, %v2145
        %v2154 = vadd.f32 %v2109, %v2141
        %v2155 = vadd.f32 %v2110, %v2145
        %v2156 = vadd.f32 %v2111, %v2141
        %v2157 = vadd.f32 %v2112, %v2145
        %v2158 = vadd.f32 %v2113, %v2141
        %v2159 = vadd.f32 %v2114, %v2145
        %v2160 = vadd.f32 %v2115, %v2141
        %v2161 = vadd.f32 %v2116, %v2145
        %v2162 = vadd.f32 %v2117, %v2141
        %v2163 = vadd.f32 %v2118, %v2145
        %v2164 = vadd.f32 %v2119, %v2141
        %v2165 = vadd.f32 %v2120, %v2145
        %v2166 = vadd.f32 %v2121, %v2141
        %v2167 = vadd.f32 %v2122, %v2145
        %v2168 = vadd.f32 %v2123, %v2141
        %v2169 = vadd.f32 %v2124, %v2145
        %v2170 = vadd.f32 %v2125, %v2141
        %v2171 = vadd.f32 %v2126, %v2145
        %v2172 = vadd.f32 %v2127, %v2141
        %v2173 = vadd.f32 %v2128, %v2145
        %v2174 = vadd.f32 %v2129, %v2141
        %v2175 = vadd.f32 %v2130, %v2145
        %v2176 = vadd.f32 %v2131, %v2141
        %v2177 = vadd.f32 %v2132, %v2145
        %v2178 = vadd.f32 %v2133, %v2141
        %v2179 = vadd.f32 %v2134, %v2145
        %v2180 = vmax.f32 %v2148, 0.0
        %v2181 = vmax.f32 %v2149, 0.0
        %v2182 = vmax.f32 %v2150, 0.0
        %v2183 = vmax.f32 %v2151, 0.0
        %v2184 = vmax.f32 %v2152, 0.0
        %v2185 = vmax.f32 %v2153, 0.0
        %v2186 = vmax.f32 %v2154, 0.0
        %v2187 = vmax.f32 %v2155, 0.0
        %v2188 = vmax.f32 %v2156, 0.0
        %v2189 = vmax.f32 %v2157, 0.0
        %v2190 = vmax.f32 %v2158, 0.0
        %v2191 = vmax.f32 %v2159, 0.0
        %v2192 = vmax.f32 %v2160, 0.0
        %v2193 = vmax.f32 %v2161, 0.0
        %v2194 = vmax.f32 %v2162, 0.0
        %v2195 = vmax.f32 %v2163, 0.0
        %v2196 = vmax.f32 %v2164, 0.0
        %v2197 = vmax.f32 %v2165, 0.0
        %v2198 = vmax.f32 %v2166, 0.0
        %v2199 = vmax.f32 %v2167, 0.0
        %v2200 = vmax.f32 %v2168, 0.0
        %v2201 = vmax.f32 %v2169, 0.0
        %v2202 = vmax.f32 %v2170, 0.0
        %v2203 = vmax.f32 %v2171, 0.0
        %v2204 = vmax.f32 %v2172, 0.0
        %v2205 = vmax.f32 %v2173, 0.0
        %v2206 = vmax.f32 %v2174, 0.0
        %v2207 = vmax.f32 %v2175, 0.0
        %v2208 = vmax.f32 %v2176, 0.0
        %v2209 = vmax.f32 %v2177, 0.0
        %v2210 = vmax.f32 %v2178, 0.0
        %v2211 = vmax.f32 %v2179, 0.0
        %s2212 = sadd.s32 %s368, 2
        %s2213 = smul.u32 %s2212, 4
        %s2214 = smul.addr %s2213, 4
        %s2215 = scalar_lea.vmem %s359, %s2214
        %v2216 = vld [vmem:[%s2215] sm:$0xe]
        %v2217 = vld [vmem:[%s2215 + $0x4] sm:$0xf]
        %v2218 = vld [vmem:[%s2215 + $0x8] sm:$0x1]
        %v2219 = vld [vmem:[%s2215 + $0x10] sm:$0xe]
        %v2220 = vld [vmem:[%s2215 + $0x14] sm:$0xf]
        %v2221 = vld [vmem:[%s2215 + $0x18] sm:$0x1]
        %v2222 = vld [vmem:[%s2215 + $0x20] sm:$0xe]
        %v2223 = vld [vmem:[%s2215 + $0x24] sm:$0xf]
        %v2224 = vld [vmem:[%s2215 + $0x28] sm:$0x1]
        %v2225 = vld [vmem:[%s2215 + $0x30] sm:$0xe]
        %v2226 = vld [vmem:[%s2215 + $0x34] sm:$0xf]
        %v2227 = vld [vmem:[%s2215 + $0x38] sm:$0x1]
        %v2228 = vld [vmem:[%s2215 + $0x40] sm:$0xe]
        %v2229 = vld [vmem:[%s2215 + $0x44] sm:$0xf]
        %v2230 = vld [vmem:[%s2215 + $0x48] sm:$0x1]
        %v2231 = vld [vmem:[%s2215 + $0x50] sm:$0xe]
        %v2232 = vld [vmem:[%s2215 + $0x54] sm:$0xf]
        %v2233 = vld [vmem:[%s2215 + $0x58] sm:$0x1]
        %v2234 = vld [vmem:[%s2215 + $0x60] sm:$0xe]
        %v2235 = vld [vmem:[%s2215 + $0x64] sm:$0xf]
        %v2236 = vld [vmem:[%s2215 + $0x68] sm:$0x1]
        %v2237 = vld [vmem:[%s2215 + $0x70] sm:$0xe]
        %v2238 = vld [vmem:[%s2215 + $0x74] sm:$0xf]
        %v2239 = vld [vmem:[%s2215 + $0x78] sm:$0x1]
        %v2240 = vld [vmem:[%s2215] sm:$0x8]
        %v2241 = vld [vmem:[%s2215 + $0x8] sm:$0x7]
        %v2242 = vld [vmem:[%s2215 + $0x10] sm:$0x8]
        %v2243 = vld [vmem:[%s2215 + $0x18] sm:$0x7]
        %v2244 = vld [vmem:[%s2215 + $0x20] sm:$0x8]
        %v2245 = vld [vmem:[%s2215 + $0x28] sm:$0x7]
        %v2246 = vld [vmem:[%s2215 + $0x30] sm:$0x8]
        %v2247 = vld [vmem:[%s2215 + $0x38] sm:$0x7]
        %v2248 = vld [vmem:[%s2215 + $0x40] sm:$0x8]
        %v2249 = vld [vmem:[%s2215 + $0x48] sm:$0x7]
        %v2250 = vld [vmem:[%s2215 + $0x50] sm:$0x8]
        %v2251 = vld [vmem:[%s2215 + $0x58] sm:$0x7]
        %v2252 = vld [vmem:[%s2215 + $0x60] sm:$0x8]
        %v2253 = vld [vmem:[%s2215 + $0x68] sm:$0x7]
        %v2254 = vld [vmem:[%s2215 + $0x70] sm:$0x8]
        %v2255 = vld [vmem:[%s2215 + $0x78] sm:$0x7]
        %v2256 = vld [vmem:[%s2215 + $0x4] sm:$0xe]
        %v2257 = vld [vmem:[%s2215 + $0x8] sm:$0xf]
        %v2258 = vld [vmem:[%s2215 + $0xc] sm:$0x1]
        %v2259 = vld [vmem:[%s2215 + $0x14] sm:$0xe]
        %v2260 = vld [vmem:[%s2215 + $0x18] sm:$0xf]
        %v2261 = vld [vmem:[%s2215 + $0x1c] sm:$0x1]
        %v2262 = vld [vmem:[%s2215 + $0x24] sm:$0xe]
        %v2263 = vld [vmem:[%s2215 + $0x28] sm:$0xf]
        %v2264 = vld [vmem:[%s2215 + $0x2c] sm:$0x1]
        %v2265 = vld [vmem:[%s2215 + $0x34] sm:$0xe]
        %v2266 = vld [vmem:[%s2215 + $0x38] sm:$0xf]
        %v2267 = vld [vmem:[%s2215 + $0x3c] sm:$0x1]
        %v2268 = vld [vmem:[%s2215 + $0x44] sm:$0xe]
        %v2269 = vld [vmem:[%s2215 + $0x48] sm:$0xf]
        %v2270 = vld [vmem:[%s2215 + $0x4c] sm:$0x1]
        %v2271 = vld [vmem:[%s2215 + $0x54] sm:$0xe]
        %v2272 = vld [vmem:[%s2215 + $0x58] sm:$0xf]
        %v2273 = vld [vmem:[%s2215 + $0x5c] sm:$0x1]
        %v2274 = vld [vmem:[%s2215 + $0x64] sm:$0xe]
        %v2275 = vld [vmem:[%s2215 + $0x68] sm:$0xf]
        %v2276 = vld [vmem:[%s2215 + $0x6c] sm:$0x1]
        %v2277 = vld [vmem:[%s2215 + $0x74] sm:$0xe]
        %v2278 = vld [vmem:[%s2215 + $0x78] sm:$0xf]
        %v2279 = vld [vmem:[%s2215 + $0x7c] sm:$0x1]
        %v2280 = vld [vmem:[%s372] sm:$0xe]
        %v2281 = vld [vmem:[%s372 + $0x8] sm:$0x1]
        %v2282 = vld [vmem:[%s372 + $0x10] sm:$0xe]
        %v2283 = vld [vmem:[%s372 + $0x18] sm:$0x1]
        %v2284 = vld [vmem:[%s372 + $0x20] sm:$0xe]
        %v2285 = vld [vmem:[%s372 + $0x28] sm:$0x1]
        %v2286 = vld [vmem:[%s372 + $0x30] sm:$0xe]
        %v2287 = vld [vmem:[%s372 + $0x38] sm:$0x1]
        %v2288 = vld [vmem:[%s372 + $0x40] sm:$0xe]
        %v2289 = vld [vmem:[%s372 + $0x48] sm:$0x1]
        %v2290 = vld [vmem:[%s372 + $0x50] sm:$0xe]
        %v2291 = vld [vmem:[%s372 + $0x58] sm:$0x1]
        %v2292 = vld [vmem:[%s372 + $0x60] sm:$0xe]
        %v2293 = vld [vmem:[%s372 + $0x68] sm:$0x1]
        %v2294 = vld [vmem:[%s372 + $0x70] sm:$0xe]
        %v2295 = vld [vmem:[%s372 + $0x78] sm:$0x1]
        %v2296 = vld [vmem:[%s372 + $0x4] sm:$0xe]
        %v2297 = vld [vmem:[%s372 + $0x8] sm:$0xf]
        %v2298 = vld [vmem:[%s372 + $0xc] sm:$0x1]
        %v2299 = vld [vmem:[%s372 + $0x14] sm:$0xe]
        %v2300 = vld [vmem:[%s372 + $0x18] sm:$0xf]
        %v2301 = vld [vmem:[%s372 + $0x1c] sm:$0x1]
        %v2302 = vld [vmem:[%s372 + $0x24] sm:$0xe]
        %v2303 = vld [vmem:[%s372 + $0x28] sm:$0xf]
        %v2304 = vld [vmem:[%s372 + $0x2c] sm:$0x1]
        %v2305 = vld [vmem:[%s372 + $0x34] sm:$0xe]
        %v2306 = vld [vmem:[%s372 + $0x38] sm:$0xf]
        %v2307 = vld [vmem:[%s372 + $0x3c] sm:$0x1]
        %v2308 = vld [vmem:[%s372 + $0x44] sm:$0xe]
        %v2309 = vld [vmem:[%s372 + $0x48] sm:$0xf]
        %v2310 = vld [vmem:[%s372 + $0x4c] sm:$0x1]
        %v2311 = vld [vmem:[%s372 + $0x54] sm:$0xe]
        %v2312 = vld [vmem:[%s372 + $0x58] sm:$0xf]
        %v2313 = vld [vmem:[%s372 + $0x5c] sm:$0x1]
        %v2314 = vld [vmem:[%s372 + $0x64] sm:$0xe]
        %v2315 = vld [vmem:[%s372 + $0x68] sm:$0xf]
        %v2316 = vld [vmem:[%s372 + $0x6c] sm:$0x1]
        %v2317 = vld [vmem:[%s372 + $0x74] sm:$0xe]
        %v2318 = vld [vmem:[%s372 + $0x78] sm:$0xf]
        %v2319 = vld [vmem:[%s372 + $0x7c] sm:$0x1]
        %s2320 = sadd.s32 %s368, 10
        %s2321 = smul.u32 %s2320, 4
        %s2322 = smul.addr %s2321, 4
        %s2323 = scalar_lea.vmem %s359, %s2322
        %v2324 = vld [vmem:[%s2323] sm:$0xe]
        %v2325 = vld [vmem:[%s2323 + $0x4] sm:$0xf]
        %v2326 = vld [vmem:[%s2323 + $0x8] sm:$0x1]
        %v2327 = vld [vmem:[%s2323 + $0x10] sm:$0xe]
        %v2328 = vld [vmem:[%s2323 + $0x14] sm:$0xf]
        %v2329 = vld [vmem:[%s2323 + $0x18] sm:$0x1]
        %v2330 = vld [vmem:[%s2323 + $0x20] sm:$0xe]
        %v2331 = vld [vmem:[%s2323 + $0x24] sm:$0xf]
        %v2332 = vld [vmem:[%s2323 + $0x28] sm:$0x1]
        %v2333 = vld [vmem:[%s2323 + $0x30] sm:$0xe]
        %v2334 = vld [vmem:[%s2323 + $0x34] sm:$0xf]
        %v2335 = vld [vmem:[%s2323 + $0x38] sm:$0x1]
        %v2336 = vld [vmem:[%s2323 + $0x40] sm:$0xe]
        %v2337 = vld [vmem:[%s2323 + $0x44] sm:$0xf]
        %v2338 = vld [vmem:[%s2323 + $0x48] sm:$0x1]
        %v2339 = vld [vmem:[%s2323 + $0x50] sm:$0xe]
        %v2340 = vld [vmem:[%s2323 + $0x54] sm:$0xf]
        %v2341 = vld [vmem:[%s2323 + $0x58] sm:$0x1]
        %v2342 = vld [vmem:[%s2323 + $0x60] sm:$0xe]
        %v2343 = vld [vmem:[%s2323 + $0x64] sm:$0xf]
        %v2344 = vld [vmem:[%s2323 + $0x68] sm:$0x1]
        %v2345 = vld [vmem:[%s2323 + $0x70] sm:$0xe]
        %v2346 = vld [vmem:[%s2323 + $0x74] sm:$0xf]
        %v2347 = vld [vmem:[%s2323 + $0x78] sm:$0x1]
        %v2348 = vld [vmem:[%s2323] sm:$0x8]
        %v2349 = vld [vmem:[%s2323 + $0x8] sm:$0x7]
        %v2350 = vld [vmem:[%s2323 + $0x10] sm:$0x8]
        %v2351 = vld [vmem:[%s2323 + $0x18] sm:$0x7]
        %v2352 = vld [vmem:[%s2323 + $0x20] sm:$0x8]
        %v2353 = vld [vmem:[%s2323 + $0x28] sm:$0x7]
        %v2354 = vld [vmem:[%s2323 + $0x30] sm:$0x8]
        %v2355 = vld [vmem:[%s2323 + $0x38] sm:$0x7]
        %v2356 = vld [vmem:[%s2323 + $0x40] sm:$0x8]
        %v2357 = vld [vmem:[%s2323 + $0x48] sm:$0x7]
        %v2358 = vld [vmem:[%s2323 + $0x50] sm:$0x8]
        %v2359 = vld [vmem:[%s2323 + $0x58] sm:$0x7]
        %v2360 = vld [vmem:[%s2323 + $0x60] sm:$0x8]
        %v2361 = vld [vmem:[%s2323 + $0x68] sm:$0x7]
        %v2362 = vld [vmem:[%s2323 + $0x70] sm:$0x8]
        %v2363 = vld [vmem:[%s2323 + $0x78] sm:$0x7]
        %v2364 = vld [vmem:[%s2323 + $0x4] sm:$0xe]
        %v2365 = vld [vmem:[%s2323 + $0x8] sm:$0xf]
        %v2366 = vld [vmem:[%s2323 + $0xc] sm:$0x1]
        %v2367 = vld [vmem:[%s2323 + $0x14] sm:$0xe]
        %v2368 = vld [vmem:[%s2323 + $0x18] sm:$0xf]
        %v2369 = vld [vmem:[%s2323 + $0x1c] sm:$0x1]
        %v2370 = vld [vmem:[%s2323 + $0x24] sm:$0xe]
        %v2371 = vld [vmem:[%s2323 + $0x28] sm:$0xf]
        %v2372 = vld [vmem:[%s2323 + $0x2c] sm:$0x1]
        %v2373 = vld [vmem:[%s2323 + $0x34] sm:$0xe]
        %v2374 = vld [vmem:[%s2323 + $0x38] sm:$0xf]
        %v2375 = vld [vmem:[%s2323 + $0x3c] sm:$0x1]
        %v2376 = vld [vmem:[%s2323 + $0x44] sm:$0xe]
        %v2377 = vld [vmem:[%s2323 + $0x48] sm:$0xf]
        %v2378 = vld [vmem:[%s2323 + $0x4c] sm:$0x1]
        %v2379 = vld [vmem:[%s2323 + $0x54] sm:$0xe]
        %v2380 = vld [vmem:[%s2323 + $0x58] sm:$0xf]
        %v2381 = vld [vmem:[%s2323 + $0x5c] sm:$0x1]
        %v2382 = vld [vmem:[%s2323 + $0x64] sm:$0xe]
        %v2383 = vld [vmem:[%s2323 + $0x68] sm:$0xf]
        %v2384 = vld [vmem:[%s2323 + $0x6c] sm:$0x1]
        %v2385 = vld [vmem:[%s2323 + $0x74] sm:$0xe]
        %v2386 = vld [vmem:[%s2323 + $0x78] sm:$0xf]
        %v2387 = vld [vmem:[%s2323 + $0x7c] sm:$0x1]
        %v2412 = vunpack.c.l.b16 %v2216
        %v2413 = vunpack.c.l.b16 %v2217
        %v2414 = vunpack.c.l.b16 %v2218
        %v2415 = vunpack.c.l.b16 %v2219
        %v2416 = vunpack.c.l.b16 %v2220
        %v2417 = vunpack.c.l.b16 %v2221
        %v2418 = vunpack.c.l.b16 %v2222
        %v2419 = vunpack.c.l.b16 %v2223
        %v2420 = vunpack.c.l.b16 %v2224
        %v2421 = vunpack.c.l.b16 %v2225
        %v2422 = vunpack.c.l.b16 %v2226
        %v2423 = vunpack.c.l.b16 %v2227
        %v2424 = vunpack.c.l.b16 %v2228
        %v2425 = vunpack.c.l.b16 %v2229
        %v2426 = vunpack.c.l.b16 %v2230
        %v2427 = vunpack.c.l.b16 %v2231
        %v2428 = vunpack.c.l.b16 %v2232
        %v2429 = vunpack.c.l.b16 %v2233
        %v2430 = vunpack.c.l.b16 %v2234
        %v2431 = vunpack.c.l.b16 %v2235
        %v2432 = vunpack.c.l.b16 %v2236
        %v2433 = vunpack.c.l.b16 %v2237
        %v2434 = vunpack.c.l.b16 %v2238
        %v2435 = vunpack.c.l.b16 %v2239
        %v2436 = vpack.c.b16 %v2413, %v2412
        %v2437 = vpack.c.b16 %v2414, %v2414
        %v2438 = vpack.c.b16 %v2416, %v2415
        %v2439 = vpack.c.b16 %v2417, %v2417
        %v2440 = vpack.c.b16 %v2419, %v2418
        %v2441 = vpack.c.b16 %v2420, %v2420
        %v2442 = vpack.c.b16 %v2422, %v2421
        %v2443 = vpack.c.b16 %v2423, %v2423
        %v2444 = vpack.c.b16 %v2425, %v2424
        %v2445 = vpack.c.b16 %v2426, %v2426
        %v2446 = vpack.c.b16 %v2428, %v2427
        %v2447 = vpack.c.b16 %v2429, %v2429
        %v2448 = vpack.c.b16 %v2431, %v2430
        %v2449 = vpack.c.b16 %v2432, %v2432
        %v2450 = vpack.c.b16 %v2434, %v2433
        %v2451 = vpack.c.b16 %v2435, %v2435
        %v2468 = vunpack.c.l.b16 %v2240
        %v2469 = vunpack.c.l.b16 %v2241
        %v2470 = vunpack.c.l.b16 %v2242
        %v2471 = vunpack.c.l.b16 %v2243
        %v2472 = vunpack.c.l.b16 %v2244
        %v2473 = vunpack.c.l.b16 %v2245
        %v2474 = vunpack.c.l.b16 %v2246
        %v2475 = vunpack.c.l.b16 %v2247
        %v2476 = vunpack.c.l.b16 %v2248
        %v2477 = vunpack.c.l.b16 %v2249
        %v2478 = vunpack.c.l.b16 %v2250
        %v2479 = vunpack.c.l.b16 %v2251
        %v2480 = vunpack.c.l.b16 %v2252
        %v2481 = vunpack.c.l.b16 %v2253
        %v2482 = vunpack.c.l.b16 %v2254
        %v2483 = vunpack.c.l.b16 %v2255
        %v2484 = vpack.c.b16 %v2413, %v2468
        %v2485 = vpack.c.b16 %v2469, %v2469
        %v2486 = vpack.c.b16 %v2416, %v2470
        %v2487 = vpack.c.b16 %v2471, %v2471
        %v2488 = vpack.c.b16 %v2419, %v2472
        %v2489 = vpack.c.b16 %v2473, %v2473
        %v2490 = vpack.c.b16 %v2422, %v2474
        %v2491 = vpack.c.b16 %v2475, %v2475
        %v2492 = vpack.c.b16 %v2425, %v2476
        %v2493 = vpack.c.b16 %v2477, %v2477
        %v2494 = vpack.c.b16 %v2428, %v2478
        %v2495 = vpack.c.b16 %v2479, %v2479
        %v2496 = vpack.c.b16 %v2431, %v2480
        %v2497 = vpack.c.b16 %v2481, %v2481
        %v2498 = vpack.c.b16 %v2434, %v2482
        %v2499 = vpack.c.b16 %v2483, %v2483
        %v2500 = vrot.slane %v2484, 2
        %v2501 = vrot.slane %v2485, 2
        %v2502 = vsel %vm1891, %v2500, %v2501
        %v2503 = vrot.slane %v2486, 2
        %v2504 = vrot.slane %v2487, 2
        %v2505 = vsel %vm1891, %v2503, %v2504
        %v2506 = vrot.slane %v2488, 2
        %v2507 = vrot.slane %v2489, 2
        %v2508 = vsel %vm1891, %v2506, %v2507
        %v2509 = vrot.slane %v2490, 2
        %v2510 = vrot.slane %v2491, 2
        %v2511 = vsel %vm1891, %v2509, %v2510
        %v2512 = vrot.slane %v2492, 2
        %v2513 = vrot.slane %v2493, 2
        %v2514 = vsel %vm1891, %v2512, %v2513
        %v2515 = vrot.slane %v2494, 2
        %v2516 = vrot.slane %v2495, 2
        %v2517 = vsel %vm1891, %v2515, %v2516
        %v2518 = vrot.slane %v2496, 2
        %v2519 = vrot.slane %v2497, 2
        %v2520 = vsel %vm1891, %v2518, %v2519
        %v2521 = vrot.slane %v2498, 2
        %v2522 = vrot.slane %v2499, 2
        %v2523 = vsel %vm1891, %v2521, %v2522
        %2524 = vrot.lane.b32.xlu0 %v2502, 4
        %v2525 = vpop.permute.xlu0 %2524
        %2526 = vrot.lane.b32.xlu0 %v2501, 4
        %v2527 = vpop.permute.xlu0 %2526
        %2528 = vrot.lane.b32.xlu0 %v2505, 4
        %v2529 = vpop.permute.xlu0 %2528
        %2530 = vrot.lane.b32.xlu0 %v2504, 4
        %v2531 = vpop.permute.xlu0 %2530
        %2532 = vrot.lane.b32.xlu0 %v2508, 4
        %v2533 = vpop.permute.xlu0 %2532
        %2534 = vrot.lane.b32.xlu0 %v2507, 4
        %v2535 = vpop.permute.xlu0 %2534
        %2536 = vrot.lane.b32.xlu0 %v2511, 4
        %v2537 = vpop.permute.xlu0 %2536
        %2538 = vrot.lane.b32.xlu0 %v2510, 4
        %v2539 = vpop.permute.xlu0 %2538
        %2540 = vrot.lane.b32.xlu0 %v2514, 4
        %v2541 = vpop.permute.xlu0 %2540
        %2542 = vrot.lane.b32.xlu0 %v2513, 4
        %v2543 = vpop.permute.xlu0 %2542
        %2544 = vrot.lane.b32.xlu0 %v2517, 4
        %v2545 = vpop.permute.xlu0 %2544
        %2546 = vrot.lane.b32.xlu0 %v2516, 4
        %v2547 = vpop.permute.xlu0 %2546
        %2548 = vrot.lane.b32.xlu0 %v2520, 4
        %v2549 = vpop.permute.xlu0 %2548
        %2550 = vrot.lane.b32.xlu0 %v2519, 4
        %v2551 = vpop.permute.xlu0 %2550
        %2552 = vrot.lane.b32.xlu0 %v2523, 4
        %v2553 = vpop.permute.xlu0 %2552
        %2554 = vrot.lane.b32.xlu0 %v2522, 4
        %v2555 = vpop.permute.xlu0 %2554
        %v2580 = vunpack.c.l.b16 %v2256
        %v2581 = vunpack.c.l.b16 %v2257
        %v2582 = vunpack.c.l.b16 %v2258
        %v2583 = vunpack.c.l.b16 %v2259
        %v2584 = vunpack.c.l.b16 %v2260
        %v2585 = vunpack.c.l.b16 %v2261
        %v2586 = vunpack.c.l.b16 %v2262
        %v2587 = vunpack.c.l.b16 %v2263
        %v2588 = vunpack.c.l.b16 %v2264
        %v2589 = vunpack.c.l.b16 %v2265
        %v2590 = vunpack.c.l.b16 %v2266
        %v2591 = vunpack.c.l.b16 %v2267
        %v2592 = vunpack.c.l.b16 %v2268
        %v2593 = vunpack.c.l.b16 %v2269
        %v2594 = vunpack.c.l.b16 %v2270
        %v2595 = vunpack.c.l.b16 %v2271
        %v2596 = vunpack.c.l.b16 %v2272
        %v2597 = vunpack.c.l.b16 %v2273
        %v2598 = vunpack.c.l.b16 %v2274
        %v2599 = vunpack.c.l.b16 %v2275
        %v2600 = vunpack.c.l.b16 %v2276
        %v2601 = vunpack.c.l.b16 %v2277
        %v2602 = vunpack.c.l.b16 %v2278
        %v2603 = vunpack.c.l.b16 %v2279
        %v2604 = vpack.c.b16 %v2581, %v2580
        %v2605 = vpack.c.b16 %v2582, %v2582
        %v2606 = vpack.c.b16 %v2584, %v2583
        %v2607 = vpack.c.b16 %v2585, %v2585
        %v2608 = vpack.c.b16 %v2587, %v2586
        %v2609 = vpack.c.b16 %v2588, %v2588
        %v2610 = vpack.c.b16 %v2590, %v2589
        %v2611 = vpack.c.b16 %v2591, %v2591
        %v2612 = vpack.c.b16 %v2593, %v2592
        %v2613 = vpack.c.b16 %v2594, %v2594
        %v2614 = vpack.c.b16 %v2596, %v2595
        %v2615 = vpack.c.b16 %v2597, %v2597
        %v2616 = vpack.c.b16 %v2599, %v2598
        %v2617 = vpack.c.b16 %v2600, %v2600
        %v2618 = vpack.c.b16 %v2602, %v2601
        %v2619 = vpack.c.b16 %v2603, %v2603
        %2620 = vrot.lane.b32.xlu0 %v2604, 8
        %v2621 = vpop.permute.xlu0 %2620
        %2622 = vrot.lane.b32.xlu0 %v2605, 8
        %v2623 = vpop.permute.xlu0 %2622
        %2624 = vrot.lane.b32.xlu0 %v2606, 8
        %v2625 = vpop.permute.xlu0 %2624
        %2626 = vrot.lane.b32.xlu0 %v2607, 8
        %v2627 = vpop.permute.xlu0 %2626
        %2628 = vrot.lane.b32.xlu0 %v2608, 8
        %v2629 = vpop.permute.xlu0 %2628
        %2630 = vrot.lane.b32.xlu0 %v2609, 8
        %v2631 = vpop.permute.xlu0 %2630
        %2632 = vrot.lane.b32.xlu0 %v2610, 8
        %v2633 = vpop.permute.xlu0 %2632
        %2634 = vrot.lane.b32.xlu0 %v2611, 8
        %v2635 = vpop.permute.xlu0 %2634
        %2636 = vrot.lane.b32.xlu0 %v2612, 8
        %v2637 = vpop.permute.xlu0 %2636
        %2638 = vrot.lane.b32.xlu0 %v2613, 8
        %v2639 = vpop.permute.xlu0 %2638
        %2640 = vrot.lane.b32.xlu0 %v2614, 8
        %v2641 = vpop.permute.xlu0 %2640
        %2642 = vrot.lane.b32.xlu0 %v2615, 8
        %v2643 = vpop.permute.xlu0 %2642
        %2644 = vrot.lane.b32.xlu0 %v2616, 8
        %v2645 = vpop.permute.xlu0 %2644
        %2646 = vrot.lane.b32.xlu0 %v2617, 8
        %v2647 = vpop.permute.xlu0 %2646
        %2648 = vrot.lane.b32.xlu0 %v2618, 8
        %v2649 = vpop.permute.xlu0 %2648
        %2650 = vrot.lane.b32.xlu0 %v2619, 8
        %v2651 = vpop.permute.xlu0 %2650
        %v2668 = vunpack.c.l.b16 %v2280
        %v2669 = vunpack.c.l.b16 %v2281
        %v2670 = vunpack.c.l.b16 %v2282
        %v2671 = vunpack.c.l.b16 %v2283
        %v2672 = vunpack.c.l.b16 %v2284
        %v2673 = vunpack.c.l.b16 %v2285
        %v2674 = vunpack.c.l.b16 %v2286
        %v2675 = vunpack.c.l.b16 %v2287
        %v2676 = vunpack.c.l.b16 %v2288
        %v2677 = vunpack.c.l.b16 %v2289
        %v2678 = vunpack.c.l.b16 %v2290
        %v2679 = vunpack.c.l.b16 %v2291
        %v2680 = vunpack.c.l.b16 %v2292
        %v2681 = vunpack.c.l.b16 %v2293
        %v2682 = vunpack.c.l.b16 %v2294
        %v2683 = vunpack.c.l.b16 %v2295
        %v2684 = vpack.c.b16 %v1157, %v2668
        %v2685 = vpack.c.b16 %v2669, %v2669
        %v2686 = vpack.c.b16 %v1160, %v2670
        %v2687 = vpack.c.b16 %v2671, %v2671
        %v2688 = vpack.c.b16 %v1163, %v2672
        %v2689 = vpack.c.b16 %v2673, %v2673
        %v2690 = vpack.c.b16 %v1166, %v2674
        %v2691 = vpack.c.b16 %v2675, %v2675
        %v2692 = vpack.c.b16 %v1169, %v2676
        %v2693 = vpack.c.b16 %v2677, %v2677
        %v2694 = vpack.c.b16 %v1172, %v2678
        %v2695 = vpack.c.b16 %v2679, %v2679
        %v2696 = vpack.c.b16 %v1175, %v2680
        %v2697 = vpack.c.b16 %v2681, %v2681
        %v2698 = vpack.c.b16 %v1178, %v2682
        %v2699 = vpack.c.b16 %v2683, %v2683
        %2700 = vrot.lane.b32.xlu0 %v2684, 12
        %v2701 = vpop.permute.xlu0 %2700
        %2702 = vrot.lane.b32.xlu0 %v2685, 12
        %v2703 = vpop.permute.xlu0 %2702
        %2704 = vrot.lane.b32.xlu0 %v2686, 12
        %v2705 = vpop.permute.xlu0 %2704
        %2706 = vrot.lane.b32.xlu0 %v2687, 12
        %v2707 = vpop.permute.xlu0 %2706
        %2708 = vrot.lane.b32.xlu0 %v2688, 12
        %v2709 = vpop.permute.xlu0 %2708
        %2710 = vrot.lane.b32.xlu0 %v2689, 12
        %v2711 = vpop.permute.xlu0 %2710
        %2712 = vrot.lane.b32.xlu0 %v2690, 12
        %v2713 = vpop.permute.xlu0 %2712
        %2714 = vrot.lane.b32.xlu0 %v2691, 12
        %v2715 = vpop.permute.xlu0 %2714
        %2716 = vrot.lane.b32.xlu0 %v2692, 12
        %v2717 = vpop.permute.xlu0 %2716
        %2718 = vrot.lane.b32.xlu0 %v2693, 12
        %v2719 = vpop.permute.xlu0 %2718
        %2720 = vrot.lane.b32.xlu0 %v2694, 12
        %v2721 = vpop.permute.xlu0 %2720
        %2722 = vrot.lane.b32.xlu0 %v2695, 12
        %v2723 = vpop.permute.xlu0 %2722
        %2724 = vrot.lane.b32.xlu0 %v2696, 12
        %v2725 = vpop.permute.xlu0 %2724
        %2726 = vrot.lane.b32.xlu0 %v2697, 12
        %v2727 = vpop.permute.xlu0 %2726
        %2728 = vrot.lane.b32.xlu0 %v2698, 12
        %v2729 = vpop.permute.xlu0 %2728
        %2730 = vrot.lane.b32.xlu0 %v2699, 12
        %v2731 = vpop.permute.xlu0 %2730
        %v2732 = vrot.slane %v1252, 2
        %v2733 = vrot.slane %v1253, 2
        %v2734 = vsel %vm1891, %v2732, %v2733
        %v2735 = vrot.slane %v1254, 2
        %v2736 = vrot.slane %v1255, 2
        %v2737 = vsel %vm1891, %v2735, %v2736
        %v2738 = vrot.slane %v1256, 2
        %v2739 = vrot.slane %v1257, 2
        %v2740 = vsel %vm1891, %v2738, %v2739
        %v2741 = vrot.slane %v1258, 2
        %v2742 = vrot.slane %v1259, 2
        %v2743 = vsel %vm1891, %v2741, %v2742
        %v2744 = vrot.slane %v1260, 2
        %v2745 = vrot.slane %v1261, 2
        %v2746 = vsel %vm1891, %v2744, %v2745
        %v2747 = vrot.slane %v1262, 2
        %v2748 = vrot.slane %v1263, 2
        %v2749 = vsel %vm1891, %v2747, %v2748
        %v2750 = vrot.slane %v1264, 2
        %v2751 = vrot.slane %v1265, 2
        %v2752 = vsel %vm1891, %v2750, %v2751
        %v2753 = vrot.slane %v1266, 2
        %v2754 = vrot.slane %v1267, 2
        %v2755 = vsel %vm1891, %v2753, %v2754
        %2756 = vrot.lane.b32.xlu0 %v2734, 16
        %v2757 = vpop.permute.xlu0 %2756
        %2758 = vrot.lane.b32.xlu0 %v2733, 16
        %v2759 = vpop.permute.xlu0 %2758
        %2760 = vrot.lane.b32.xlu0 %v2737, 16
        %v2761 = vpop.permute.xlu0 %2760
        %2762 = vrot.lane.b32.xlu0 %v2736, 16
        %v2763 = vpop.permute.xlu0 %2762
        %2764 = vrot.lane.b32.xlu0 %v2740, 16
        %v2765 = vpop.permute.xlu0 %2764
        %2766 = vrot.lane.b32.xlu0 %v2739, 16
        %v2767 = vpop.permute.xlu0 %2766
        %2768 = vrot.lane.b32.xlu0 %v2743, 16
        %v2769 = vpop.permute.xlu0 %2768
        %2770 = vrot.lane.b32.xlu0 %v2742, 16
        %v2771 = vpop.permute.xlu0 %2770
        %2772 = vrot.lane.b32.xlu0 %v2746, 16
        %v2773 = vpop.permute.xlu0 %2772
        %2774 = vrot.lane.b32.xlu0 %v2745, 16
        %v2775 = vpop.permute.xlu0 %2774
        %2776 = vrot.lane.b32.xlu0 %v2749, 16
        %v2777 = vpop.permute.xlu0 %2776
        %2778 = vrot.lane.b32.xlu0 %v2748, 16
        %v2779 = vpop.permute.xlu0 %2778
        %2780 = vrot.lane.b32.xlu0 %v2752, 16
        %v2781 = vpop.permute.xlu0 %2780
        %2782 = vrot.lane.b32.xlu0 %v2751, 16
        %v2783 = vpop.permute.xlu0 %2782
        %2784 = vrot.lane.b32.xlu0 %v2755, 16
        %v2785 = vpop.permute.xlu0 %2784
        %2786 = vrot.lane.b32.xlu0 %v2754, 16
        %v2787 = vpop.permute.xlu0 %2786
        %v2812 = vunpack.c.l.b16 %v2296
        %v2813 = vunpack.c.l.b16 %v2297
        %v2814 = vunpack.c.l.b16 %v2298
        %v2815 = vunpack.c.l.b16 %v2299
        %v2816 = vunpack.c.l.b16 %v2300
        %v2817 = vunpack.c.l.b16 %v2301
        %v2818 = vunpack.c.l.b16 %v2302
        %v2819 = vunpack.c.l.b16 %v2303
        %v2820 = vunpack.c.l.b16 %v2304
        %v2821 = vunpack.c.l.b16 %v2305
        %v2822 = vunpack.c.l.b16 %v2306
        %v2823 = vunpack.c.l.b16 %v2307
        %v2824 = vunpack.c.l.b16 %v2308
        %v2825 = vunpack.c.l.b16 %v2309
        %v2826 = vunpack.c.l.b16 %v2310
        %v2827 = vunpack.c.l.b16 %v2311
        %v2828 = vunpack.c.l.b16 %v2312
        %v2829 = vunpack.c.l.b16 %v2313
        %v2830 = vunpack.c.l.b16 %v2314
        %v2831 = vunpack.c.l.b16 %v2315
        %v2832 = vunpack.c.l.b16 %v2316
        %v2833 = vunpack.c.l.b16 %v2317
        %v2834 = vunpack.c.l.b16 %v2318
        %v2835 = vunpack.c.l.b16 %v2319
        %v2836 = vpack.c.b16 %v2813, %v2812
        %v2837 = vpack.c.b16 %v2814, %v2814
        %v2838 = vpack.c.b16 %v2816, %v2815
        %v2839 = vpack.c.b16 %v2817, %v2817
        %v2840 = vpack.c.b16 %v2819, %v2818
        %v2841 = vpack.c.b16 %v2820, %v2820
        %v2842 = vpack.c.b16 %v2822, %v2821
        %v2843 = vpack.c.b16 %v2823, %v2823
        %v2844 = vpack.c.b16 %v2825, %v2824
        %v2845 = vpack.c.b16 %v2826, %v2826
        %v2846 = vpack.c.b16 %v2828, %v2827
        %v2847 = vpack.c.b16 %v2829, %v2829
        %v2848 = vpack.c.b16 %v2831, %v2830
        %v2849 = vpack.c.b16 %v2832, %v2832
        %v2850 = vpack.c.b16 %v2834, %v2833
        %v2851 = vpack.c.b16 %v2835, %v2835
        %2852 = vrot.lane.b32.xlu0 %v2836, 20
        %v2853 = vpop.permute.xlu0 %2852
        %2854 = vrot.lane.b32.xlu0 %v2837, 20
        %v2855 = vpop.permute.xlu0 %2854
        %2856 = vrot.lane.b32.xlu0 %v2838, 20
        %v2857 = vpop.permute.xlu0 %2856
        %2858 = vrot.lane.b32.xlu0 %v2839, 20
        %v2859 = vpop.permute.xlu0 %2858
        %2860 = vrot.lane.b32.xlu0 %v2840, 20
        %v2861 = vpop.permute.xlu0 %2860
        %2862 = vrot.lane.b32.xlu0 %v2841, 20
        %v2863 = vpop.permute.xlu0 %2862
        %2864 = vrot.lane.b32.xlu0 %v2842, 20
        %v2865 = vpop.permute.xlu0 %2864
        %2866 = vrot.lane.b32.xlu0 %v2843, 20
        %v2867 = vpop.permute.xlu0 %2866
        %2868 = vrot.lane.b32.xlu0 %v2844, 20
        %v2869 = vpop.permute.xlu0 %2868
        %2870 = vrot.lane.b32.xlu0 %v2845, 20
        %v2871 = vpop.permute.xlu0 %2870
        %2872 = vrot.lane.b32.xlu0 %v2846, 20
        %v2873 = vpop.permute.xlu0 %2872
        %2874 = vrot.lane.b32.xlu0 %v2847, 20
        %v2875 = vpop.permute.xlu0 %2874
        %2876 = vrot.lane.b32.xlu0 %v2848, 20
        %v2877 = vpop.permute.xlu0 %2876
        %2878 = vrot.lane.b32.xlu0 %v2849, 20
        %v2879 = vpop.permute.xlu0 %2878
        %2880 = vrot.lane.b32.xlu0 %v2850, 20
        %v2881 = vpop.permute.xlu0 %2880
        %2882 = vrot.lane.b32.xlu0 %v2851, 20
        %v2883 = vpop.permute.xlu0 %2882
        %v2908 = vunpack.c.l.b16 %v2324
        %v2909 = vunpack.c.l.b16 %v2325
        %v2910 = vunpack.c.l.b16 %v2326
        %v2911 = vunpack.c.l.b16 %v2327
        %v2912 = vunpack.c.l.b16 %v2328
        %v2913 = vunpack.c.l.b16 %v2329
        %v2914 = vunpack.c.l.b16 %v2330
        %v2915 = vunpack.c.l.b16 %v2331
        %v2916 = vunpack.c.l.b16 %v2332
        %v2917 = vunpack.c.l.b16 %v2333
        %v2918 = vunpack.c.l.b16 %v2334
        %v2919 = vunpack.c.l.b16 %v2335
        %v2920 = vunpack.c.l.b16 %v2336
        %v2921 = vunpack.c.l.b16 %v2337
        %v2922 = vunpack.c.l.b16 %v2338
        %v2923 = vunpack.c.l.b16 %v2339
        %v2924 = vunpack.c.l.b16 %v2340
        %v2925 = vunpack.c.l.b16 %v2341
        %v2926 = vunpack.c.l.b16 %v2342
        %v2927 = vunpack.c.l.b16 %v2343
        %v2928 = vunpack.c.l.b16 %v2344
        %v2929 = vunpack.c.l.b16 %v2345
        %v2930 = vunpack.c.l.b16 %v2346
        %v2931 = vunpack.c.l.b16 %v2347
        %v2932 = vpack.c.b16 %v2909, %v2908
        %v2933 = vpack.c.b16 %v2910, %v2910
        %v2934 = vpack.c.b16 %v2912, %v2911
        %v2935 = vpack.c.b16 %v2913, %v2913
        %v2936 = vpack.c.b16 %v2915, %v2914
        %v2937 = vpack.c.b16 %v2916, %v2916
        %v2938 = vpack.c.b16 %v2918, %v2917
        %v2939 = vpack.c.b16 %v2919, %v2919
        %v2940 = vpack.c.b16 %v2921, %v2920
        %v2941 = vpack.c.b16 %v2922, %v2922
        %v2942 = vpack.c.b16 %v2924, %v2923
        %v2943 = vpack.c.b16 %v2925, %v2925
        %v2944 = vpack.c.b16 %v2927, %v2926
        %v2945 = vpack.c.b16 %v2928, %v2928
        %v2946 = vpack.c.b16 %v2930, %v2929
        %v2947 = vpack.c.b16 %v2931, %v2931
        %2948 = vrot.lane.b32.xlu0 %v2932, 24
        %v2949 = vpop.permute.xlu0 %2948
        %2950 = vrot.lane.b32.xlu0 %v2933, 24
        %v2951 = vpop.permute.xlu0 %2950
        %2952 = vrot.lane.b32.xlu0 %v2934, 24
        %v2953 = vpop.permute.xlu0 %2952
        %2954 = vrot.lane.b32.xlu0 %v2935, 24
        %v2955 = vpop.permute.xlu0 %2954
        %2956 = vrot.lane.b32.xlu0 %v2936, 24
        %v2957 = vpop.permute.xlu0 %2956
        %2958 = vrot.lane.b32.xlu0 %v2937, 24
        %v2959 = vpop.permute.xlu0 %2958
        %2960 = vrot.lane.b32.xlu0 %v2938, 24
        %v2961 = vpop.permute.xlu0 %2960
        %2962 = vrot.lane.b32.xlu0 %v2939, 24
        %v2963 = vpop.permute.xlu0 %2962
        %2964 = vrot.lane.b32.xlu0 %v2940, 24
        %v2965 = vpop.permute.xlu0 %2964
        %2966 = vrot.lane.b32.xlu0 %v2941, 24
        %v2967 = vpop.permute.xlu0 %2966
        %2968 = vrot.lane.b32.xlu0 %v2942, 24
        %v2969 = vpop.permute.xlu0 %2968
        %2970 = vrot.lane.b32.xlu0 %v2943, 24
        %v2971 = vpop.permute.xlu0 %2970
        %2972 = vrot.lane.b32.xlu0 %v2944, 24
        %v2973 = vpop.permute.xlu0 %2972
        %2974 = vrot.lane.b32.xlu0 %v2945, 24
        %v2975 = vpop.permute.xlu0 %2974
        %2976 = vrot.lane.b32.xlu0 %v2946, 24
        %v2977 = vpop.permute.xlu0 %2976
        %2978 = vrot.lane.b32.xlu0 %v2947, 24
        %v2979 = vpop.permute.xlu0 %2978
        %v2996 = vunpack.c.l.b16 %v2348
        %v2997 = vunpack.c.l.b16 %v2349
        %v2998 = vunpack.c.l.b16 %v2350
        %v2999 = vunpack.c.l.b16 %v2351
        %v3000 = vunpack.c.l.b16 %v2352
        %v3001 = vunpack.c.l.b16 %v2353
        %v3002 = vunpack.c.l.b16 %v2354
        %v3003 = vunpack.c.l.b16 %v2355
        %v3004 = vunpack.c.l.b16 %v2356
        %v3005 = vunpack.c.l.b16 %v2357
        %v3006 = vunpack.c.l.b16 %v2358
        %v3007 = vunpack.c.l.b16 %v2359
        %v3008 = vunpack.c.l.b16 %v2360
        %v3009 = vunpack.c.l.b16 %v2361
        %v3010 = vunpack.c.l.b16 %v2362
        %v3011 = vunpack.c.l.b16 %v2363
        %v3012 = vpack.c.b16 %v2909, %v2996
        %v3013 = vpack.c.b16 %v2997, %v2997
        %v3014 = vpack.c.b16 %v2912, %v2998
        %v3015 = vpack.c.b16 %v2999, %v2999
        %v3016 = vpack.c.b16 %v2915, %v3000
        %v3017 = vpack.c.b16 %v3001, %v3001
        %v3018 = vpack.c.b16 %v2918, %v3002
        %v3019 = vpack.c.b16 %v3003, %v3003
        %v3020 = vpack.c.b16 %v2921, %v3004
        %v3021 = vpack.c.b16 %v3005, %v3005
        %v3022 = vpack.c.b16 %v2924, %v3006
        %v3023 = vpack.c.b16 %v3007, %v3007
        %v3024 = vpack.c.b16 %v2927, %v3008
        %v3025 = vpack.c.b16 %v3009, %v3009
        %v3026 = vpack.c.b16 %v2930, %v3010
        %v3027 = vpack.c.b16 %v3011, %v3011
        %v3028 = vrot.slane %v3012, 2
        %v3029 = vrot.slane %v3013, 2
        %v3030 = vsel %vm1891, %v3028, %v3029
        %v3031 = vrot.slane %v3014, 2
        %v3032 = vrot.slane %v3015, 2
        %v3033 = vsel %vm1891, %v3031, %v3032
        %v3034 = vrot.slane %v3016, 2
        %v3035 = vrot.slane %v3017, 2
        %v3036 = vsel %vm1891, %v3034, %v3035
        %v3037 = vrot.slane %v3018, 2
        %v3038 = vrot.slane %v3019, 2
        %v3039 = vsel %vm1891, %v3037, %v3038
        %v3040 = vrot.slane %v3020, 2
        %v3041 = vrot.slane %v3021, 2
        %v3042 = vsel %vm1891, %v3040, %v3041
        %v3043 = vrot.slane %v3022, 2
        %v3044 = vrot.slane %v3023, 2
        %v3045 = vsel %vm1891, %v3043, %v3044
        %v3046 = vrot.slane %v3024, 2
        %v3047 = vrot.slane %v3025, 2
        %v3048 = vsel %vm1891, %v3046, %v3047
        %v3049 = vrot.slane %v3026, 2
        %v3050 = vrot.slane %v3027, 2
        %v3051 = vsel %vm1891, %v3049, %v3050
        %3052 = vrot.lane.b32.xlu0 %v3030, 28
        %v3053 = vpop.permute.xlu0 %3052
        %3054 = vrot.lane.b32.xlu0 %v3029, 28
        %v3055 = vpop.permute.xlu0 %3054
        %3056 = vrot.lane.b32.xlu0 %v3033, 28
        %v3057 = vpop.permute.xlu0 %3056
        %3058 = vrot.lane.b32.xlu0 %v3032, 28
        %v3059 = vpop.permute.xlu0 %3058
        %3060 = vrot.lane.b32.xlu0 %v3036, 28
        %v3061 = vpop.permute.xlu0 %3060
        %3062 = vrot.lane.b32.xlu0 %v3035, 28
        %v3063 = vpop.permute.xlu0 %3062
        %3064 = vrot.lane.b32.xlu0 %v3039, 28
        %v3065 = vpop.permute.xlu0 %3064
        %3066 = vrot.lane.b32.xlu0 %v3038, 28
        %v3067 = vpop.permute.xlu0 %3066
        %3068 = vrot.lane.b32.xlu0 %v3042, 28
        %v3069 = vpop.permute.xlu0 %3068
        %3070 = vrot.lane.b32.xlu0 %v3041, 28
        %v3071 = vpop.permute.xlu0 %3070
        %3072 = vrot.lane.b32.xlu0 %v3045, 28
        %v3073 = vpop.permute.xlu0 %3072
        %3074 = vrot.lane.b32.xlu0 %v3044, 28
        %v3075 = vpop.permute.xlu0 %3074
        %3076 = vrot.lane.b32.xlu0 %v3048, 28
        %v3077 = vpop.permute.xlu0 %3076
        %3078 = vrot.lane.b32.xlu0 %v3047, 28
        %v3079 = vpop.permute.xlu0 %3078
        %3080 = vrot.lane.b32.xlu0 %v3051, 28
        %v3081 = vpop.permute.xlu0 %3080
        %3082 = vrot.lane.b32.xlu0 %v3050, 28
        %v3083 = vpop.permute.xlu0 %3082
        %v3108 = vunpack.c.l.b16 %v2364
        %v3109 = vunpack.c.l.b16 %v2365
        %v3110 = vunpack.c.l.b16 %v2366
        %v3111 = vunpack.c.l.b16 %v2367
        %v3112 = vunpack.c.l.b16 %v2368
        %v3113 = vunpack.c.l.b16 %v2369
        %v3114 = vunpack.c.l.b16 %v2370
        %v3115 = vunpack.c.l.b16 %v2371
        %v3116 = vunpack.c.l.b16 %v2372
        %v3117 = vunpack.c.l.b16 %v2373
        %v3118 = vunpack.c.l.b16 %v2374
        %v3119 = vunpack.c.l.b16 %v2375
        %v3120 = vunpack.c.l.b16 %v2376
        %v3121 = vunpack.c.l.b16 %v2377
        %v3122 = vunpack.c.l.b16 %v2378
        %v3123 = vunpack.c.l.b16 %v2379
        %v3124 = vunpack.c.l.b16 %v2380
        %v3125 = vunpack.c.l.b16 %v2381
        %v3126 = vunpack.c.l.b16 %v2382
        %v3127 = vunpack.c.l.b16 %v2383
        %v3128 = vunpack.c.l.b16 %v2384
        %v3129 = vunpack.c.l.b16 %v2385
        %v3130 = vunpack.c.l.b16 %v2386
        %v3131 = vunpack.c.l.b16 %v2387
        %v3132 = vpack.c.b16 %v3109, %v3108
        %v3133 = vpack.c.b16 %v3110, %v3110
        %v3134 = vpack.c.b16 %v3112, %v3111
        %v3135 = vpack.c.b16 %v3113, %v3113
        %v3136 = vpack.c.b16 %v3115, %v3114
        %v3137 = vpack.c.b16 %v3116, %v3116
        %v3138 = vpack.c.b16 %v3118, %v3117
        %v3139 = vpack.c.b16 %v3119, %v3119
        %v3140 = vpack.c.b16 %v3121, %v3120
        %v3141 = vpack.c.b16 %v3122, %v3122
        %v3142 = vpack.c.b16 %v3124, %v3123
        %v3143 = vpack.c.b16 %v3125, %v3125
        %v3144 = vpack.c.b16 %v3127, %v3126
        %v3145 = vpack.c.b16 %v3128, %v3128
        %v3146 = vpack.c.b16 %v3130, %v3129
        %v3147 = vpack.c.b16 %v3131, %v3131
        %3148 = vrot.lane.b32.xlu0 %v3132, 32
        %v3149 = vpop.permute.xlu0 %3148
        %3150 = vrot.lane.b32.xlu0 %v3133, 32
        %v3151 = vpop.permute.xlu0 %3150
        %3152 = vrot.lane.b32.xlu0 %v3134, 32
        %v3153 = vpop.permute.xlu0 %3152
        %3154 = vrot.lane.b32.xlu0 %v3135, 32
        %v3155 = vpop.permute.xlu0 %3154
        %3156 = vrot.lane.b32.xlu0 %v3136, 32
        %v3157 = vpop.permute.xlu0 %3156
        %3158 = vrot.lane.b32.xlu0 %v3137, 32
        %v3159 = vpop.permute.xlu0 %3158
        %3160 = vrot.lane.b32.xlu0 %v3138, 32
        %v3161 = vpop.permute.xlu0 %3160
        %3162 = vrot.lane.b32.xlu0 %v3139, 32
        %v3163 = vpop.permute.xlu0 %3162
        %3164 = vrot.lane.b32.xlu0 %v3140, 32
        %v3165 = vpop.permute.xlu0 %3164
        %3166 = vrot.lane.b32.xlu0 %v3141, 32
        %v3167 = vpop.permute.xlu0 %3166
        %3168 = vrot.lane.b32.xlu0 %v3142, 32
        %v3169 = vpop.permute.xlu0 %3168
        %3170 = vrot.lane.b32.xlu0 %v3143, 32
        %v3171 = vpop.permute.xlu0 %3170
        %3172 = vrot.lane.b32.xlu0 %v3144, 32
        %v3173 = vpop.permute.xlu0 %3172
        %3174 = vrot.lane.b32.xlu0 %v3145, 32
        %v3175 = vpop.permute.xlu0 %3174
        %3176 = vrot.lane.b32.xlu0 %v3146, 32
        %v3177 = vpop.permute.xlu0 %3176
        %3178 = vrot.lane.b32.xlu0 %v3147, 32
        %v3179 = vpop.permute.xlu0 %3178
        %v3182 = vsel %vm514, %v2436, %v2525
        %v3185 = vsel %vm514, %v2437, %v2527
        %v3188 = vsel %vm514, %v2438, %v2529
        %v3191 = vsel %vm514, %v2439, %v2531
        %v3194 = vsel %vm514, %v2440, %v2533
        %v3197 = vsel %vm514, %v2441, %v2535
        %v3200 = vsel %vm514, %v2442, %v2537
        %v3203 = vsel %vm514, %v2443, %v2539
        %v3206 = vsel %vm514, %v2444, %v2541
        %v3209 = vsel %vm514, %v2445, %v2543
        %v3212 = vsel %vm514, %v2446, %v2545
        %v3215 = vsel %vm514, %v2447, %v2547
        %v3218 = vsel %vm514, %v2448, %v2549
        %v3221 = vsel %vm514, %v2449, %v2551
        %v3224 = vsel %vm514, %v2450, %v2553
        %v3227 = vsel %vm514, %v2451, %v2555
        %v3229 = vsel %vm1668, %v3182, %v2621
        %v3231 = vsel %vm1668, %v3185, %v2623
        %v3233 = vsel %vm1668, %v3188, %v2625
        %v3235 = vsel %vm1668, %v3191, %v2627
        %v3237 = vsel %vm1668, %v3194, %v2629
        %v3239 = vsel %vm1668, %v3197, %v2631
        %v3241 = vsel %vm1668, %v3200, %v2633
        %v3243 = vsel %vm1668, %v3203, %v2635
        %v3245 = vsel %vm1668, %v3206, %v2637
        %v3247 = vsel %vm1668, %v3209, %v2639
        %v3249 = vsel %vm1668, %v3212, %v2641
        %v3251 = vsel %vm1668, %v3215, %v2643
        %v3253 = vsel %vm1668, %v3218, %v2645
        %v3255 = vsel %vm1668, %v3221, %v2647
        %v3257 = vsel %vm1668, %v3224, %v2649
        %v3259 = vsel %vm1668, %v3227, %v2651
        %v3261 = vsel %vm1693, %v3229, %v2701
        %v3263 = vsel %vm1693, %v3231, %v2703
        %v3265 = vsel %vm1693, %v3233, %v2705
        %v3267 = vsel %vm1693, %v3235, %v2707
        %v3269 = vsel %vm1693, %v3237, %v2709
        %v3271 = vsel %vm1693, %v3239, %v2711
        %v3273 = vsel %vm1693, %v3241, %v2713
        %v3275 = vsel %vm1693, %v3243, %v2715
        %v3277 = vsel %vm1693, %v3245, %v2717
        %v3279 = vsel %vm1693, %v3247, %v2719
        %v3281 = vsel %vm1693, %v3249, %v2721
        %v3283 = vsel %vm1693, %v3251, %v2723
        %v3285 = vsel %vm1693, %v3253, %v2725
        %v3287 = vsel %vm1693, %v3255, %v2727
        %v3289 = vsel %vm1693, %v3257, %v2729
        %v3291 = vsel %vm1693, %v3259, %v2731
        %v3293 = vsel %vm1726, %v3261, %v2757
        %v3295 = vsel %vm1726, %v3263, %v2759
        %v3297 = vsel %vm1726, %v3265, %v2761
        %v3299 = vsel %vm1726, %v3267, %v2763
        %v3301 = vsel %vm1726, %v3269, %v2765
        %v3303 = vsel %vm1726, %v3271, %v2767
        %v3305 = vsel %vm1726, %v3273, %v2769
        %v3307 = vsel %vm1726, %v3275, %v2771
        %v3309 = vsel %vm1726, %v3277, %v2773
        %v3311 = vsel %vm1726, %v3279, %v2775
        %v3313 = vsel %vm1726, %v3281, %v2777
        %v3315 = vsel %vm1726, %v3283, %v2779
        %v3317 = vsel %vm1726, %v3285, %v2781
        %v3319 = vsel %vm1726, %v3287, %v2783
        %v3321 = vsel %vm1726, %v3289, %v2785
        %v3323 = vsel %vm1726, %v3291, %v2787
        %v3325 = vsel %vm1759, %v3293, %v2853
        %v3327 = vsel %vm1759, %v3295, %v2855
        %v3329 = vsel %vm1759, %v3297, %v2857
        %v3331 = vsel %vm1759, %v3299, %v2859
        %v3333 = vsel %vm1759, %v3301, %v2861
        %v3335 = vsel %vm1759, %v3303, %v2863
        %v3337 = vsel %vm1759, %v3305, %v2865
        %v3339 = vsel %vm1759, %v3307, %v2867
        %v3341 = vsel %vm1759, %v3309, %v2869
        %v3343 = vsel %vm1759, %v3311, %v2871
        %v3345 = vsel %vm1759, %v3313, %v2873
        %v3347 = vsel %vm1759, %v3315, %v2875
        %v3349 = vsel %vm1759, %v3317, %v2877
        %v3351 = vsel %vm1759, %v3319, %v2879
        %v3353 = vsel %vm1759, %v3321, %v2881
        %v3355 = vsel %vm1759, %v3323, %v2883
        %v3357 = vsel %vm1784, %v3325, %v2949
        %v3359 = vsel %vm1784, %v3327, %v2951
        %v3361 = vsel %vm1784, %v3329, %v2953
        %v3363 = vsel %vm1784, %v3331, %v2955
        %v3365 = vsel %vm1784, %v3333, %v2957
        %v3367 = vsel %vm1784, %v3335, %v2959
        %v3369 = vsel %vm1784, %v3337, %v2961
        %v3371 = vsel %vm1784, %v3339, %v2963
        %v3373 = vsel %vm1784, %v3341, %v2965
        %v3375 = vsel %vm1784, %v3343, %v2967
        %v3377 = vsel %vm1784, %v3345, %v2969
        %v3379 = vsel %vm1784, %v3347, %v2971
        %v3381 = vsel %vm1784, %v3349, %v2973
        %v3383 = vsel %vm1784, %v3351, %v2975
        %v3385 = vsel %vm1784, %v3353, %v2977
        %v3387 = vsel %vm1784, %v3355, %v2979
        %v3389 = vsel %vm1817, %v3357, %v3053
        %v3391 = vsel %vm1817, %v3359, %v3055
        %v3393 = vsel %vm1817, %v3361, %v3057
        %v3395 = vsel %vm1817, %v3363, %v3059
        %v3397 = vsel %vm1817, %v3365, %v3061
        %v3399 = vsel %vm1817, %v3367, %v3063
        %v3401 = vsel %vm1817, %v3369, %v3065
        %v3403 = vsel %vm1817, %v3371, %v3067
        %v3405 = vsel %vm1817, %v3373, %v3069
        %v3407 = vsel %vm1817, %v3375, %v3071
        %v3409 = vsel %vm1817, %v3377, %v3073
        %v3411 = vsel %vm1817, %v3379, %v3075
        %v3413 = vsel %vm1817, %v3381, %v3077
        %v3415 = vsel %vm1817, %v3383, %v3079
        %v3417 = vsel %vm1817, %v3385, %v3081
        %v3419 = vsel %vm1817, %v3387, %v3083
        %v3421 = vsel %vm1850, %v3389, %v3149
        %v3423 = vsel %vm1850, %v3391, %v3151
        %v3425 = vsel %vm1850, %v3393, %v3153
        %v3427 = vsel %vm1850, %v3395, %v3155
        %v3429 = vsel %vm1850, %v3397, %v3157
        %v3431 = vsel %vm1850, %v3399, %v3159
        %v3433 = vsel %vm1850, %v3401, %v3161
        %v3435 = vsel %vm1850, %v3403, %v3163
        %v3437 = vsel %vm1850, %v3405, %v3165
        %v3439 = vsel %vm1850, %v3407, %v3167
        %v3441 = vsel %vm1850, %v3409, %v3169
        %v3443 = vsel %vm1850, %v3411, %v3171
        %v3445 = vsel %vm1850, %v3413, %v3173
        %v3447 = vsel %vm1850, %v3415, %v3175
        %v3449 = vsel %vm1850, %v3417, %v3177
        %v3451 = vsel %vm1850, %v3419, %v3179
        %v3468 = vrot.slane %v3421, 1
        %v3469 = vrot.slane %v3423, 1
        %v3470 = vsel %vm1027, %v3468, %v3469
        %v3471 = vrot.slane %v3425, 1
        %v3472 = vrot.slane %v3427, 1
        %v3473 = vsel %vm1027, %v3471, %v3472
        %v3474 = vrot.slane %v3429, 1
        %v3475 = vrot.slane %v3431, 1
        %v3476 = vsel %vm1027, %v3474, %v3475
        %v3477 = vrot.slane %v3433, 1
        %v3478 = vrot.slane %v3435, 1
        %v3479 = vsel %vm1027, %v3477, %v3478
        %v3480 = vrot.slane %v3437, 1
        %v3481 = vrot.slane %v3439, 1
        %v3482 = vsel %vm1027, %v3480, %v3481
        %v3483 = vrot.slane %v3441, 1
        %v3484 = vrot.slane %v3443, 1
        %v3485 = vsel %vm1027, %v3483, %v3484
        %v3486 = vrot.slane %v3445, 1
        %v3487 = vrot.slane %v3447, 1
        %v3488 = vsel %vm1027, %v3486, %v3487
        %v3489 = vrot.slane %v3449, 1
        %v3490 = vrot.slane %v3451, 1
        %v3491 = vsel %vm1027, %v3489, %v3490
        %s3492 = scalar_lea.vmem %s2, 40
        %v3493 = vld [vmem:[%s3492] sm:$0xff]
        %v3494 = vld [vmem:[%s3492 + $0x8] sm:$0xff]
        %v3495 = vld [vmem:[%s3492 + $0x10] sm:$0xff]
        %v3496 = vld [vmem:[%s3492 + $0x18] sm:$0xff]
        %v3497 = vld [vmem:[%s3492 + $0x20] sm:$0x33]
        %v3503 = vunpack.c.l.b16 %v3493
        %v3504 = vunpack.c.h.b16 %v3493
        %v3505 = vunpack.c.l.b16 %v3494
        %v3506 = vunpack.c.h.b16 %v3494
        %v3507 = vunpack.c.l.b16 %v3495
        %v3508 = vunpack.c.h.b16 %v3495
        %v3509 = vunpack.c.l.b16 %v3496
        %v3510 = vunpack.c.h.b16 %v3496
        %v3511 = vunpack.c.l.b16 %v3497
        %v3512 = vunpack.c.h.b16 %v3497
        %v3513 = vpack.c.b16 %v3505, %v3503
        %v3514 = vpack.c.b16 %v3506, %v3504
        %v3515 = vpack.c.b16 %v3509, %v3507
        %v3516 = vpack.c.b16 %v3510, %v3508
        %v3517 = vpack.c.b16 %v3511, %v3511
        %v3518 = vpack.c.b16 %v3512, %v3512
        %v3524 = vsel %vm1946, %v3470, 0
        %v3527 = vsel %vm1946, %v3473, 0
        %v3530 = vsel %vm1946, %v3476, 0
        %v3533 = vsel %vm1946, %v3479, 0
        %v3536 = vsel %vm1946, %v3482, 0
        %v3539 = vsel %vm1946, %v3485, 0
        %v3542 = vsel %vm1946, %v3488, 0
        %v3545 = vsel %vm1946, %v3491, 0
        %v3548 = vsel %vm539, %v3517, 0
        %v3551 = vsel %vm539, %v3518, 0
        %3553 = vmatprep.subr.bf16.mxu0 0
        %3554 = vmatpush1.bf16.msra.mxu0 0
        %3555 = vmatprep.subr.bf16.mxu0 0
        %3556 = vmatpush1.bf16.msra.mxu0 0
        %3557 = vmatprep.subr.bf16.mxu0 0
        %3558 = vmatpush1.bf16.msra.mxu0 0
        %3559 = vmatprep.subr.bf16.mxu0 0
        %3560 = vmatpush1.bf16.msra.mxu0 0
        %3561 = vmatprep.subr.bf16.mxu0 0
        %3562 = vmatpush1.bf16.msra.mxu0 0
        %3563 = vmatprep.subr.bf16.mxu0 %v3551
        %3564 = vmatpush1.bf16.msra.mxu0 %v3548
        %3565 = vmatprep.subr.bf16.mxu0 %v3516
        %3566 = vmatpush1.bf16.msra.mxu0 %v3515
        %3567 = vmatprep.subr.bf16.mxu0 %v3514
        %3568 = vmatpush1.bf16.msra.mxu0 %v3513
        %3569 = vmatprep.subr.bf16.mxu0 0
        %3570 = vmatpush2.bf16.msra.mxu0 0
        %3571 = vmatprep.subr.bf16.mxu0 0
        %3572 = vmatpush2.bf16.msra.mxu0 0
        %3573 = vmatprep.subr.bf16.mxu0 0
        %3574 = vmatpush2.bf16.msra.mxu0 0
        %3575 = vmatprep.subr.bf16.mxu0 0
        %3576 = vmatpush2.bf16.msra.mxu0 0
        %3577 = vmatprep.subr.bf16.mxu0 0
        %3578 = vmatpush2.bf16.msra.mxu0 0
        %3579 = vmatprep.subr.bf16.mxu0 0
        %3580 = vmatpush2.bf16.msra.mxu0 0
        %3581 = vmatprep.subr.bf16.mxu0 0
        %3582 = vmatpush2.bf16.msra.mxu0 0
        %3583 = vmatprep.subr.bf16.mxu0 0
        %3584 = vmatpush2.bf16.msra.mxu0 0
        %3585 = vmatprep.mubr.bf16.mxu0 0
        %3586 = vmatmul.mubr.bf16.gmra.mxu0 %v3524
        %v3587 = vpop.f32.mrf.mxu0
        %v3588 = vadd.f32 0.0, %v3587
        %v3589 = vpop.f32.mrf.mxu0
        %v3590 = vadd.f32 0.0, %v3589
        %v3591 = vpop.f32.mrf.mxu0
        %v3592 = vadd.f32 0.0, %v3591
        %v3593 = vpop.f32.mrf.mxu0
        %v3594 = vadd.f32 0.0, %v3593
        %3595 = vmatprep.mubr.bf16.mxu0 0
        %3596 = vmatmul.mubr.bf16.gmra.mxu0 %v3527
        %v3597 = vpop.f32.mrf.mxu0
        %v3598 = vadd.f32 0.0, %v3597
        %v3599 = vpop.f32.mrf.mxu0
        %v3600 = vadd.f32 0.0, %v3599
        %v3601 = vpop.f32.mrf.mxu0
        %v3602 = vadd.f32 0.0, %v3601
        %v3603 = vpop.f32.mrf.mxu0
        %v3604 = vadd.f32 0.0, %v3603
        %3605 = vmatprep.mubr.bf16.mxu0 0
        %3606 = vmatmul.mubr.bf16.gmra.mxu0 %v3530
        %v3607 = vpop.f32.mrf.mxu0
        %v3608 = vadd.f32 0.0, %v3607
        %v3609 = vpop.f32.mrf.mxu0
        %v3610 = vadd.f32 0.0, %v3609
        %v3611 = vpop.f32.mrf.mxu0
        %v3612 = vadd.f32 0.0, %v3611
        %v3613 = vpop.f32.mrf.mxu0
        %v3614 = vadd.f32 0.0, %v3613
        %3615 = vmatprep.mubr.bf16.mxu0 0
        %3616 = vmatmul.mubr.bf16.gmra.mxu0 %v3533
        %v3617 = vpop.f32.mrf.mxu0
        %v3618 = vadd.f32 0.0, %v3617
        %v3619 = vpop.f32.mrf.mxu0
        %v3620 = vadd.f32 0.0, %v3619
        %v3621 = vpop.f32.mrf.mxu0
        %v3622 = vadd.f32 0.0, %v3621
        %v3623 = vpop.f32.mrf.mxu0
        %v3624 = vadd.f32 0.0, %v3623
        %3625 = vmatprep.mubr.bf16.mxu0 0
        %3626 = vmatmul.mubr.bf16.gmra.mxu0 %v3536
        %v3627 = vpop.f32.mrf.mxu0
        %v3628 = vadd.f32 0.0, %v3627
        %v3629 = vpop.f32.mrf.mxu0
        %v3630 = vadd.f32 0.0, %v3629
        %v3631 = vpop.f32.mrf.mxu0
        %v3632 = vadd.f32 0.0, %v3631
        %v3633 = vpop.f32.mrf.mxu0
        %v3634 = vadd.f32 0.0, %v3633
        %3635 = vmatprep.mubr.bf16.mxu0 0
        %3636 = vmatmul.mubr.bf16.gmra.mxu0 %v3539
        %v3637 = vpop.f32.mrf.mxu0
        %v3638 = vadd.f32 0.0, %v3637
        %v3639 = vpop.f32.mrf.mxu0
        %v3640 = vadd.f32 0.0, %v3639
        %v3641 = vpop.f32.mrf.mxu0
        %v3642 = vadd.f32 0.0, %v3641
        %v3643 = vpop.f32.mrf.mxu0
        %v3644 = vadd.f32 0.0, %v3643
        %3645 = vmatprep.mubr.bf16.mxu0 0
        %3646 = vmatmul.mubr.bf16.gmra.mxu0 %v3542
        %v3647 = vpop.f32.mrf.mxu0
        %v3648 = vadd.f32 0.0, %v3647
        %v3649 = vpop.f32.mrf.mxu0
        %v3650 = vadd.f32 0.0, %v3649
        %v3651 = vpop.f32.mrf.mxu0
        %v3652 = vadd.f32 0.0, %v3651
        %v3653 = vpop.f32.mrf.mxu0
        %v3654 = vadd.f32 0.0, %v3653
        %3655 = vmatprep.mubr.bf16.mxu0 0
        %3656 = vmatmul.mubr.bf16.gmra.mxu0 %v3545
        %v3657 = vpop.f32.mrf.mxu0
        %v3658 = vadd.f32 0.0, %v3657
        %v3659 = vpop.f32.mrf.mxu0
        %v3660 = vadd.f32 0.0, %v3659
        %v3661 = vpop.f32.mrf.mxu0
        %v3662 = vadd.f32 0.0, %v3661
        %v3663 = vpop.f32.mrf.mxu0
        %v3664 = vadd.f32 0.0, %v3663
        %3665 = vdwg.mxu0
        %s3666 = scalar_lea.vmem %s4, 2
        %v3667 = vld [vmem:[%s3666] ss:$4 sm:$0x3]
        %v3669 = vlaneseq
        %v3670 = vshrl.u32 %v3669, 7
        %v3671 = vsub.s32 0, %v3670
        %v3672 = vrot.slane %v3667, %v3671
        %v3673 = vlaneseq
        %v3674 = vshrl.u32 %v3673, 7
        %v3675 = vsub.s32 1, %v3674
        %v3676 = vrot.slane %v3667, %v3675
        %v3679 = vmul.f32 %v3588, %v3672
        %v3680 = vmul.f32 %v3590, %v3676
        %v3681 = vmul.f32 %v3592, %v3672
        %v3682 = vmul.f32 %v3594, %v3676
        %v3683 = vmul.f32 %v3598, %v3672
        %v3684 = vmul.f32 %v3600, %v3676
        %v3685 = vmul.f32 %v3602, %v3672
        %v3686 = vmul.f32 %v3604, %v3676
        %v3687 = vmul.f32 %v3608, %v3672
        %v3688 = vmul.f32 %v3610, %v3676
        %v3689 = vmul.f32 %v3612, %v3672
        %v3690 = vmul.f32 %v3614, %v3676
        %v3691 = vmul.f32 %v3618, %v3672
        %v3692 = vmul.f32 %v3620, %v3676
        %v3693 = vmul.f32 %v3622, %v3672
        %v3694 = vmul.f32 %v3624, %v3676
        %v3695 = vmul.f32 %v3628, %v3672
        %v3696 = vmul.f32 %v3630, %v3676
        %v3697 = vmul.f32 %v3632, %v3672
        %v3698 = vmul.f32 %v3634, %v3676
        %v3699 = vmul.f32 %v3638, %v3672
        %v3700 = vmul.f32 %v3640, %v3676
        %v3701 = vmul.f32 %v3642, %v3672
        %v3702 = vmul.f32 %v3644, %v3676
        %v3703 = vmul.f32 %v3648, %v3672
        %v3704 = vmul.f32 %v3650, %v3676
        %v3705 = vmul.f32 %v3652, %v3672
        %v3706 = vmul.f32 %v3654, %v3676
        %v3707 = vmul.f32 %v3658, %v3672
        %v3708 = vmul.f32 %v3660, %v3676
        %v3709 = vmul.f32 %v3662, %v3672
        %v3710 = vmul.f32 %v3664, %v3676
        %s3711 = scalar_lea.vmem %s5, 2
        %v3712 = vld [vmem:[%s3711] ss:$4 sm:$0x3]
        %v3714 = vlaneseq
        %v3715 = vshrl.u32 %v3714, 7
        %v3716 = vsub.s32 0, %v3715
        %v3717 = vrot.slane %v3712, %v3716
        %v3718 = vlaneseq
        %v3719 = vshrl.u32 %v3718, 7
        %v3720 = vsub.s32 1, %v3719
        %v3721 = vrot.slane %v3712, %v3720
        %v3724 = vadd.f32 %v3679, %v3717
        %v3725 = vadd.f32 %v3680, %v3721
        %v3726 = vadd.f32 %v3681, %v3717
        %v3727 = vadd.f32 %v3682, %v3721
        %v3728 = vadd.f32 %v3683, %v3717
        %v3729 = vadd.f32 %v3684, %v3721
        %v3730 = vadd.f32 %v3685, %v3717
        %v3731 = vadd.f32 %v3686, %v3721
        %v3732 = vadd.f32 %v3687, %v3717
        %v3733 = vadd.f32 %v3688, %v3721
        %v3734 = vadd.f32 %v3689, %v3717
        %v3735 = vadd.f32 %v3690, %v3721
        %v3736 = vadd.f32 %v3691, %v3717
        %v3737 = vadd.f32 %v3692, %v3721
        %v3738 = vadd.f32 %v3693, %v3717
        %v3739 = vadd.f32 %v3694, %v3721
        %v3740 = vadd.f32 %v3695, %v3717
        %v3741 = vadd.f32 %v3696, %v3721
        %v3742 = vadd.f32 %v3697, %v3717
        %v3743 = vadd.f32 %v3698, %v3721
        %v3744 = vadd.f32 %v3699, %v3717
        %v3745 = vadd.f32 %v3700, %v3721
        %v3746 = vadd.f32 %v3701, %v3717
        %v3747 = vadd.f32 %v3702, %v3721
        %v3748 = vadd.f32 %v3703, %v3717
        %v3749 = vadd.f32 %v3704, %v3721
        %v3750 = vadd.f32 %v3705, %v3717
        %v3751 = vadd.f32 %v3706, %v3721
        %v3752 = vadd.f32 %v3707, %v3717
        %v3753 = vadd.f32 %v3708, %v3721
        %v3754 = vadd.f32 %v3709, %v3717
        %v3755 = vadd.f32 %v3710, %v3721
        %v3756 = vmax.f32 %v3724, 0.0
        %v3757 = vmax.f32 %v3725, 0.0
        %v3758 = vmax.f32 %v3726, 0.0
        %v3759 = vmax.f32 %v3727, 0.0
        %v3760 = vmax.f32 %v3728, 0.0
        %v3761 = vmax.f32 %v3729, 0.0
        %v3762 = vmax.f32 %v3730, 0.0
        %v3763 = vmax.f32 %v3731, 0.0
        %v3764 = vmax.f32 %v3732, 0.0
        %v3765 = vmax.f32 %v3733, 0.0
        %v3766 = vmax.f32 %v3734, 0.0
        %v3767 = vmax.f32 %v3735, 0.0
        %v3768 = vmax.f32 %v3736, 0.0
        %v3769 = vmax.f32 %v3737, 0.0
        %v3770 = vmax.f32 %v3738, 0.0
        %v3771 = vmax.f32 %v3739, 0.0
        %v3772 = vmax.f32 %v3740, 0.0
        %v3773 = vmax.f32 %v3741, 0.0
        %v3774 = vmax.f32 %v3742, 0.0
        %v3775 = vmax.f32 %v3743, 0.0
        %v3776 = vmax.f32 %v3744, 0.0
        %v3777 = vmax.f32 %v3745, 0.0
        %v3778 = vmax.f32 %v3746, 0.0
        %v3779 = vmax.f32 %v3747, 0.0
        %v3780 = vmax.f32 %v3748, 0.0
        %v3781 = vmax.f32 %v3749, 0.0
        %v3782 = vmax.f32 %v3750, 0.0
        %v3783 = vmax.f32 %v3751, 0.0
        %v3784 = vmax.f32 %v3752, 0.0
        %v3785 = vmax.f32 %v3753, 0.0
        %v3786 = vmax.f32 %v3754, 0.0
        %v3787 = vmax.f32 %v3755, 0.0
        %s3788 = smul.u32 %s368, 4
        %s3789 = smul.addr %s3788, 4
        %s3790 = scalar_lea.vmem %s359, %s3789
        %v3791 = vld [vmem:[%s3790] sm:$0xf]
        %v3792 = vld [vmem:[%s3790 + $0x4] sm:$0xf]
        %v3793 = vld [vmem:[%s3790 + $0x10] sm:$0xf]
        %v3794 = vld [vmem:[%s3790 + $0x14] sm:$0xf]
        %v3795 = vld [vmem:[%s3790 + $0x20] sm:$0xf]
        %v3796 = vld [vmem:[%s3790 + $0x24] sm:$0xf]
        %v3797 = vld [vmem:[%s3790 + $0x30] sm:$0xf]
        %v3798 = vld [vmem:[%s3790 + $0x34] sm:$0xf]
        %v3799 = vld [vmem:[%s3790 + $0x40] sm:$0xf]
        %v3800 = vld [vmem:[%s3790 + $0x44] sm:$0xf]
        %v3801 = vld [vmem:[%s3790 + $0x50] sm:$0xf]
        %v3802 = vld [vmem:[%s3790 + $0x54] sm:$0xf]
        %v3803 = vld [vmem:[%s3790 + $0x60] sm:$0xf]
        %v3804 = vld [vmem:[%s3790 + $0x64] sm:$0xf]
        %v3805 = vld [vmem:[%s3790 + $0x70] sm:$0xf]
        %v3806 = vld [vmem:[%s3790 + $0x74] sm:$0xf]
        %v3807 = vld [vmem:[%s3790] sm:$0x8]
        %v3808 = vld [vmem:[%s3790 + $0x8] sm:$0x7]
        %v3809 = vld [vmem:[%s3790 + $0x10] sm:$0x8]
        %v3810 = vld [vmem:[%s3790 + $0x18] sm:$0x7]
        %v3811 = vld [vmem:[%s3790 + $0x20] sm:$0x8]
        %v3812 = vld [vmem:[%s3790 + $0x28] sm:$0x7]
        %v3813 = vld [vmem:[%s3790 + $0x30] sm:$0x8]
        %v3814 = vld [vmem:[%s3790 + $0x38] sm:$0x7]
        %v3815 = vld [vmem:[%s3790 + $0x40] sm:$0x8]
        %v3816 = vld [vmem:[%s3790 + $0x48] sm:$0x7]
        %v3817 = vld [vmem:[%s3790 + $0x50] sm:$0x8]
        %v3818 = vld [vmem:[%s3790 + $0x58] sm:$0x7]
        %v3819 = vld [vmem:[%s3790 + $0x60] sm:$0x8]
        %v3820 = vld [vmem:[%s3790 + $0x68] sm:$0x7]
        %v3821 = vld [vmem:[%s3790 + $0x70] sm:$0x8]
        %v3822 = vld [vmem:[%s3790 + $0x78] sm:$0x7]
        %v3823 = vld [vmem:[%s3790 + $0x4] sm:$0xc]
        %v3824 = vld [vmem:[%s3790 + $0x8] sm:$0xf]
        %v3825 = vld [vmem:[%s3790 + $0xc] sm:$0x3]
        %v3826 = vld [vmem:[%s3790 + $0x14] sm:$0xc]
        %v3827 = vld [vmem:[%s3790 + $0x18] sm:$0xf]
        %v3828 = vld [vmem:[%s3790 + $0x1c] sm:$0x3]
        %v3829 = vld [vmem:[%s3790 + $0x24] sm:$0xc]
        %v3830 = vld [vmem:[%s3790 + $0x28] sm:$0xf]
        %v3831 = vld [vmem:[%s3790 + $0x2c] sm:$0x3]
        %v3832 = vld [vmem:[%s3790 + $0x34] sm:$0xc]
        %v3833 = vld [vmem:[%s3790 + $0x38] sm:$0xf]
        %v3834 = vld [vmem:[%s3790 + $0x3c] sm:$0x3]
        %v3835 = vld [vmem:[%s3790 + $0x44] sm:$0xc]
        %v3836 = vld [vmem:[%s3790 + $0x48] sm:$0xf]
        %v3837 = vld [vmem:[%s3790 + $0x4c] sm:$0x3]
        %v3838 = vld [vmem:[%s3790 + $0x54] sm:$0xc]
        %v3839 = vld [vmem:[%s3790 + $0x58] sm:$0xf]
        %v3840 = vld [vmem:[%s3790 + $0x5c] sm:$0x3]
        %v3841 = vld [vmem:[%s3790 + $0x64] sm:$0xc]
        %v3842 = vld [vmem:[%s3790 + $0x68] sm:$0xf]
        %v3843 = vld [vmem:[%s3790 + $0x6c] sm:$0x3]
        %v3844 = vld [vmem:[%s3790 + $0x74] sm:$0xc]
        %v3845 = vld [vmem:[%s3790 + $0x78] sm:$0xf]
        %v3846 = vld [vmem:[%s3790 + $0x7c] sm:$0x3]
        %v3847 = vld [vmem:[%s372] sm:$0xf]
        %v3848 = vld [vmem:[%s372 + $0x4] sm:$0xf]
        %v3849 = vld [vmem:[%s372 + $0x10] sm:$0xf]
        %v3850 = vld [vmem:[%s372 + $0x14] sm:$0xf]
        %v3851 = vld [vmem:[%s372 + $0x20] sm:$0xf]
        %v3852 = vld [vmem:[%s372 + $0x24] sm:$0xf]
        %v3853 = vld [vmem:[%s372 + $0x30] sm:$0xf]
        %v3854 = vld [vmem:[%s372 + $0x34] sm:$0xf]
        %v3855 = vld [vmem:[%s372 + $0x40] sm:$0xf]
        %v3856 = vld [vmem:[%s372 + $0x44] sm:$0xf]
        %v3857 = vld [vmem:[%s372 + $0x50] sm:$0xf]
        %v3858 = vld [vmem:[%s372 + $0x54] sm:$0xf]
        %v3859 = vld [vmem:[%s372 + $0x60] sm:$0xf]
        %v3860 = vld [vmem:[%s372 + $0x64] sm:$0xf]
        %v3861 = vld [vmem:[%s372 + $0x70] sm:$0xf]
        %v3862 = vld [vmem:[%s372 + $0x74] sm:$0xf]
        %v3863 = vld [vmem:[%s372 + $0x4] sm:$0xc]
        %v3864 = vld [vmem:[%s372 + $0xc] sm:$0x3]
        %v3865 = vld [vmem:[%s372 + $0x14] sm:$0xc]
        %v3866 = vld [vmem:[%s372 + $0x1c] sm:$0x3]
        %v3867 = vld [vmem:[%s372 + $0x24] sm:$0xc]
        %v3868 = vld [vmem:[%s372 + $0x2c] sm:$0x3]
        %v3869 = vld [vmem:[%s372 + $0x34] sm:$0xc]
        %v3870 = vld [vmem:[%s372 + $0x3c] sm:$0x3]
        %v3871 = vld [vmem:[%s372 + $0x44] sm:$0xc]
        %v3872 = vld [vmem:[%s372 + $0x4c] sm:$0x3]
        %v3873 = vld [vmem:[%s372 + $0x54] sm:$0xc]
        %v3874 = vld [vmem:[%s372 + $0x5c] sm:$0x3]
        %v3875 = vld [vmem:[%s372 + $0x64] sm:$0xc]
        %v3876 = vld [vmem:[%s372 + $0x6c] sm:$0x3]
        %v3877 = vld [vmem:[%s372 + $0x74] sm:$0xc]
        %v3878 = vld [vmem:[%s372 + $0x7c] sm:$0x3]
        %s3879 = sadd.s32 %s368, 12
        %s3880 = smul.u32 %s3879, 4
        %s3881 = smul.addr %s3880, 4
        %s3882 = scalar_lea.vmem %s359, %s3881
        %v3883 = vld [vmem:[%s3882] sm:$0xf]
        %v3884 = vld [vmem:[%s3882 + $0x4] sm:$0xf]
        %v3885 = vld [vmem:[%s3882 + $0x10] sm:$0xf]
        %v3886 = vld [vmem:[%s3882 + $0x14] sm:$0xf]
        %v3887 = vld [vmem:[%s3882 + $0x20] sm:$0xf]
        %v3888 = vld [vmem:[%s3882 + $0x24] sm:$0xf]
        %v3889 = vld [vmem:[%s3882 + $0x30] sm:$0xf]
        %v3890 = vld [vmem:[%s3882 + $0x34] sm:$0xf]
        %v3891 = vld [vmem:[%s3882 + $0x40] sm:$0xf]
        %v3892 = vld [vmem:[%s3882 + $0x44] sm:$0xf]
        %v3893 = vld [vmem:[%s3882 + $0x50] sm:$0xf]
        %v3894 = vld [vmem:[%s3882 + $0x54] sm:$0xf]
        %v3895 = vld [vmem:[%s3882 + $0x60] sm:$0xf]
        %v3896 = vld [vmem:[%s3882 + $0x64] sm:$0xf]
        %v3897 = vld [vmem:[%s3882 + $0x70] sm:$0xf]
        %v3898 = vld [vmem:[%s3882 + $0x74] sm:$0xf]
        %v3899 = vld [vmem:[%s3882] sm:$0x8]
        %v3900 = vld [vmem:[%s3882 + $0x8] sm:$0x7]
        %v3901 = vld [vmem:[%s3882 + $0x10] sm:$0x8]
        %v3902 = vld [vmem:[%s3882 + $0x18] sm:$0x7]
        %v3903 = vld [vmem:[%s3882 + $0x20] sm:$0x8]
        %v3904 = vld [vmem:[%s3882 + $0x28] sm:$0x7]
        %v3905 = vld [vmem:[%s3882 + $0x30] sm:$0x8]
        %v3906 = vld [vmem:[%s3882 + $0x38] sm:$0x7]
        %v3907 = vld [vmem:[%s3882 + $0x40] sm:$0x8]
        %v3908 = vld [vmem:[%s3882 + $0x48] sm:$0x7]
        %v3909 = vld [vmem:[%s3882 + $0x50] sm:$0x8]
        %v3910 = vld [vmem:[%s3882 + $0x58] sm:$0x7]
        %v3911 = vld [vmem:[%s3882 + $0x60] sm:$0x8]
        %v3912 = vld [vmem:[%s3882 + $0x68] sm:$0x7]
        %v3913 = vld [vmem:[%s3882 + $0x70] sm:$0x8]
        %v3914 = vld [vmem:[%s3882 + $0x78] sm:$0x7]
        %v3915 = vld [vmem:[%s3882 + $0x4] sm:$0xc]
        %v3916 = vld [vmem:[%s3882 + $0x8] sm:$0xf]
        %v3917 = vld [vmem:[%s3882 + $0xc] sm:$0x3]
        %v3918 = vld [vmem:[%s3882 + $0x14] sm:$0xc]
        %v3919 = vld [vmem:[%s3882 + $0x18] sm:$0xf]
        %v3920 = vld [vmem:[%s3882 + $0x1c] sm:$0x3]
        %v3921 = vld [vmem:[%s3882 + $0x24] sm:$0xc]
        %v3922 = vld [vmem:[%s3882 + $0x28] sm:$0xf]
        %v3923 = vld [vmem:[%s3882 + $0x2c] sm:$0x3]
        %v3924 = vld [vmem:[%s3882 + $0x34] sm:$0xc]
        %v3925 = vld [vmem:[%s3882 + $0x38] sm:$0xf]
        %v3926 = vld [vmem:[%s3882 + $0x3c] sm:$0x3]
        %v3927 = vld [vmem:[%s3882 + $0x44] sm:$0xc]
        %v3928 = vld [vmem:[%s3882 + $0x48] sm:$0xf]
        %v3929 = vld [vmem:[%s3882 + $0x4c] sm:$0x3]
        %v3930 = vld [vmem:[%s3882 + $0x54] sm:$0xc]
        %v3931 = vld [vmem:[%s3882 + $0x58] sm:$0xf]
        %v3932 = vld [vmem:[%s3882 + $0x5c] sm:$0x3]
        %v3933 = vld [vmem:[%s3882 + $0x64] sm:$0xc]
        %v3934 = vld [vmem:[%s3882 + $0x68] sm:$0xf]
        %v3935 = vld [vmem:[%s3882 + $0x6c] sm:$0x3]
        %v3936 = vld [vmem:[%s3882 + $0x74] sm:$0xc]
        %v3937 = vld [vmem:[%s3882 + $0x78] sm:$0xf]
        %v3938 = vld [vmem:[%s3882 + $0x7c] sm:$0x3]
        %v3955 = vunpack.c.l.b16 %v3791
        %v3956 = vunpack.c.l.b16 %v3792
        %v3957 = vunpack.c.l.b16 %v3793
        %v3958 = vunpack.c.l.b16 %v3794
        %v3959 = vunpack.c.l.b16 %v3795
        %v3960 = vunpack.c.l.b16 %v3796
        %v3961 = vunpack.c.l.b16 %v3797
        %v3962 = vunpack.c.l.b16 %v3798
        %v3963 = vunpack.c.l.b16 %v3799
        %v3964 = vunpack.c.l.b16 %v3800
        %v3965 = vunpack.c.l.b16 %v3801
        %v3966 = vunpack.c.l.b16 %v3802
        %v3967 = vunpack.c.l.b16 %v3803
        %v3968 = vunpack.c.l.b16 %v3804
        %v3969 = vunpack.c.l.b16 %v3805
        %v3970 = vunpack.c.l.b16 %v3806
        %v3971 = vpack.c.b16 %v3956, %v3955
        %v3972 = vpack.c.b16 %v3958, %v3957
        %v3973 = vpack.c.b16 %v3960, %v3959
        %v3974 = vpack.c.b16 %v3962, %v3961
        %v3975 = vpack.c.b16 %v3964, %v3963
        %v3976 = vpack.c.b16 %v3966, %v3965
        %v3977 = vpack.c.b16 %v3968, %v3967
        %v3978 = vpack.c.b16 %v3970, %v3969
        %v3995 = vunpack.c.l.b16 %v3807
        %v3996 = vunpack.c.l.b16 %v3808
        %v3997 = vunpack.c.l.b16 %v3809
        %v3998 = vunpack.c.l.b16 %v3810
        %v3999 = vunpack.c.l.b16 %v3811
        %v4000 = vunpack.c.l.b16 %v3812
        %v4001 = vunpack.c.l.b16 %v3813
        %v4002 = vunpack.c.l.b16 %v3814
        %v4003 = vunpack.c.l.b16 %v3815
        %v4004 = vunpack.c.l.b16 %v3816
        %v4005 = vunpack.c.l.b16 %v3817
        %v4006 = vunpack.c.l.b16 %v3818
        %v4007 = vunpack.c.l.b16 %v3819
        %v4008 = vunpack.c.l.b16 %v3820
        %v4009 = vunpack.c.l.b16 %v3821
        %v4010 = vunpack.c.l.b16 %v3822
        %v4011 = vpack.c.b16 %v3956, %v3995
        %v4012 = vpack.c.b16 %v3996, %v3996
        %v4013 = vpack.c.b16 %v3958, %v3997
        %v4014 = vpack.c.b16 %v3998, %v3998
        %v4015 = vpack.c.b16 %v3960, %v3999
        %v4016 = vpack.c.b16 %v4000, %v4000
        %v4017 = vpack.c.b16 %v3962, %v4001
        %v4018 = vpack.c.b16 %v4002, %v4002
        %v4019 = vpack.c.b16 %v3964, %v4003
        %v4020 = vpack.c.b16 %v4004, %v4004
        %v4021 = vpack.c.b16 %v3966, %v4005
        %v4022 = vpack.c.b16 %v4006, %v4006
        %v4023 = vpack.c.b16 %v3968, %v4007
        %v4024 = vpack.c.b16 %v4008, %v4008
        %v4025 = vpack.c.b16 %v3970, %v4009
        %v4026 = vpack.c.b16 %v4010, %v4010
        %vm4027 = vcmask 1044480
        %v4028 = vrot.slane %v4011, 3
        %v4029 = vrot.slane %v4012, 3
        %v4030 = vsel %vm4027, %v4028, %v4029
        %v4031 = vrot.slane %v4013, 3
        %v4032 = vrot.slane %v4014, 3
        %v4033 = vsel %vm4027, %v4031, %v4032
        %v4034 = vrot.slane %v4015, 3
        %v4035 = vrot.slane %v4016, 3
        %v4036 = vsel %vm4027, %v4034, %v4035
        %v4037 = vrot.slane %v4017, 3
        %v4038 = vrot.slane %v4018, 3
        %v4039 = vsel %vm4027, %v4037, %v4038
        %v4040 = vrot.slane %v4019, 3
        %v4041 = vrot.slane %v4020, 3
        %v4042 = vsel %vm4027, %v4040, %v4041
        %v4043 = vrot.slane %v4021, 3
        %v4044 = vrot.slane %v4022, 3
        %v4045 = vsel %vm4027, %v4043, %v4044
        %v4046 = vrot.slane %v4023, 3
        %v4047 = vrot.slane %v4024, 3
        %v4048 = vsel %vm4027, %v4046, %v4047
        %v4049 = vrot.slane %v4025, 3
        %v4050 = vrot.slane %v4026, 3
        %v4051 = vsel %vm4027, %v4049, %v4050
        %4052 = vrot.lane.b32.xlu0 %v4030, 4
        %v4053 = vpop.permute.xlu0 %4052
        %4054 = vrot.lane.b32.xlu0 %v4033, 4
        %v4055 = vpop.permute.xlu0 %4054
        %4056 = vrot.lane.b32.xlu0 %v4036, 4
        %v4057 = vpop.permute.xlu0 %4056
        %4058 = vrot.lane.b32.xlu0 %v4039, 4
        %v4059 = vpop.permute.xlu0 %4058
        %4060 = vrot.lane.b32.xlu0 %v4042, 4
        %v4061 = vpop.permute.xlu0 %4060
        %4062 = vrot.lane.b32.xlu0 %v4045, 4
        %v4063 = vpop.permute.xlu0 %4062
        %4064 = vrot.lane.b32.xlu0 %v4048, 4
        %v4065 = vpop.permute.xlu0 %4064
        %4066 = vrot.lane.b32.xlu0 %v4051, 4
        %v4067 = vpop.permute.xlu0 %4066
        %v4092 = vunpack.c.l.b16 %v3823
        %v4093 = vunpack.c.l.b16 %v3824
        %v4094 = vunpack.c.l.b16 %v3825
        %v4095 = vunpack.c.l.b16 %v3826
        %v4096 = vunpack.c.l.b16 %v3827
        %v4097 = vunpack.c.l.b16 %v3828
        %v4098 = vunpack.c.l.b16 %v3829
        %v4099 = vunpack.c.l.b16 %v3830
        %v4100 = vunpack.c.l.b16 %v3831
        %v4101 = vunpack.c.l.b16 %v3832
        %v4102 = vunpack.c.l.b16 %v3833
        %v4103 = vunpack.c.l.b16 %v3834
        %v4104 = vunpack.c.l.b16 %v3835
        %v4105 = vunpack.c.l.b16 %v3836
        %v4106 = vunpack.c.l.b16 %v3837
        %v4107 = vunpack.c.l.b16 %v3838
        %v4108 = vunpack.c.l.b16 %v3839
        %v4109 = vunpack.c.l.b16 %v3840
        %v4110 = vunpack.c.l.b16 %v3841
        %v4111 = vunpack.c.l.b16 %v3842
        %v4112 = vunpack.c.l.b16 %v3843
        %v4113 = vunpack.c.l.b16 %v3844
        %v4114 = vunpack.c.l.b16 %v3845
        %v4115 = vunpack.c.l.b16 %v3846
        %v4116 = vpack.c.b16 %v4093, %v4092
        %v4117 = vpack.c.b16 %v4094, %v4094
        %v4118 = vpack.c.b16 %v4096, %v4095
        %v4119 = vpack.c.b16 %v4097, %v4097
        %v4120 = vpack.c.b16 %v4099, %v4098
        %v4121 = vpack.c.b16 %v4100, %v4100
        %v4122 = vpack.c.b16 %v4102, %v4101
        %v4123 = vpack.c.b16 %v4103, %v4103
        %v4124 = vpack.c.b16 %v4105, %v4104
        %v4125 = vpack.c.b16 %v4106, %v4106
        %v4126 = vpack.c.b16 %v4108, %v4107
        %v4127 = vpack.c.b16 %v4109, %v4109
        %v4128 = vpack.c.b16 %v4111, %v4110
        %v4129 = vpack.c.b16 %v4112, %v4112
        %v4130 = vpack.c.b16 %v4114, %v4113
        %v4131 = vpack.c.b16 %v4115, %v4115
        %v4132 = vrot.slane %v4116, 2
        %v4133 = vrot.slane %v4117, 2
        %v4134 = vsel %vm1891, %v4132, %v4133
        %v4135 = vrot.slane %v4118, 2
        %v4136 = vrot.slane %v4119, 2
        %v4137 = vsel %vm1891, %v4135, %v4136
        %v4138 = vrot.slane %v4120, 2
        %v4139 = vrot.slane %v4121, 2
        %v4140 = vsel %vm1891, %v4138, %v4139
        %v4141 = vrot.slane %v4122, 2
        %v4142 = vrot.slane %v4123, 2
        %v4143 = vsel %vm1891, %v4141, %v4142
        %v4144 = vrot.slane %v4124, 2
        %v4145 = vrot.slane %v4125, 2
        %v4146 = vsel %vm1891, %v4144, %v4145
        %v4147 = vrot.slane %v4126, 2
        %v4148 = vrot.slane %v4127, 2
        %v4149 = vsel %vm1891, %v4147, %v4148
        %v4150 = vrot.slane %v4128, 2
        %v4151 = vrot.slane %v4129, 2
        %v4152 = vsel %vm1891, %v4150, %v4151
        %v4153 = vrot.slane %v4130, 2
        %v4154 = vrot.slane %v4131, 2
        %v4155 = vsel %vm1891, %v4153, %v4154
        %4156 = vrot.lane.b32.xlu0 %v4134, 8
        %v4157 = vpop.permute.xlu0 %4156
        %4158 = vrot.lane.b32.xlu0 %v4137, 8
        %v4159 = vpop.permute.xlu0 %4158
        %4160 = vrot.lane.b32.xlu0 %v4140, 8
        %v4161 = vpop.permute.xlu0 %4160
        %4162 = vrot.lane.b32.xlu0 %v4143, 8
        %v4163 = vpop.permute.xlu0 %4162
        %4164 = vrot.lane.b32.xlu0 %v4146, 8
        %v4165 = vpop.permute.xlu0 %4164
        %4166 = vrot.lane.b32.xlu0 %v4149, 8
        %v4167 = vpop.permute.xlu0 %4166
        %4168 = vrot.lane.b32.xlu0 %v4152, 8
        %v4169 = vpop.permute.xlu0 %4168
        %4170 = vrot.lane.b32.xlu0 %v4155, 8
        %v4171 = vpop.permute.xlu0 %4170
        %v4188 = vunpack.c.l.b16 %v3847
        %v4189 = vunpack.c.l.b16 %v3848
        %v4190 = vunpack.c.l.b16 %v3849
        %v4191 = vunpack.c.l.b16 %v3850
        %v4192 = vunpack.c.l.b16 %v3851
        %v4193 = vunpack.c.l.b16 %v3852
        %v4194 = vunpack.c.l.b16 %v3853
        %v4195 = vunpack.c.l.b16 %v3854
        %v4196 = vunpack.c.l.b16 %v3855
        %v4197 = vunpack.c.l.b16 %v3856
        %v4198 = vunpack.c.l.b16 %v3857
        %v4199 = vunpack.c.l.b16 %v3858
        %v4200 = vunpack.c.l.b16 %v3859
        %v4201 = vunpack.c.l.b16 %v3860
        %v4202 = vunpack.c.l.b16 %v3861
        %v4203 = vunpack.c.l.b16 %v3862
        %v4204 = vpack.c.b16 %v4189, %v4188
        %v4205 = vpack.c.b16 %v4191, %v4190
        %v4206 = vpack.c.b16 %v4193, %v4192
        %v4207 = vpack.c.b16 %v4195, %v4194
        %v4208 = vpack.c.b16 %v4197, %v4196
        %v4209 = vpack.c.b16 %v4199, %v4198
        %v4210 = vpack.c.b16 %v4201, %v4200
        %v4211 = vpack.c.b16 %v4203, %v4202
        %4212 = vrot.lane.b32.xlu0 %v4204, 12
        %v4213 = vpop.permute.xlu0 %4212
        %4214 = vrot.lane.b32.xlu0 %v4205, 12
        %v4215 = vpop.permute.xlu0 %4214
        %4216 = vrot.lane.b32.xlu0 %v4206, 12
        %v4217 = vpop.permute.xlu0 %4216
        %4218 = vrot.lane.b32.xlu0 %v4207, 12
        %v4219 = vpop.permute.xlu0 %4218
        %4220 = vrot.lane.b32.xlu0 %v4208, 12
        %v4221 = vpop.permute.xlu0 %4220
        %4222 = vrot.lane.b32.xlu0 %v4209, 12
        %v4223 = vpop.permute.xlu0 %4222
        %4224 = vrot.lane.b32.xlu0 %v4210, 12
        %v4225 = vpop.permute.xlu0 %4224
        %4226 = vrot.lane.b32.xlu0 %v4211, 12
        %v4227 = vpop.permute.xlu0 %4226
        %v4228 = vrot.slane %v1252, 3
        %v4229 = vrot.slane %v1253, 3
        %v4230 = vsel %vm4027, %v4228, %v4229
        %v4231 = vrot.slane %v1254, 3
        %v4232 = vrot.slane %v1255, 3
        %v4233 = vsel %vm4027, %v4231, %v4232
        %v4234 = vrot.slane %v1256, 3
        %v4235 = vrot.slane %v1257, 3
        %v4236 = vsel %vm4027, %v4234, %v4235
        %v4237 = vrot.slane %v1258, 3
        %v4238 = vrot.slane %v1259, 3
        %v4239 = vsel %vm4027, %v4237, %v4238
        %v4240 = vrot.slane %v1260, 3
        %v4241 = vrot.slane %v1261, 3
        %v4242 = vsel %vm4027, %v4240, %v4241
        %v4243 = vrot.slane %v1262, 3
        %v4244 = vrot.slane %v1263, 3
        %v4245 = vsel %vm4027, %v4243, %v4244
        %v4246 = vrot.slane %v1264, 3
        %v4247 = vrot.slane %v1265, 3
        %v4248 = vsel %vm4027, %v4246, %v4247
        %v4249 = vrot.slane %v1266, 3
        %v4250 = vrot.slane %v1267, 3
        %v4251 = vsel %vm4027, %v4249, %v4250
        %4252 = vrot.lane.b32.xlu0 %v4230, 16
        %v4253 = vpop.permute.xlu0 %4252
        %4254 = vrot.lane.b32.xlu0 %v4233, 16
        %v4255 = vpop.permute.xlu0 %4254
        %4256 = vrot.lane.b32.xlu0 %v4236, 16
        %v4257 = vpop.permute.xlu0 %4256
        %4258 = vrot.lane.b32.xlu0 %v4239, 16
        %v4259 = vpop.permute.xlu0 %4258
        %4260 = vrot.lane.b32.xlu0 %v4242, 16
        %v4261 = vpop.permute.xlu0 %4260
        %4262 = vrot.lane.b32.xlu0 %v4245, 16
        %v4263 = vpop.permute.xlu0 %4262
        %4264 = vrot.lane.b32.xlu0 %v4248, 16
        %v4265 = vpop.permute.xlu0 %4264
        %4266 = vrot.lane.b32.xlu0 %v4251, 16
        %v4267 = vpop.permute.xlu0 %4266
        %v4284 = vunpack.c.l.b16 %v3863
        %v4285 = vunpack.c.l.b16 %v3864
        %v4286 = vunpack.c.l.b16 %v3865
        %v4287 = vunpack.c.l.b16 %v3866
        %v4288 = vunpack.c.l.b16 %v3867
        %v4289 = vunpack.c.l.b16 %v3868
        %v4290 = vunpack.c.l.b16 %v3869
        %v4291 = vunpack.c.l.b16 %v3870
        %v4292 = vunpack.c.l.b16 %v3871
        %v4293 = vunpack.c.l.b16 %v3872
        %v4294 = vunpack.c.l.b16 %v3873
        %v4295 = vunpack.c.l.b16 %v3874
        %v4296 = vunpack.c.l.b16 %v3875
        %v4297 = vunpack.c.l.b16 %v3876
        %v4298 = vunpack.c.l.b16 %v3877
        %v4299 = vunpack.c.l.b16 %v3878
        %v4300 = vpack.c.b16 %v2813, %v4284
        %v4301 = vpack.c.b16 %v4285, %v4285
        %v4302 = vpack.c.b16 %v2816, %v4286
        %v4303 = vpack.c.b16 %v4287, %v4287
        %v4304 = vpack.c.b16 %v2819, %v4288
        %v4305 = vpack.c.b16 %v4289, %v4289
        %v4306 = vpack.c.b16 %v2822, %v4290
        %v4307 = vpack.c.b16 %v4291, %v4291
        %v4308 = vpack.c.b16 %v2825, %v4292
        %v4309 = vpack.c.b16 %v4293, %v4293
        %v4310 = vpack.c.b16 %v2828, %v4294
        %v4311 = vpack.c.b16 %v4295, %v4295
        %v4312 = vpack.c.b16 %v2831, %v4296
        %v4313 = vpack.c.b16 %v4297, %v4297
        %v4314 = vpack.c.b16 %v2834, %v4298
        %v4315 = vpack.c.b16 %v4299, %v4299
        %v4316 = vrot.slane %v4300, 2
        %v4317 = vrot.slane %v4301, 2
        %v4318 = vsel %vm1891, %v4316, %v4317
        %v4319 = vrot.slane %v4302, 2
        %v4320 = vrot.slane %v4303, 2
        %v4321 = vsel %vm1891, %v4319, %v4320
        %v4322 = vrot.slane %v4304, 2
        %v4323 = vrot.slane %v4305, 2
        %v4324 = vsel %vm1891, %v4322, %v4323
        %v4325 = vrot.slane %v4306, 2
        %v4326 = vrot.slane %v4307, 2
        %v4327 = vsel %vm1891, %v4325, %v4326
        %v4328 = vrot.slane %v4308, 2
        %v4329 = vrot.slane %v4309, 2
        %v4330 = vsel %vm1891, %v4328, %v4329
        %v4331 = vrot.slane %v4310, 2
        %v4332 = vrot.slane %v4311, 2
        %v4333 = vsel %vm1891, %v4331, %v4332
        %v4334 = vrot.slane %v4312, 2
        %v4335 = vrot.slane %v4313, 2
        %v4336 = vsel %vm1891, %v4334, %v4335
        %v4337 = vrot.slane %v4314, 2
        %v4338 = vrot.slane %v4315, 2
        %v4339 = vsel %vm1891, %v4337, %v4338
        %4340 = vrot.lane.b32.xlu0 %v4318, 20
        %v4341 = vpop.permute.xlu0 %4340
        %4342 = vrot.lane.b32.xlu0 %v4321, 20
        %v4343 = vpop.permute.xlu0 %4342
        %4344 = vrot.lane.b32.xlu0 %v4324, 20
        %v4345 = vpop.permute.xlu0 %4344
        %4346 = vrot.lane.b32.xlu0 %v4327, 20
        %v4347 = vpop.permute.xlu0 %4346
        %4348 = vrot.lane.b32.xlu0 %v4330, 20
        %v4349 = vpop.permute.xlu0 %4348
        %4350 = vrot.lane.b32.xlu0 %v4333, 20
        %v4351 = vpop.permute.xlu0 %4350
        %4352 = vrot.lane.b32.xlu0 %v4336, 20
        %v4353 = vpop.permute.xlu0 %4352
        %4354 = vrot.lane.b32.xlu0 %v4339, 20
        %v4355 = vpop.permute.xlu0 %4354
        %v4372 = vunpack.c.l.b16 %v3883
        %v4373 = vunpack.c.l.b16 %v3884
        %v4374 = vunpack.c.l.b16 %v3885
        %v4375 = vunpack.c.l.b16 %v3886
        %v4376 = vunpack.c.l.b16 %v3887
        %v4377 = vunpack.c.l.b16 %v3888
        %v4378 = vunpack.c.l.b16 %v3889
        %v4379 = vunpack.c.l.b16 %v3890
        %v4380 = vunpack.c.l.b16 %v3891
        %v4381 = vunpack.c.l.b16 %v3892
        %v4382 = vunpack.c.l.b16 %v3893
        %v4383 = vunpack.c.l.b16 %v3894
        %v4384 = vunpack.c.l.b16 %v3895
        %v4385 = vunpack.c.l.b16 %v3896
        %v4386 = vunpack.c.l.b16 %v3897
        %v4387 = vunpack.c.l.b16 %v3898
        %v4388 = vpack.c.b16 %v4373, %v4372
        %v4389 = vpack.c.b16 %v4375, %v4374
        %v4390 = vpack.c.b16 %v4377, %v4376
        %v4391 = vpack.c.b16 %v4379, %v4378
        %v4392 = vpack.c.b16 %v4381, %v4380
        %v4393 = vpack.c.b16 %v4383, %v4382
        %v4394 = vpack.c.b16 %v4385, %v4384
        %v4395 = vpack.c.b16 %v4387, %v4386
        %4396 = vrot.lane.b32.xlu0 %v4388, 24
        %v4397 = vpop.permute.xlu0 %4396
        %4398 = vrot.lane.b32.xlu0 %v4389, 24
        %v4399 = vpop.permute.xlu0 %4398
        %4400 = vrot.lane.b32.xlu0 %v4390, 24
        %v4401 = vpop.permute.xlu0 %4400
        %4402 = vrot.lane.b32.xlu0 %v4391, 24
        %v4403 = vpop.permute.xlu0 %4402
        %4404 = vrot.lane.b32.xlu0 %v4392, 24
        %v4405 = vpop.permute.xlu0 %4404
        %4406 = vrot.lane.b32.xlu0 %v4393, 24
        %v4407 = vpop.permute.xlu0 %4406
        %4408 = vrot.lane.b32.xlu0 %v4394, 24
        %v4409 = vpop.permute.xlu0 %4408
        %4410 = vrot.lane.b32.xlu0 %v4395, 24
        %v4411 = vpop.permute.xlu0 %4410
        %v4428 = vunpack.c.l.b16 %v3899
        %v4429 = vunpack.c.l.b16 %v3900
        %v4430 = vunpack.c.l.b16 %v3901
        %v4431 = vunpack.c.l.b16 %v3902
        %v4432 = vunpack.c.l.b16 %v3903
        %v4433 = vunpack.c.l.b16 %v3904
        %v4434 = vunpack.c.l.b16 %v3905
        %v4435 = vunpack.c.l.b16 %v3906
        %v4436 = vunpack.c.l.b16 %v3907
        %v4437 = vunpack.c.l.b16 %v3908
        %v4438 = vunpack.c.l.b16 %v3909
        %v4439 = vunpack.c.l.b16 %v3910
        %v4440 = vunpack.c.l.b16 %v3911
        %v4441 = vunpack.c.l.b16 %v3912
        %v4442 = vunpack.c.l.b16 %v3913
        %v4443 = vunpack.c.l.b16 %v3914
        %v4444 = vpack.c.b16 %v4373, %v4428
        %v4445 = vpack.c.b16 %v4429, %v4429
        %v4446 = vpack.c.b16 %v4375, %v4430
        %v4447 = vpack.c.b16 %v4431, %v4431
        %v4448 = vpack.c.b16 %v4377, %v4432
        %v4449 = vpack.c.b16 %v4433, %v4433
        %v4450 = vpack.c.b16 %v4379, %v4434
        %v4451 = vpack.c.b16 %v4435, %v4435
        %v4452 = vpack.c.b16 %v4381, %v4436
        %v4453 = vpack.c.b16 %v4437, %v4437
        %v4454 = vpack.c.b16 %v4383, %v4438
        %v4455 = vpack.c.b16 %v4439, %v4439
        %v4456 = vpack.c.b16 %v4385, %v4440
        %v4457 = vpack.c.b16 %v4441, %v4441
        %v4458 = vpack.c.b16 %v4387, %v4442
        %v4459 = vpack.c.b16 %v4443, %v4443
        %v4460 = vrot.slane %v4444, 3
        %v4461 = vrot.slane %v4445, 3
        %v4462 = vsel %vm4027, %v4460, %v4461
        %v4463 = vrot.slane %v4446, 3
        %v4464 = vrot.slane %v4447, 3
        %v4465 = vsel %vm4027, %v4463, %v4464
        %v4466 = vrot.slane %v4448, 3
        %v4467 = vrot.slane %v4449, 3
        %v4468 = vsel %vm4027, %v4466, %v4467
        %v4469 = vrot.slane %v4450, 3
        %v4470 = vrot.slane %v4451, 3
        %v4471 = vsel %vm4027, %v4469, %v4470
        %v4472 = vrot.slane %v4452, 3
        %v4473 = vrot.slane %v4453, 3
        %v4474 = vsel %vm4027, %v4472, %v4473
        %v4475 = vrot.slane %v4454, 3
        %v4476 = vrot.slane %v4455, 3
        %v4477 = vsel %vm4027, %v4475, %v4476
        %v4478 = vrot.slane %v4456, 3
        %v4479 = vrot.slane %v4457, 3
        %v4480 = vsel %vm4027, %v4478, %v4479
        %v4481 = vrot.slane %v4458, 3
        %v4482 = vrot.slane %v4459, 3
        %v4483 = vsel %vm4027, %v4481, %v4482
        %4484 = vrot.lane.b32.xlu0 %v4462, 28
        %v4485 = vpop.permute.xlu0 %4484
        %4486 = vrot.lane.b32.xlu0 %v4465, 28
        %v4487 = vpop.permute.xlu0 %4486
        %4488 = vrot.lane.b32.xlu0 %v4468, 28
        %v4489 = vpop.permute.xlu0 %4488
        %4490 = vrot.lane.b32.xlu0 %v4471, 28
        %v4491 = vpop.permute.xlu0 %4490
        %4492 = vrot.lane.b32.xlu0 %v4474, 28
        %v4493 = vpop.permute.xlu0 %4492
        %4494 = vrot.lane.b32.xlu0 %v4477, 28
        %v4495 = vpop.permute.xlu0 %4494
        %4496 = vrot.lane.b32.xlu0 %v4480, 28
        %v4497 = vpop.permute.xlu0 %4496
        %4498 = vrot.lane.b32.xlu0 %v4483, 28
        %v4499 = vpop.permute.xlu0 %4498
        %v4524 = vunpack.c.l.b16 %v3915
        %v4525 = vunpack.c.l.b16 %v3916
        %v4526 = vunpack.c.l.b16 %v3917
        %v4527 = vunpack.c.l.b16 %v3918
        %v4528 = vunpack.c.l.b16 %v3919
        %v4529 = vunpack.c.l.b16 %v3920
        %v4530 = vunpack.c.l.b16 %v3921
        %v4531 = vunpack.c.l.b16 %v3922
        %v4532 = vunpack.c.l.b16 %v3923
        %v4533 = vunpack.c.l.b16 %v3924
        %v4534 = vunpack.c.l.b16 %v3925
        %v4535 = vunpack.c.l.b16 %v3926
        %v4536 = vunpack.c.l.b16 %v3927
        %v4537 = vunpack.c.l.b16 %v3928
        %v4538 = vunpack.c.l.b16 %v3929
        %v4539 = vunpack.c.l.b16 %v3930
        %v4540 = vunpack.c.l.b16 %v3931
        %v4541 = vunpack.c.l.b16 %v3932
        %v4542 = vunpack.c.l.b16 %v3933
        %v4543 = vunpack.c.l.b16 %v3934
        %v4544 = vunpack.c.l.b16 %v3935
        %v4545 = vunpack.c.l.b16 %v3936
        %v4546 = vunpack.c.l.b16 %v3937
        %v4547 = vunpack.c.l.b16 %v3938
        %v4548 = vpack.c.b16 %v4525, %v4524
        %v4549 = vpack.c.b16 %v4526, %v4526
        %v4550 = vpack.c.b16 %v4528, %v4527
        %v4551 = vpack.c.b16 %v4529, %v4529
        %v4552 = vpack.c.b16 %v4531, %v4530
        %v4553 = vpack.c.b16 %v4532, %v4532
        %v4554 = vpack.c.b16 %v4534, %v4533
        %v4555 = vpack.c.b16 %v4535, %v4535
        %v4556 = vpack.c.b16 %v4537, %v4536
        %v4557 = vpack.c.b16 %v4538, %v4538
        %v4558 = vpack.c.b16 %v4540, %v4539
        %v4559 = vpack.c.b16 %v4541, %v4541
        %v4560 = vpack.c.b16 %v4543, %v4542
        %v4561 = vpack.c.b16 %v4544, %v4544
        %v4562 = vpack.c.b16 %v4546, %v4545
        %v4563 = vpack.c.b16 %v4547, %v4547
        %v4564 = vrot.slane %v4548, 2
        %v4565 = vrot.slane %v4549, 2
        %v4566 = vsel %vm1891, %v4564, %v4565
        %v4567 = vrot.slane %v4550, 2
        %v4568 = vrot.slane %v4551, 2
        %v4569 = vsel %vm1891, %v4567, %v4568
        %v4570 = vrot.slane %v4552, 2
        %v4571 = vrot.slane %v4553, 2
        %v4572 = vsel %vm1891, %v4570, %v4571
        %v4573 = vrot.slane %v4554, 2
        %v4574 = vrot.slane %v4555, 2
        %v4575 = vsel %vm1891, %v4573, %v4574
        %v4576 = vrot.slane %v4556, 2
        %v4577 = vrot.slane %v4557, 2
        %v4578 = vsel %vm1891, %v4576, %v4577
        %v4579 = vrot.slane %v4558, 2
        %v4580 = vrot.slane %v4559, 2
        %v4581 = vsel %vm1891, %v4579, %v4580
        %v4582 = vrot.slane %v4560, 2
        %v4583 = vrot.slane %v4561, 2
        %v4584 = vsel %vm1891, %v4582, %v4583
        %v4585 = vrot.slane %v4562, 2
        %v4586 = vrot.slane %v4563, 2
        %v4587 = vsel %vm1891, %v4585, %v4586
        %4588 = vrot.lane.b32.xlu0 %v4566, 32
        %v4589 = vpop.permute.xlu0 %4588
        %4590 = vrot.lane.b32.xlu0 %v4569, 32
        %v4591 = vpop.permute.xlu0 %4590
        %4592 = vrot.lane.b32.xlu0 %v4572, 32
        %v4593 = vpop.permute.xlu0 %4592
        %4594 = vrot.lane.b32.xlu0 %v4575, 32
        %v4595 = vpop.permute.xlu0 %4594
        %4596 = vrot.lane.b32.xlu0 %v4578, 32
        %v4597 = vpop.permute.xlu0 %4596
        %4598 = vrot.lane.b32.xlu0 %v4581, 32
        %v4599 = vpop.permute.xlu0 %4598
        %4600 = vrot.lane.b32.xlu0 %v4584, 32
        %v4601 = vpop.permute.xlu0 %4600
        %4602 = vrot.lane.b32.xlu0 %v4587, 32
        %v4603 = vpop.permute.xlu0 %4602
        %v4606 = vsel %vm514, %v3971, %v4053
        %v4609 = vsel %vm514, %v3972, %v4055
        %v4612 = vsel %vm514, %v3973, %v4057
        %v4615 = vsel %vm514, %v3974, %v4059
        %v4618 = vsel %vm514, %v3975, %v4061
        %v4621 = vsel %vm514, %v3976, %v4063
        %v4624 = vsel %vm514, %v3977, %v4065
        %v4627 = vsel %vm514, %v3978, %v4067
        %v4629 = vsel %vm1668, %v4606, %v4157
        %v4631 = vsel %vm1668, %v4609, %v4159
        %v4633 = vsel %vm1668, %v4612, %v4161
        %v4635 = vsel %vm1668, %v4615, %v4163
        %v4637 = vsel %vm1668, %v4618, %v4165
        %v4639 = vsel %vm1668, %v4621, %v4167
        %v4641 = vsel %vm1668, %v4624, %v4169
        %v4643 = vsel %vm1668, %v4627, %v4171
        %v4645 = vsel %vm1693, %v4629, %v4213
        %v4647 = vsel %vm1693, %v4631, %v4215
        %v4649 = vsel %vm1693, %v4633, %v4217
        %v4651 = vsel %vm1693, %v4635, %v4219
        %v4653 = vsel %vm1693, %v4637, %v4221
        %v4655 = vsel %vm1693, %v4639, %v4223
        %v4657 = vsel %vm1693, %v4641, %v4225
        %v4659 = vsel %vm1693, %v4643, %v4227
        %v4661 = vsel %vm1726, %v4645, %v4253
        %v4663 = vsel %vm1726, %v4647, %v4255
        %v4665 = vsel %vm1726, %v4649, %v4257
        %v4667 = vsel %vm1726, %v4651, %v4259
        %v4669 = vsel %vm1726, %v4653, %v4261
        %v4671 = vsel %vm1726, %v4655, %v4263
        %v4673 = vsel %vm1726, %v4657, %v4265
        %v4675 = vsel %vm1726, %v4659, %v4267
        %v4677 = vsel %vm1759, %v4661, %v4341
        %v4679 = vsel %vm1759, %v4663, %v4343
        %v4681 = vsel %vm1759, %v4665, %v4345
        %v4683 = vsel %vm1759, %v4667, %v4347
        %v4685 = vsel %vm1759, %v4669, %v4349
        %v4687 = vsel %vm1759, %v4671, %v4351
        %v4689 = vsel %vm1759, %v4673, %v4353
        %v4691 = vsel %vm1759, %v4675, %v4355
        %v4693 = vsel %vm1784, %v4677, %v4397
        %v4695 = vsel %vm1784, %v4679, %v4399
        %v4697 = vsel %vm1784, %v4681, %v4401
        %v4699 = vsel %vm1784, %v4683, %v4403
        %v4701 = vsel %vm1784, %v4685, %v4405
        %v4703 = vsel %vm1784, %v4687, %v4407
        %v4705 = vsel %vm1784, %v4689, %v4409
        %v4707 = vsel %vm1784, %v4691, %v4411
        %v4709 = vsel %vm1817, %v4693, %v4485
        %v4711 = vsel %vm1817, %v4695, %v4487
        %v4713 = vsel %vm1817, %v4697, %v4489
        %v4715 = vsel %vm1817, %v4699, %v4491
        %v4717 = vsel %vm1817, %v4701, %v4493
        %v4719 = vsel %vm1817, %v4703, %v4495
        %v4721 = vsel %vm1817, %v4705, %v4497
        %v4723 = vsel %vm1817, %v4707, %v4499
        %v4725 = vsel %vm1850, %v4709, %v4589
        %v4727 = vsel %vm1850, %v4711, %v4591
        %v4729 = vsel %vm1850, %v4713, %v4593
        %v4731 = vsel %vm1850, %v4715, %v4595
        %v4733 = vsel %vm1850, %v4717, %v4597
        %v4735 = vsel %vm1850, %v4719, %v4599
        %v4737 = vsel %vm1850, %v4721, %v4601
        %v4739 = vsel %vm1850, %v4723, %v4603
        %s4740 = scalar_lea.vmem %s2, 80
        %v4741 = vld [vmem:[%s4740] sm:$0xff]
        %v4742 = vld [vmem:[%s4740 + $0x8] sm:$0xff]
        %v4743 = vld [vmem:[%s4740 + $0x10] sm:$0xff]
        %v4744 = vld [vmem:[%s4740 + $0x18] sm:$0xff]
        %v4745 = vld [vmem:[%s4740 + $0x20] sm:$0x33]
        %v4751 = vunpack.c.l.b16 %v4741
        %v4752 = vunpack.c.h.b16 %v4741
        %v4753 = vunpack.c.l.b16 %v4742
        %v4754 = vunpack.c.h.b16 %v4742
        %v4755 = vunpack.c.l.b16 %v4743
        %v4756 = vunpack.c.h.b16 %v4743
        %v4757 = vunpack.c.l.b16 %v4744
        %v4758 = vunpack.c.h.b16 %v4744
        %v4759 = vunpack.c.l.b16 %v4745
        %v4760 = vunpack.c.h.b16 %v4745
        %v4761 = vpack.c.b16 %v4753, %v4751
        %v4762 = vpack.c.b16 %v4754, %v4752
        %v4763 = vpack.c.b16 %v4757, %v4755
        %v4764 = vpack.c.b16 %v4758, %v4756
        %v4765 = vpack.c.b16 %v4759, %v4759
        %v4766 = vpack.c.b16 %v4760, %v4760
        %v4771 = vsel %vm1946, %v4725, 0
        %v4773 = vsel %vm1946, %v4727, 0
        %v4775 = vsel %vm1946, %v4729, 0
        %v4777 = vsel %vm1946, %v4731, 0
        %v4779 = vsel %vm1946, %v4733, 0
        %v4781 = vsel %vm1946, %v4735, 0
        %v4783 = vsel %vm1946, %v4737, 0
        %v4785 = vsel %vm1946, %v4739, 0
        %v4788 = vsel %vm539, %v4765, 0
        %v4791 = vsel %vm539, %v4766, 0
        %4793 = vmatprep.subr.bf16.mxu0 0
        %4794 = vmatpush1.bf16.msra.mxu0 0
        %4795 = vmatprep.subr.bf16.mxu0 0
        %4796 = vmatpush1.bf16.msra.mxu0 0
        %4797 = vmatprep.subr.bf16.mxu0 0
        %4798 = vmatpush1.bf16.msra.mxu0 0
        %4799 = vmatprep.subr.bf16.mxu0 0
        %4800 = vmatpush1.bf16.msra.mxu0 0
        %4801 = vmatprep.subr.bf16.mxu0 0
        %4802 = vmatpush1.bf16.msra.mxu0 0
        %4803 = vmatprep.subr.bf16.mxu0 %v4791
        %4804 = vmatpush1.bf16.msra.mxu0 %v4788
        %4805 = vmatprep.subr.bf16.mxu0 %v4764
        %4806 = vmatpush1.bf16.msra.mxu0 %v4763
        %4807 = vmatprep.subr.bf16.mxu0 %v4762
        %4808 = vmatpush1.bf16.msra.mxu0 %v4761
        %4809 = vmatprep.subr.bf16.mxu0 0
        %4810 = vmatpush2.bf16.msra.mxu0 0
        %4811 = vmatprep.subr.bf16.mxu0 0
        %4812 = vmatpush2.bf16.msra.mxu0 0
        %4813 = vmatprep.subr.bf16.mxu0 0
        %4814 = vmatpush2.bf16.msra.mxu0 0
        %4815 = vmatprep.subr.bf16.mxu0 0
        %4816 = vmatpush2.bf16.msra.mxu0 0
        %4817 = vmatprep.subr.bf16.mxu0 0
        %4818 = vmatpush2.bf16.msra.mxu0 0
        %4819 = vmatprep.subr.bf16.mxu0 0
        %4820 = vmatpush2.bf16.msra.mxu0 0
        %4821 = vmatprep.subr.bf16.mxu0 0
        %4822 = vmatpush2.bf16.msra.mxu0 0
        %4823 = vmatprep.subr.bf16.mxu0 0
        %4824 = vmatpush2.bf16.msra.mxu0 0
        %4825 = vmatprep.mubr.bf16.mxu0 0
        %4826 = vmatmul.mubr.bf16.gmra.mxu0 %v4771
        %v4827 = vpop.f32.mrf.mxu0
        %v4828 = vadd.f32 0.0, %v4827
        %v4829 = vpop.f32.mrf.mxu0
        %v4830 = vadd.f32 0.0, %v4829
        %v4831 = vpop.f32.mrf.mxu0
        %v4832 = vadd.f32 0.0, %v4831
        %v4833 = vpop.f32.mrf.mxu0
        %v4834 = vadd.f32 0.0, %v4833
        %4835 = vmatprep.mubr.bf16.mxu0 0
        %4836 = vmatmul.mubr.bf16.gmra.mxu0 %v4773
        %v4837 = vpop.f32.mrf.mxu0
        %v4838 = vadd.f32 0.0, %v4837
        %v4839 = vpop.f32.mrf.mxu0
        %v4840 = vadd.f32 0.0, %v4839
        %v4841 = vpop.f32.mrf.mxu0
        %v4842 = vadd.f32 0.0, %v4841
        %v4843 = vpop.f32.mrf.mxu0
        %v4844 = vadd.f32 0.0, %v4843
        %4845 = vmatprep.mubr.bf16.mxu0 0
        %4846 = vmatmul.mubr.bf16.gmra.mxu0 %v4775
        %v4847 = vpop.f32.mrf.mxu0
        %v4848 = vadd.f32 0.0, %v4847
        %v4849 = vpop.f32.mrf.mxu0
        %v4850 = vadd.f32 0.0, %v4849
        %v4851 = vpop.f32.mrf.mxu0
        %v4852 = vadd.f32 0.0, %v4851
        %v4853 = vpop.f32.mrf.mxu0
        %v4854 = vadd.f32 0.0, %v4853
        %4855 = vmatprep.mubr.bf16.mxu0 0
        %4856 = vmatmul.mubr.bf16.gmra.mxu0 %v4777
        %v4857 = vpop.f32.mrf.mxu0
        %v4858 = vadd.f32 0.0, %v4857
        %v4859 = vpop.f32.mrf.mxu0
        %v4860 = vadd.f32 0.0, %v4859
        %v4861 = vpop.f32.mrf.mxu0
        %v4862 = vadd.f32 0.0, %v4861
        %v4863 = vpop.f32.mrf.mxu0
        %v4864 = vadd.f32 0.0, %v4863
        %4865 = vmatprep.mubr.bf16.mxu0 0
        %4866 = vmatmul.mubr.bf16.gmra.mxu0 %v4779
        %v4867 = vpop.f32.mrf.mxu0
        %v4868 = vadd.f32 0.0, %v4867
        %v4869 = vpop.f32.mrf.mxu0
        %v4870 = vadd.f32 0.0, %v4869
        %v4871 = vpop.f32.mrf.mxu0
        %v4872 = vadd.f32 0.0, %v4871
        %v4873 = vpop.f32.mrf.mxu0
        %v4874 = vadd.f32 0.0, %v4873
        %4875 = vmatprep.mubr.bf16.mxu0 0
        %4876 = vmatmul.mubr.bf16.gmra.mxu0 %v4781
        %v4877 = vpop.f32.mrf.mxu0
        %v4878 = vadd.f32 0.0, %v4877
        %v4879 = vpop.f32.mrf.mxu0
        %v4880 = vadd.f32 0.0, %v4879
        %v4881 = vpop.f32.mrf.mxu0
        %v4882 = vadd.f32 0.0, %v4881
        %v4883 = vpop.f32.mrf.mxu0
        %v4884 = vadd.f32 0.0, %v4883
        %4885 = vmatprep.mubr.bf16.mxu0 0
        %4886 = vmatmul.mubr.bf16.gmra.mxu0 %v4783
        %v4887 = vpop.f32.mrf.mxu0
        %v4888 = vadd.f32 0.0, %v4887
        %v4889 = vpop.f32.mrf.mxu0
        %v4890 = vadd.f32 0.0, %v4889
        %v4891 = vpop.f32.mrf.mxu0
        %v4892 = vadd.f32 0.0, %v4891
        %v4893 = vpop.f32.mrf.mxu0
        %v4894 = vadd.f32 0.0, %v4893
        %4895 = vmatprep.mubr.bf16.mxu0 0
        %4896 = vmatmul.mubr.bf16.gmra.mxu0 %v4785
        %v4897 = vpop.f32.mrf.mxu0
        %v4898 = vadd.f32 0.0, %v4897
        %v4899 = vpop.f32.mrf.mxu0
        %v4900 = vadd.f32 0.0, %v4899
        %v4901 = vpop.f32.mrf.mxu0
        %v4902 = vadd.f32 0.0, %v4901
        %v4903 = vpop.f32.mrf.mxu0
        %v4904 = vadd.f32 0.0, %v4903
        %4905 = vdwg.mxu0
        %s4906 = scalar_lea.vmem %s4, 3
        %v4907 = vld [vmem:[%s4906] ss:$4 sm:$0x3]
        %v4909 = vlaneseq
        %v4910 = vshrl.u32 %v4909, 7
        %v4911 = vsub.s32 0, %v4910
        %v4912 = vrot.slane %v4907, %v4911
        %v4913 = vlaneseq
        %v4914 = vshrl.u32 %v4913, 7
        %v4915 = vsub.s32 1, %v4914
        %v4916 = vrot.slane %v4907, %v4915
        %v4919 = vmul.f32 %v4828, %v4912
        %v4920 = vmul.f32 %v4830, %v4916
        %v4921 = vmul.f32 %v4832, %v4912
        %v4922 = vmul.f32 %v4834, %v4916
        %v4923 = vmul.f32 %v4838, %v4912
        %v4924 = vmul.f32 %v4840, %v4916
        %v4925 = vmul.f32 %v4842, %v4912
        %v4926 = vmul.f32 %v4844, %v4916
        %v4927 = vmul.f32 %v4848, %v4912
        %v4928 = vmul.f32 %v4850, %v4916
        %v4929 = vmul.f32 %v4852, %v4912
        %v4930 = vmul.f32 %v4854, %v4916
        %v4931 = vmul.f32 %v4858, %v4912
        %v4932 = vmul.f32 %v4860, %v4916
        %v4933 = vmul.f32 %v4862, %v4912
        %v4934 = vmul.f32 %v4864, %v4916
        %v4935 = vmul.f32 %v4868, %v4912
        %v4936 = vmul.f32 %v4870, %v4916
        %v4937 = vmul.f32 %v4872, %v4912
        %v4938 = vmul.f32 %v4874, %v4916
        %v4939 = vmul.f32 %v4878, %v4912
        %v4940 = vmul.f32 %v4880, %v4916
        %v4941 = vmul.f32 %v4882, %v4912
        %v4942 = vmul.f32 %v4884, %v4916
        %v4943 = vmul.f32 %v4888, %v4912
        %v4944 = vmul.f32 %v4890, %v4916
        %v4945 = vmul.f32 %v4892, %v4912
        %v4946 = vmul.f32 %v4894, %v4916
        %v4947 = vmul.f32 %v4898, %v4912
        %v4948 = vmul.f32 %v4900, %v4916
        %v4949 = vmul.f32 %v4902, %v4912
        %v4950 = vmul.f32 %v4904, %v4916
        %s4951 = scalar_lea.vmem %s5, 3
        %v4952 = vld [vmem:[%s4951] ss:$4 sm:$0x3]
        %v4954 = vlaneseq
        %v4955 = vshrl.u32 %v4954, 7
        %v4956 = vsub.s32 0, %v4955
        %v4957 = vrot.slane %v4952, %v4956
        %v4958 = vlaneseq
        %v4959 = vshrl.u32 %v4958, 7
        %v4960 = vsub.s32 1, %v4959
        %v4961 = vrot.slane %v4952, %v4960
        %v4964 = vadd.f32 %v4919, %v4957
        %v4965 = vadd.f32 %v4920, %v4961
        %v4966 = vadd.f32 %v4921, %v4957
        %v4967 = vadd.f32 %v4922, %v4961
        %v4968 = vadd.f32 %v4923, %v4957
        %v4969 = vadd.f32 %v4924, %v4961
        %v4970 = vadd.f32 %v4925, %v4957
        %v4971 = vadd.f32 %v4926, %v4961
        %v4972 = vadd.f32 %v4927, %v4957
        %v4973 = vadd.f32 %v4928, %v4961
        %v4974 = vadd.f32 %v4929, %v4957
        %v4975 = vadd.f32 %v4930, %v4961
        %v4976 = vadd.f32 %v4931, %v4957
        %v4977 = vadd.f32 %v4932, %v4961
        %v4978 = vadd.f32 %v4933, %v4957
        %v4979 = vadd.f32 %v4934, %v4961
        %v4980 = vadd.f32 %v4935, %v4957
        %v4981 = vadd.f32 %v4936, %v4961
        %v4982 = vadd.f32 %v4937, %v4957
        %v4983 = vadd.f32 %v4938, %v4961
        %v4984 = vadd.f32 %v4939, %v4957
        %v4985 = vadd.f32 %v4940, %v4961
        %v4986 = vadd.f32 %v4941, %v4957
        %v4987 = vadd.f32 %v4942, %v4961
        %v4988 = vadd.f32 %v4943, %v4957
        %v4989 = vadd.f32 %v4944, %v4961
        %v4990 = vadd.f32 %v4945, %v4957
        %v4991 = vadd.f32 %v4946, %v4961
        %v4992 = vadd.f32 %v4947, %v4957
        %v4993 = vadd.f32 %v4948, %v4961
        %v4994 = vadd.f32 %v4949, %v4957
        %v4995 = vadd.f32 %v4950, %v4961
        %v4996 = vmax.f32 %v4964, 0.0
        %v4997 = vmax.f32 %v4965, 0.0
        %v4998 = vmax.f32 %v4966, 0.0
        %v4999 = vmax.f32 %v4967, 0.0
        %v5000 = vmax.f32 %v4968, 0.0
        %v5001 = vmax.f32 %v4969, 0.0
        %v5002 = vmax.f32 %v4970, 0.0
        %v5003 = vmax.f32 %v4971, 0.0
        %v5004 = vmax.f32 %v4972, 0.0
        %v5005 = vmax.f32 %v4973, 0.0
        %v5006 = vmax.f32 %v4974, 0.0
        %v5007 = vmax.f32 %v4975, 0.0
        %v5008 = vmax.f32 %v4976, 0.0
        %v5009 = vmax.f32 %v4977, 0.0
        %v5010 = vmax.f32 %v4978, 0.0
        %v5011 = vmax.f32 %v4979, 0.0
        %v5012 = vmax.f32 %v4980, 0.0
        %v5013 = vmax.f32 %v4981, 0.0
        %v5014 = vmax.f32 %v4982, 0.0
        %v5015 = vmax.f32 %v4983, 0.0
        %v5016 = vmax.f32 %v4984, 0.0
        %v5017 = vmax.f32 %v4985, 0.0
        %v5018 = vmax.f32 %v4986, 0.0
        %v5019 = vmax.f32 %v4987, 0.0
        %v5020 = vmax.f32 %v4988, 0.0
        %v5021 = vmax.f32 %v4989, 0.0
        %v5022 = vmax.f32 %v4990, 0.0
        %v5023 = vmax.f32 %v4991, 0.0
        %v5024 = vmax.f32 %v4992, 0.0
        %v5025 = vmax.f32 %v4993, 0.0
        %v5026 = vmax.f32 %v4994, 0.0
        %v5027 = vmax.f32 %v4995, 0.0
        %v5028 = vpack.c.bf16 %v749, %v747
        %v5029 = vpack.c.bf16 %v750, %v748
        %v5030 = vpack.c.bf16 %v2182, %v2180
        %v5031 = vpack.c.bf16 %v2183, %v2181
        %v5032 = vpack.c.bf16 %v3758, %v3756
        %v5033 = vpack.c.bf16 %v3759, %v3757
        %v5034 = vpack.c.bf16 %v4998, %v4996
        %v5035 = vpack.c.bf16 %v4999, %v4997
        %v5036 = vpack.c.bf16 %v753, %v751
        %v5037 = vpack.c.bf16 %v754, %v752
        %v5038 = vpack.c.bf16 %v2186, %v2184
        %v5039 = vpack.c.bf16 %v2187, %v2185
        %v5040 = vpack.c.bf16 %v3762, %v3760
        %v5041 = vpack.c.bf16 %v3763, %v3761
        %v5042 = vpack.c.bf16 %v5002, %v5000
        %v5043 = vpack.c.bf16 %v5003, %v5001
        %v5044 = vpack.c.bf16 %v757, %v755
        %v5045 = vpack.c.bf16 %v758, %v756
        %v5046 = vpack.c.bf16 %v2190, %v2188
        %v5047 = vpack.c.bf16 %v2191, %v2189
        %v5048 = vpack.c.bf16 %v3766, %v3764
        %v5049 = vpack.c.bf16 %v3767, %v3765
        %v5050 = vpack.c.bf16 %v5006, %v5004
        %v5051 = vpack.c.bf16 %v5007, %v5005
        %v5052 = vpack.c.bf16 %v761, %v759
        %v5053 = vpack.c.bf16 %v762, %v760
        %v5054 = vpack.c.bf16 %v2194, %v2192
        %v5055 = vpack.c.bf16 %v2195, %v2193
        %v5056 = vpack.c.bf16 %v3770, %v3768
        %v5057 = vpack.c.bf16 %v3771, %v3769
        %v5058 = vpack.c.bf16 %v5010, %v5008
        %v5059 = vpack.c.bf16 %v5011, %v5009
        %v5060 = vpack.c.bf16 %v765, %v763
        %v5061 = vpack.c.bf16 %v766, %v764
        %v5062 = vpack.c.bf16 %v2198, %v2196
        %v5063 = vpack.c.bf16 %v2199, %v2197
        %v5064 = vpack.c.bf16 %v3774, %v3772
        %v5065 = vpack.c.bf16 %v3775, %v3773
        %v5066 = vpack.c.bf16 %v5014, %v5012
        %v5067 = vpack.c.bf16 %v5015, %v5013
        %v5068 = vpack.c.bf16 %v769, %v767
        %v5069 = vpack.c.bf16 %v770, %v768
        %v5070 = vpack.c.bf16 %v2202, %v2200
        %v5071 = vpack.c.bf16 %v2203, %v2201
        %v5072 = vpack.c.bf16 %v3778, %v3776
        %v5073 = vpack.c.bf16 %v3779, %v3777
        %v5074 = vpack.c.bf16 %v5018, %v5016
        %v5075 = vpack.c.bf16 %v5019, %v5017
        %v5076 = vpack.c.bf16 %v773, %v771
        %v5077 = vpack.c.bf16 %v774, %v772
        %v5078 = vpack.c.bf16 %v2206, %v2204
        %v5079 = vpack.c.bf16 %v2207, %v2205
        %v5080 = vpack.c.bf16 %v3782, %v3780
        %v5081 = vpack.c.bf16 %v3783, %v3781
        %v5082 = vpack.c.bf16 %v5022, %v5020
        %v5083 = vpack.c.bf16 %v5023, %v5021
        %v5084 = vpack.c.bf16 %v777, %v775
        %v5085 = vpack.c.bf16 %v778, %v776
        %v5086 = vpack.c.bf16 %v2210, %v2208
        %v5087 = vpack.c.bf16 %v2211, %v2209
        %v5088 = vpack.c.bf16 %v3786, %v3784
        %v5089 = vpack.c.bf16 %v3787, %v3785
        %v5090 = vpack.c.bf16 %v5026, %v5024
        %v5091 = vpack.c.bf16 %v5027, %v5025
        %v5092 = vld [vmem:[%s3] sm:$0xff]
        %v5093 = vld [vmem:[%s3 + $0x8] sm:$0xff]
        %v5094 = vld [vmem:[%s3 + $0x10] sm:$0xff]
        %v5095 = vld [vmem:[%s3 + $0x18] sm:$0xff]
        %v5096 = vld [vmem:[%s3 + $0x20] sm:$0xff]
        %v5097 = vld [vmem:[%s3 + $0x28] sm:$0xff]
        %v5098 = vld [vmem:[%s3 + $0x30] sm:$0xff]
        %v5099 = vld [vmem:[%s3 + $0x38] sm:$0xff]
        %v5100 = vld [vmem:[%s3 + $0x40] sm:$0xff]
        %v5101 = vld [vmem:[%s3 + $0x48] sm:$0xff]
        %v5102 = vld [vmem:[%s3 + $0x50] sm:$0xff]
        %v5103 = vld [vmem:[%s3 + $0x58] sm:$0xff]
        %v5104 = vld [vmem:[%s3 + $0x60] sm:$0xff]
        %v5105 = vld [vmem:[%s3 + $0x68] sm:$0xff]
        %v5106 = vld [vmem:[%s3 + $0x70] sm:$0xff]
        %v5107 = vld [vmem:[%s3 + $0x78] sm:$0xff]
        %v5108 = vld [vmem:[%s3 + $0x80] sm:$0xff]
        %v5109 = vld [vmem:[%s3 + $0x88] sm:$0xff]
        %v5110 = vld [vmem:[%s3 + $0x90] sm:$0xff]
        %v5111 = vld [vmem:[%s3 + $0x98] sm:$0xff]
        %v5112 = vld [vmem:[%s3 + $0xa0] sm:$0xff]
        %v5113 = vld [vmem:[%s3 + $0xa8] sm:$0xff]
        %v5114 = vld [vmem:[%s3 + $0xb0] sm:$0xff]
        %v5115 = vld [vmem:[%s3 + $0xb8] sm:$0xff]
        %v5116 = vld [vmem:[%s3 + $0xc0] sm:$0xff]
        %v5117 = vld [vmem:[%s3 + $0xc8] sm:$0xff]
        %v5118 = vld [vmem:[%s3 + $0xd0] sm:$0xff]
        %v5119 = vld [vmem:[%s3 + $0xd8] sm:$0xff]
        %v5120 = vld [vmem:[%s3 + $0xe0] sm:$0xff]
        %v5121 = vld [vmem:[%s3 + $0xe8] sm:$0xff]
        %v5122 = vld [vmem:[%s3 + $0xf0] sm:$0xff]
        %v5123 = vld [vmem:[%s3 + $0xf8] sm:$0xff]
        %v5124 = vld [vmem:[%s3 + $0x100] sm:$0xff]
        %v5125 = vld [vmem:[%s3 + $0x108] sm:$0xff]
        %v5126 = vld [vmem:[%s3 + $0x110] sm:$0xff]
        %v5127 = vld [vmem:[%s3 + $0x118] sm:$0xff]
        %v5128 = vld [vmem:[%s3 + $0x120] sm:$0xff]
        %v5129 = vld [vmem:[%s3 + $0x128] sm:$0xff]
        %v5130 = vld [vmem:[%s3 + $0x130] sm:$0xff]
        %v5131 = vld [vmem:[%s3 + $0x138] sm:$0xff]
        %v5132 = vld [vmem:[%s3 + $0x140] sm:$0xff]
        %v5133 = vld [vmem:[%s3 + $0x148] sm:$0xff]
        %v5134 = vld [vmem:[%s3 + $0x150] sm:$0xff]
        %v5135 = vld [vmem:[%s3 + $0x158] sm:$0xff]
        %v5136 = vld [vmem:[%s3 + $0x160] sm:$0xff]
        %v5137 = vld [vmem:[%s3 + $0x168] sm:$0xff]
        %v5138 = vld [vmem:[%s3 + $0x170] sm:$0xff]
        %v5139 = vld [vmem:[%s3 + $0x178] sm:$0xff]
        %v5140 = vld [vmem:[%s3 + $0x180] sm:$0xff]
        %v5141 = vld [vmem:[%s3 + $0x188] sm:$0xff]
        %v5142 = vld [vmem:[%s3 + $0x190] sm:$0xff]
        %v5143 = vld [vmem:[%s3 + $0x198] sm:$0xff]
        %v5144 = vld [vmem:[%s3 + $0x1a0] sm:$0xff]
        %v5145 = vld [vmem:[%s3 + $0x1a8] sm:$0xff]
        %v5146 = vld [vmem:[%s3 + $0x1b0] sm:$0xff]
        %v5147 = vld [vmem:[%s3 + $0x1b8] sm:$0xff]
        %v5148 = vld [vmem:[%s3 + $0x1c0] sm:$0xff]
        %v5149 = vld [vmem:[%s3 + $0x1c8] sm:$0xff]
        %v5150 = vld [vmem:[%s3 + $0x1d0] sm:$0xff]
        %v5151 = vld [vmem:[%s3 + $0x1d8] sm:$0xff]
        %v5152 = vld [vmem:[%s3 + $0x1e0] sm:$0xff]
        %v5153 = vld [vmem:[%s3 + $0x1e8] sm:$0xff]
        %v5154 = vld [vmem:[%s3 + $0x1f0] sm:$0xff]
        %v5155 = vld [vmem:[%s3 + $0x1f8] sm:$0xff]
        %v5156 = vld [vmem:[%s3 + $0x200] sm:$0xff]
        %v5157 = vld [vmem:[%s3 + $0x208] sm:$0xff]
        %v5158 = vld [vmem:[%s3 + $0x210] sm:$0xff]
        %v5159 = vld [vmem:[%s3 + $0x218] sm:$0xff]
        %v5160 = vld [vmem:[%s3 + $0x220] sm:$0xff]
        %v5161 = vld [vmem:[%s3 + $0x228] sm:$0xff]
        %v5162 = vld [vmem:[%s3 + $0x230] sm:$0xff]
        %v5163 = vld [vmem:[%s3 + $0x238] sm:$0xff]
        %v5164 = vld [vmem:[%s3 + $0x240] sm:$0xff]
        %v5165 = vld [vmem:[%s3 + $0x248] sm:$0xff]
        %v5166 = vld [vmem:[%s3 + $0x250] sm:$0xff]
        %v5167 = vld [vmem:[%s3 + $0x258] sm:$0xff]
        %v5168 = vld [vmem:[%s3 + $0x260] sm:$0xff]
        %v5169 = vld [vmem:[%s3 + $0x268] sm:$0xff]
        %v5170 = vld [vmem:[%s3 + $0x270] sm:$0xff]
        %v5171 = vld [vmem:[%s3 + $0x278] sm:$0xff]
        %v5172 = vld [vmem:[%s3 + $0x280] sm:$0xff]
        %v5173 = vld [vmem:[%s3 + $0x288] sm:$0xff]
        %v5174 = vld [vmem:[%s3 + $0x290] sm:$0xff]
        %v5175 = vld [vmem:[%s3 + $0x298] sm:$0xff]
        %v5176 = vld [vmem:[%s3 + $0x2a0] sm:$0xff]
        %v5177 = vld [vmem:[%s3 + $0x2a8] sm:$0xff]
        %v5178 = vld [vmem:[%s3 + $0x2b0] sm:$0xff]
        %v5179 = vld [vmem:[%s3 + $0x2b8] sm:$0xff]
        %v5180 = vld [vmem:[%s3 + $0x2c0] sm:$0xff]
        %v5181 = vld [vmem:[%s3 + $0x2c8] sm:$0xff]
        %v5182 = vld [vmem:[%s3 + $0x2d0] sm:$0xff]
        %v5183 = vld [vmem:[%s3 + $0x2d8] sm:$0xff]
        %v5184 = vld [vmem:[%s3 + $0x2e0] sm:$0xff]
        %v5185 = vld [vmem:[%s3 + $0x2e8] sm:$0xff]
        %v5186 = vld [vmem:[%s3 + $0x2f0] sm:$0xff]
        %v5187 = vld [vmem:[%s3 + $0x2f8] sm:$0xff]
        %v5188 = vld [vmem:[%s3 + $0x300] sm:$0xff]
        %v5189 = vld [vmem:[%s3 + $0x308] sm:$0xff]
        %v5190 = vld [vmem:[%s3 + $0x310] sm:$0xff]
        %v5191 = vld [vmem:[%s3 + $0x318] sm:$0xff]
        %v5192 = vld [vmem:[%s3 + $0x320] sm:$0xff]
        %v5193 = vld [vmem:[%s3 + $0x328] sm:$0xff]
        %v5194 = vld [vmem:[%s3 + $0x330] sm:$0xff]
        %v5195 = vld [vmem:[%s3 + $0x338] sm:$0xff]
        %v5196 = vld [vmem:[%s3 + $0x340] sm:$0xff]
        %v5197 = vld [vmem:[%s3 + $0x348] sm:$0xff]
        %v5198 = vld [vmem:[%s3 + $0x350] sm:$0xff]
        %v5199 = vld [vmem:[%s3 + $0x358] sm:$0xff]
        %v5200 = vld [vmem:[%s3 + $0x360] sm:$0xff]
        %v5201 = vld [vmem:[%s3 + $0x368] sm:$0xff]
        %v5202 = vld [vmem:[%s3 + $0x370] sm:$0xff]
        %v5203 = vld [vmem:[%s3 + $0x378] sm:$0xff]
        %v5204 = vld [vmem:[%s3 + $0x380] sm:$0xff]
        %v5205 = vld [vmem:[%s3 + $0x388] sm:$0xff]
        %v5206 = vld [vmem:[%s3 + $0x390] sm:$0xff]
        %v5207 = vld [vmem:[%s3 + $0x398] sm:$0xff]
        %v5208 = vld [vmem:[%s3 + $0x3a0] sm:$0xff]
        %v5209 = vld [vmem:[%s3 + $0x3a8] sm:$0xff]
        %v5210 = vld [vmem:[%s3 + $0x3b0] sm:$0xff]
        %v5211 = vld [vmem:[%s3 + $0x3b8] sm:$0xff]
        %v5212 = vld [vmem:[%s3 + $0x3c0] sm:$0xff]
        %v5213 = vld [vmem:[%s3 + $0x3c8] sm:$0xff]
        %v5214 = vld [vmem:[%s3 + $0x3d0] sm:$0xff]
        %v5215 = vld [vmem:[%s3 + $0x3d8] sm:$0xff]
        %v5216 = vld [vmem:[%s3 + $0x3e0] sm:$0xff]
        %v5217 = vld [vmem:[%s3 + $0x3e8] sm:$0xff]
        %v5218 = vld [vmem:[%s3 + $0x3f0] sm:$0xff]
        %v5219 = vld [vmem:[%s3 + $0x3f8] sm:$0xff]
        %v5220 = vld [vmem:[%s363] sm:$0x3]
        %v5222 = vlaneseq
        %v5223 = vshrl.u32 %v5222, 7
        %v5224 = vsub.s32 0, %v5223
        %v5225 = vrot.slane %v5220, %v5224
        %v5226 = vlaneseq
        %v5227 = vshrl.u32 %v5226, 7
        %v5228 = vsub.s32 1, %v5227
        %v5229 = vrot.slane %v5220, %v5228
        %v5360 = vunpack.c.l.b16 %v5092
        %v5361 = vunpack.c.h.b16 %v5092
        %v5362 = vunpack.c.l.b16 %v5093
        %v5363 = vunpack.c.h.b16 %v5093
        %v5364 = vunpack.c.l.b16 %v5094
        %v5365 = vunpack.c.h.b16 %v5094
        %v5366 = vunpack.c.l.b16 %v5095
        %v5367 = vunpack.c.h.b16 %v5095
        %v5368 = vunpack.c.l.b16 %v5096
        %v5369 = vunpack.c.h.b16 %v5096
        %v5370 = vunpack.c.l.b16 %v5097
        %v5371 = vunpack.c.h.b16 %v5097
        %v5372 = vunpack.c.l.b16 %v5098
        %v5373 = vunpack.c.h.b16 %v5098
        %v5374 = vunpack.c.l.b16 %v5099
        %v5375 = vunpack.c.h.b16 %v5099
        %v5376 = vunpack.c.l.b16 %v5100
        %v5377 = vunpack.c.h.b16 %v5100
        %v5378 = vunpack.c.l.b16 %v5101
        %v5379 = vunpack.c.h.b16 %v5101
        %v5380 = vunpack.c.l.b16 %v5102
        %v5381 = vunpack.c.h.b16 %v5102
        %v5382 = vunpack.c.l.b16 %v5103
        %v5383 = vunpack.c.h.b16 %v5103
        %v5384 = vunpack.c.l.b16 %v5104
        %v5385 = vunpack.c.h.b16 %v5104
        %v5386 = vunpack.c.l.b16 %v5105
        %v5387 = vunpack.c.h.b16 %v5105
        %v5388 = vunpack.c.l.b16 %v5106
        %v5389 = vunpack.c.h.b16 %v5106
        %v5390 = vunpack.c.l.b16 %v5107
        %v5391 = vunpack.c.h.b16 %v5107
        %v5392 = vunpack.c.l.b16 %v5108
        %v5393 = vunpack.c.h.b16 %v5108
        %v5394 = vunpack.c.l.b16 %v5109
        %v5395 = vunpack.c.h.b16 %v5109
        %v5396 = vunpack.c.l.b16 %v5110
        %v5397 = vunpack.c.h.b16 %v5110
        %v5398 = vunpack.c.l.b16 %v5111
        %v5399 = vunpack.c.h.b16 %v5111
        %v5400 = vunpack.c.l.b16 %v5112
        %v5401 = vunpack.c.h.b16 %v5112
        %v5402 = vunpack.c.l.b16 %v5113
        %v5403 = vunpack.c.h.b16 %v5113
        %v5404 = vunpack.c.l.b16 %v5114
        %v5405 = vunpack.c.h.b16 %v5114
        %v5406 = vunpack.c.l.b16 %v5115
        %v5407 = vunpack.c.h.b16 %v5115
        %v5408 = vunpack.c.l.b16 %v5116
        %v5409 = vunpack.c.h.b16 %v5116
        %v5410 = vunpack.c.l.b16 %v5117
        %v5411 = vunpack.c.h.b16 %v5117
        %v5412 = vunpack.c.l.b16 %v5118
        %v5413 = vunpack.c.h.b16 %v5118
        %v5414 = vunpack.c.l.b16 %v5119
        %v5415 = vunpack.c.h.b16 %v5119
        %v5416 = vunpack.c.l.b16 %v5120
        %v5417 = vunpack.c.h.b16 %v5120
        %v5418 = vunpack.c.l.b16 %v5121
        %v5419 = vunpack.c.h.b16 %v5121
        %v5420 = vunpack.c.l.b16 %v5122
        %v5421 = vunpack.c.h.b16 %v5122
        %v5422 = vunpack.c.l.b16 %v5123
        %v5423 = vunpack.c.h.b16 %v5123
        %v5424 = vunpack.c.l.b16 %v5124
        %v5425 = vunpack.c.h.b16 %v5124
        %v5426 = vunpack.c.l.b16 %v5125
        %v5427 = vunpack.c.h.b16 %v5125
        %v5428 = vunpack.c.l.b16 %v5126
        %v5429 = vunpack.c.h.b16 %v5126
        %v5430 = vunpack.c.l.b16 %v5127
        %v5431 = vunpack.c.h.b16 %v5127
        %v5432 = vunpack.c.l.b16 %v5128
        %v5433 = vunpack.c.h.b16 %v5128
        %v5434 = vunpack.c.l.b16 %v5129
        %v5435 = vunpack.c.h.b16 %v5129
        %v5436 = vunpack.c.l.b16 %v5130
        %v5437 = vunpack.c.h.b16 %v5130
        %v5438 = vunpack.c.l.b16 %v5131
        %v5439 = vunpack.c.h.b16 %v5131
        %v5440 = vunpack.c.l.b16 %v5132
        %v5441 = vunpack.c.h.b16 %v5132
        %v5442 = vunpack.c.l.b16 %v5133
        %v5443 = vunpack.c.h.b16 %v5133
        %v5444 = vunpack.c.l.b16 %v5134
        %v5445 = vunpack.c.h.b16 %v5134
        %v5446 = vunpack.c.l.b16 %v5135
        %v5447 = vunpack.c.h.b16 %v5135
        %v5448 = vunpack.c.l.b16 %v5136
        %v5449 = vunpack.c.h.b16 %v5136
        %v5450 = vunpack.c.l.b16 %v5137
        %v5451 = vunpack.c.h.b16 %v5137
        %v5452 = vunpack.c.l.b16 %v5138
        %v5453 = vunpack.c.h.b16 %v5138
        %v5454 = vunpack.c.l.b16 %v5139
        %v5455 = vunpack.c.h.b16 %v5139
        %v5456 = vunpack.c.l.b16 %v5140
        %v5457 = vunpack.c.h.b16 %v5140
        %v5458 = vunpack.c.l.b16 %v5141
        %v5459 = vunpack.c.h.b16 %v5141
        %v5460 = vunpack.c.l.b16 %v5142
        %v5461 = vunpack.c.h.b16 %v5142
        %v5462 = vunpack.c.l.b16 %v5143
        %v5463 = vunpack.c.h.b16 %v5143
        %v5464 = vunpack.c.l.b16 %v5144
        %v5465 = vunpack.c.h.b16 %v5144
        %v5466 = vunpack.c.l.b16 %v5145
        %v5467 = vunpack.c.h.b16 %v5145
        %v5468 = vunpack.c.l.b16 %v5146
        %v5469 = vunpack.c.h.b16 %v5146
        %v5470 = vunpack.c.l.b16 %v5147
        %v5471 = vunpack.c.h.b16 %v5147
        %v5472 = vunpack.c.l.b16 %v5148
        %v5473 = vunpack.c.h.b16 %v5148
        %v5474 = vunpack.c.l.b16 %v5149
        %v5475 = vunpack.c.h.b16 %v5149
        %v5476 = vunpack.c.l.b16 %v5150
        %v5477 = vunpack.c.h.b16 %v5150
        %v5478 = vunpack.c.l.b16 %v5151
        %v5479 = vunpack.c.h.b16 %v5151
        %v5480 = vunpack.c.l.b16 %v5152
        %v5481 = vunpack.c.h.b16 %v5152
        %v5482 = vunpack.c.l.b16 %v5153
        %v5483 = vunpack.c.h.b16 %v5153
        %v5484 = vunpack.c.l.b16 %v5154
        %v5485 = vunpack.c.h.b16 %v5154
        %v5486 = vunpack.c.l.b16 %v5155
        %v5487 = vunpack.c.h.b16 %v5155
        %v5488 = vunpack.c.l.b16 %v5156
        %v5489 = vunpack.c.h.b16 %v5156
        %v5490 = vunpack.c.l.b16 %v5157
        %v5491 = vunpack.c.h.b16 %v5157
        %v5492 = vunpack.c.l.b16 %v5158
        %v5493 = vunpack.c.h.b16 %v5158
        %v5494 = vunpack.c.l.b16 %v5159
        %v5495 = vunpack.c.h.b16 %v5159
        %v5496 = vunpack.c.l.b16 %v5160
        %v5497 = vunpack.c.h.b16 %v5160
        %v5498 = vunpack.c.l.b16 %v5161
        %v5499 = vunpack.c.h.b16 %v5161
        %v5500 = vunpack.c.l.b16 %v5162
        %v5501 = vunpack.c.h.b16 %v5162
        %v5502 = vunpack.c.l.b16 %v5163
        %v5503 = vunpack.c.h.b16 %v5163
        %v5504 = vunpack.c.l.b16 %v5164
        %v5505 = vunpack.c.h.b16 %v5164
        %v5506 = vunpack.c.l.b16 %v5165
        %v5507 = vunpack.c.h.b16 %v5165
        %v5508 = vunpack.c.l.b16 %v5166
        %v5509 = vunpack.c.h.b16 %v5166
        %v5510 = vunpack.c.l.b16 %v5167
        %v5511 = vunpack.c.h.b16 %v5167
        %v5512 = vunpack.c.l.b16 %v5168
        %v5513 = vunpack.c.h.b16 %v5168
        %v5514 = vunpack.c.l.b16 %v5169
        %v5515 = vunpack.c.h.b16 %v5169
        %v5516 = vunpack.c.l.b16 %v5170
        %v5517 = vunpack.c.h.b16 %v5170
        %v5518 = vunpack.c.l.b16 %v5171
        %v5519 = vunpack.c.h.b16 %v5171
        %v5520 = vunpack.c.l.b16 %v5172
        %v5521 = vunpack.c.h.b16 %v5172
        %v5522 = vunpack.c.l.b16 %v5173
        %v5523 = vunpack.c.h.b16 %v5173
        %v5524 = vunpack.c.l.b16 %v5174
        %v5525 = vunpack.c.h.b16 %v5174
        %v5526 = vunpack.c.l.b16 %v5175
        %v5527 = vunpack.c.h.b16 %v5175
        %v5528 = vunpack.c.l.b16 %v5176
        %v5529 = vunpack.c.h.b16 %v5176
        %v5530 = vunpack.c.l.b16 %v5177
        %v5531 = vunpack.c.h.b16 %v5177
        %v5532 = vunpack.c.l.b16 %v5178
        %v5533 = vunpack.c.h.b16 %v5178
        %v5534 = vunpack.c.l.b16 %v5179
        %v5535 = vunpack.c.h.b16 %v5179
        %v5536 = vunpack.c.l.b16 %v5180
        %v5537 = vunpack.c.h.b16 %v5180
        %v5538 = vunpack.c.l.b16 %v5181
        %v5539 = vunpack.c.h.b16 %v5181
        %v5540 = vunpack.c.l.b16 %v5182
        %v5541 = vunpack.c.h.b16 %v5182
        %v5542 = vunpack.c.l.b16 %v5183
        %v5543 = vunpack.c.h.b16 %v5183
        %v5544 = vunpack.c.l.b16 %v5184
        %v5545 = vunpack.c.h.b16 %v5184
        %v5546 = vunpack.c.l.b16 %v5185
        %v5547 = vunpack.c.h.b16 %v5185
        %v5548 = vunpack.c.l.b16 %v5186
        %v5549 = vunpack.c.h.b16 %v5186
        %v5550 = vunpack.c.l.b16 %v5187
        %v5551 = vunpack.c.h.b16 %v5187
        %v5552 = vunpack.c.l.b16 %v5188
        %v5553 = vunpack.c.h.b16 %v5188
        %v5554 = vunpack.c.l.b16 %v5189
        %v5555 = vunpack.c.h.b16 %v5189
        %v5556 = vunpack.c.l.b16 %v5190
        %v5557 = vunpack.c.h.b16 %v5190
        %v5558 = vunpack.c.l.b16 %v5191
        %v5559 = vunpack.c.h.b16 %v5191
        %v5560 = vunpack.c.l.b16 %v5192
        %v5561 = vunpack.c.h.b16 %v5192
        %v5562 = vunpack.c.l.b16 %v5193
        %v5563 = vunpack.c.h.b16 %v5193
        %v5564 = vunpack.c.l.b16 %v5194
        %v5565 = vunpack.c.h.b16 %v5194
        %v5566 = vunpack.c.l.b16 %v5195
        %v5567 = vunpack.c.h.b16 %v5195
        %v5568 = vunpack.c.l.b16 %v5196
        %v5569 = vunpack.c.h.b16 %v5196
        %v5570 = vunpack.c.l.b16 %v5197
        %v5571 = vunpack.c.h.b16 %v5197
        %v5572 = vunpack.c.l.b16 %v5198
        %v5573 = vunpack.c.h.b16 %v5198
        %v5574 = vunpack.c.l.b16 %v5199
        %v5575 = vunpack.c.h.b16 %v5199
        %v5576 = vunpack.c.l.b16 %v5200
        %v5577 = vunpack.c.h.b16 %v5200
        %v5578 = vunpack.c.l.b16 %v5201
        %v5579 = vunpack.c.h.b16 %v5201
        %v5580 = vunpack.c.l.b16 %v5202
        %v5581 = vunpack.c.h.b16 %v5202
        %v5582 = vunpack.c.l.b16 %v5203
        %v5583 = vunpack.c.h.b16 %v5203
        %v5584 = vunpack.c.l.b16 %v5204
        %v5585 = vunpack.c.h.b16 %v5204
        %v5586 = vunpack.c.l.b16 %v5205
        %v5587 = vunpack.c.h.b16 %v5205
        %v5588 = vunpack.c.l.b16 %v5206
        %v5589 = vunpack.c.h.b16 %v5206
        %v5590 = vunpack.c.l.b16 %v5207
        %v5591 = vunpack.c.h.b16 %v5207
        %v5592 = vunpack.c.l.b16 %v5208
        %v5593 = vunpack.c.h.b16 %v5208
        %v5594 = vunpack.c.l.b16 %v5209
        %v5595 = vunpack.c.h.b16 %v5209
        %v5596 = vunpack.c.l.b16 %v5210
        %v5597 = vunpack.c.h.b16 %v5210
        %v5598 = vunpack.c.l.b16 %v5211
        %v5599 = vunpack.c.h.b16 %v5211
        %v5600 = vunpack.c.l.b16 %v5212
        %v5601 = vunpack.c.h.b16 %v5212
        %v5602 = vunpack.c.l.b16 %v5213
        %v5603 = vunpack.c.h.b16 %v5213
        %v5604 = vunpack.c.l.b16 %v5214
        %v5605 = vunpack.c.h.b16 %v5214
        %v5606 = vunpack.c.l.b16 %v5215
        %v5607 = vunpack.c.h.b16 %v5215
        %v5608 = vunpack.c.l.b16 %v5216
        %v5609 = vunpack.c.h.b16 %v5216
        %v5610 = vunpack.c.l.b16 %v5217
        %v5611 = vunpack.c.h.b16 %v5217
        %v5612 = vunpack.c.l.b16 %v5218
        %v5613 = vunpack.c.h.b16 %v5218
        %v5614 = vunpack.c.l.b16 %v5219
        %v5615 = vunpack.c.h.b16 %v5219
        %v5616 = vpack.c.b16 %v5362, %v5360
        %v5617 = vpack.c.b16 %v5363, %v5361
        %v5618 = vpack.c.b16 %v5366, %v5364
        %v5619 = vpack.c.b16 %v5367, %v5365
        %v5620 = vpack.c.b16 %v5370, %v5368
        %v5621 = vpack.c.b16 %v5371, %v5369
        %v5622 = vpack.c.b16 %v5374, %v5372
        %v5623 = vpack.c.b16 %v5375, %v5373
        %v5624 = vpack.c.b16 %v5378, %v5376
        %v5625 = vpack.c.b16 %v5379, %v5377
        %v5626 = vpack.c.b16 %v5382, %v5380
        %v5627 = vpack.c.b16 %v5383, %v5381
        %v5628 = vpack.c.b16 %v5386, %v5384
        %v5629 = vpack.c.b16 %v5387, %v5385
        %v5630 = vpack.c.b16 %v5390, %v5388
        %v5631 = vpack.c.b16 %v5391, %v5389
        %v5632 = vpack.c.b16 %v5394, %v5392
        %v5633 = vpack.c.b16 %v5395, %v5393
        %v5634 = vpack.c.b16 %v5398, %v5396
        %v5635 = vpack.c.b16 %v5399, %v5397
        %v5636 = vpack.c.b16 %v5402, %v5400
        %v5637 = vpack.c.b16 %v5403, %v5401
        %v5638 = vpack.c.b16 %v5406, %v5404
        %v5639 = vpack.c.b16 %v5407, %v5405
        %v5640 = vpack.c.b16 %v5410, %v5408
        %v5641 = vpack.c.b16 %v5411, %v5409
        %v5642 = vpack.c.b16 %v5414, %v5412
        %v5643 = vpack.c.b16 %v5415, %v5413
        %v5644 = vpack.c.b16 %v5418, %v5416
        %v5645 = vpack.c.b16 %v5419, %v5417
        %v5646 = vpack.c.b16 %v5422, %v5420
        %v5647 = vpack.c.b16 %v5423, %v5421
        %v5648 = vpack.c.b16 %v5426, %v5424
        %v5649 = vpack.c.b16 %v5427, %v5425
        %v5650 = vpack.c.b16 %v5430, %v5428
        %v5651 = vpack.c.b16 %v5431, %v5429
        %v5652 = vpack.c.b16 %v5434, %v5432
        %v5653 = vpack.c.b16 %v5435, %v5433
        %v5654 = vpack.c.b16 %v5438, %v5436
        %v5655 = vpack.c.b16 %v5439, %v5437
        %v5656 = vpack.c.b16 %v5442, %v5440
        %v5657 = vpack.c.b16 %v5443, %v5441
        %v5658 = vpack.c.b16 %v5446, %v5444
        %v5659 = vpack.c.b16 %v5447, %v5445
        %v5660 = vpack.c.b16 %v5450, %v5448
        %v5661 = vpack.c.b16 %v5451, %v5449
        %v5662 = vpack.c.b16 %v5454, %v5452
        %v5663 = vpack.c.b16 %v5455, %v5453
        %v5664 = vpack.c.b16 %v5458, %v5456
        %v5665 = vpack.c.b16 %v5459, %v5457
        %v5666 = vpack.c.b16 %v5462, %v5460
        %v5667 = vpack.c.b16 %v5463, %v5461
        %v5668 = vpack.c.b16 %v5466, %v5464
        %v5669 = vpack.c.b16 %v5467, %v5465
        %v5670 = vpack.c.b16 %v5470, %v5468
        %v5671 = vpack.c.b16 %v5471, %v5469
        %v5672 = vpack.c.b16 %v5474, %v5472
        %v5673 = vpack.c.b16 %v5475, %v5473
        %v5674 = vpack.c.b16 %v5478, %v5476
        %v5675 = vpack.c.b16 %v5479, %v5477
        %v5676 = vpack.c.b16 %v5482, %v5480
        %v5677 = vpack.c.b16 %v5483, %v5481
        %v5678 = vpack.c.b16 %v5486, %v5484
        %v5679 = vpack.c.b16 %v5487, %v5485
        %v5680 = vpack.c.b16 %v5490, %v5488
        %v5681 = vpack.c.b16 %v5491, %v5489
        %v5682 = vpack.c.b16 %v5494, %v5492
        %v5683 = vpack.c.b16 %v5495, %v5493
        %v5684 = vpack.c.b16 %v5498, %v5496
        %v5685 = vpack.c.b16 %v5499, %v5497
        %v5686 = vpack.c.b16 %v5502, %v5500
        %v5687 = vpack.c.b16 %v5503, %v5501
        %v5688 = vpack.c.b16 %v5506, %v5504
        %v5689 = vpack.c.b16 %v5507, %v5505
        %v5690 = vpack.c.b16 %v5510, %v5508
        %v5691 = vpack.c.b16 %v5511, %v5509
        %v5692 = vpack.c.b16 %v5514, %v5512
        %v5693 = vpack.c.b16 %v5515, %v5513
        %v5694 = vpack.c.b16 %v5518, %v5516
        %v5695 = vpack.c.b16 %v5519, %v5517
        %v5696 = vpack.c.b16 %v5522, %v5520
        %v5697 = vpack.c.b16 %v5523, %v5521
        %v5698 = vpack.c.b16 %v5526, %v5524
        %v5699 = vpack.c.b16 %v5527, %v5525
        %v5700 = vpack.c.b16 %v5530, %v5528
        %v5701 = vpack.c.b16 %v5531, %v5529
        %v5702 = vpack.c.b16 %v5534, %v5532
        %v5703 = vpack.c.b16 %v5535, %v5533
        %v5704 = vpack.c.b16 %v5538, %v5536
        %v5705 = vpack.c.b16 %v5539, %v5537
        %v5706 = vpack.c.b16 %v5542, %v5540
        %v5707 = vpack.c.b16 %v5543, %v5541
        %v5708 = vpack.c.b16 %v5546, %v5544
        %v5709 = vpack.c.b16 %v5547, %v5545
        %v5710 = vpack.c.b16 %v5550, %v5548
        %v5711 = vpack.c.b16 %v5551, %v5549
        %v5712 = vpack.c.b16 %v5554, %v5552
        %v5713 = vpack.c.b16 %v5555, %v5553
        %v5714 = vpack.c.b16 %v5558, %v5556
        %v5715 = vpack.c.b16 %v5559, %v5557
        %v5716 = vpack.c.b16 %v5562, %v5560
        %v5717 = vpack.c.b16 %v5563, %v5561
        %v5718 = vpack.c.b16 %v5566, %v5564
        %v5719 = vpack.c.b16 %v5567, %v5565
        %v5720 = vpack.c.b16 %v5570, %v5568
        %v5721 = vpack.c.b16 %v5571, %v5569
        %v5722 = vpack.c.b16 %v5574, %v5572
        %v5723 = vpack.c.b16 %v5575, %v5573
        %v5724 = vpack.c.b16 %v5578, %v5576
        %v5725 = vpack.c.b16 %v5579, %v5577
        %v5726 = vpack.c.b16 %v5582, %v5580
        %v5727 = vpack.c.b16 %v5583, %v5581
        %v5728 = vpack.c.b16 %v5586, %v5584
        %v5729 = vpack.c.b16 %v5587, %v5585
        %v5730 = vpack.c.b16 %v5590, %v5588
        %v5731 = vpack.c.b16 %v5591, %v5589
        %v5732 = vpack.c.b16 %v5594, %v5592
        %v5733 = vpack.c.b16 %v5595, %v5593
        %v5734 = vpack.c.b16 %v5598, %v5596
        %v5735 = vpack.c.b16 %v5599, %v5597
        %v5736 = vpack.c.b16 %v5602, %v5600
        %v5737 = vpack.c.b16 %v5603, %v5601
        %v5738 = vpack.c.b16 %v5606, %v5604
        %v5739 = vpack.c.b16 %v5607, %v5605
        %v5740 = vpack.c.b16 %v5610, %v5608
        %v5741 = vpack.c.b16 %v5611, %v5609
        %v5742 = vpack.c.b16 %v5614, %v5612
        %v5743 = vpack.c.b16 %v5615, %v5613
        %5872 = vmatprep.subr.bf16.mxu0 %v5631
        %5873 = vmatpush1.bf16.msra.mxu0 %v5630
        %5874 = vmatprep.subr.bf16.mxu0 %v5629
        %5875 = vmatpush1.bf16.msra.mxu0 %v5628
        %5876 = vmatprep.subr.bf16.mxu0 %v5627
        %5877 = vmatpush1.bf16.msra.mxu0 %v5626
        %5878 = vmatprep.subr.bf16.mxu0 %v5625
        %5879 = vmatpush1.bf16.msra.mxu0 %v5624
        %5880 = vmatprep.subr.bf16.mxu0 %v5623
        %5881 = vmatpush1.bf16.msra.mxu0 %v5622
        %5882 = vmatprep.subr.bf16.mxu0 %v5621
        %5883 = vmatpush1.bf16.msra.mxu0 %v5620
        %5884 = vmatprep.subr.bf16.mxu0 %v5619
        %5885 = vmatpush1.bf16.msra.mxu0 %v5618
        %5886 = vmatprep.subr.bf16.mxu0 %v5617
        %5887 = vmatpush1.bf16.msra.mxu0 %v5616
        %5888 = vmatprep.subr.bf16.mxu0 %v5647
        %5889 = vmatpush2.bf16.msra.mxu0 %v5646
        %5890 = vmatprep.subr.bf16.mxu0 %v5645
        %5891 = vmatpush2.bf16.msra.mxu0 %v5644
        %5892 = vmatprep.subr.bf16.mxu0 %v5643
        %5893 = vmatpush2.bf16.msra.mxu0 %v5642
        %5894 = vmatprep.subr.bf16.mxu0 %v5641
        %5895 = vmatpush2.bf16.msra.mxu0 %v5640
        %5896 = vmatprep.subr.bf16.mxu0 %v5639
        %5897 = vmatpush2.bf16.msra.mxu0 %v5638
        %5898 = vmatprep.subr.bf16.mxu0 %v5637
        %5899 = vmatpush2.bf16.msra.mxu0 %v5636
        %5900 = vmatprep.subr.bf16.mxu0 %v5635
        %5901 = vmatpush2.bf16.msra.mxu0 %v5634
        %5902 = vmatprep.subr.bf16.mxu0 %v5633
        %5903 = vmatpush2.bf16.msra.mxu0 %v5632
        %5904 = vmatprep.mubr.bf16.mxu0 %v5029
        %5905 = vmatmul.mubr.bf16.gmra.mxu0 %v5028
        %v5906 = vpop.f32.mrf.mxu0
        %v5907 = vadd.f32 %v5225, %v5906
        %v5908 = vpop.f32.mrf.mxu0
        %v5909 = vadd.f32 %v5229, %v5908
        %v5910 = vpop.f32.mrf.mxu0
        %v5911 = vadd.f32 %v5225, %v5910
        %v5912 = vpop.f32.mrf.mxu0
        %v5913 = vadd.f32 %v5229, %v5912
        %5914 = vmatprep.mubr.bf16.mxu0 %v5037
        %5915 = vmatmul.mubr.bf16.gmra.mxu0 %v5036
        %v5916 = vpop.f32.mrf.mxu0
        %v5917 = vadd.f32 %v5225, %v5916
        %v5918 = vpop.f32.mrf.mxu0
        %v5919 = vadd.f32 %v5229, %v5918
        %v5920 = vpop.f32.mrf.mxu0
        %v5921 = vadd.f32 %v5225, %v5920
        %v5922 = vpop.f32.mrf.mxu0
        %v5923 = vadd.f32 %v5229, %v5922
        %5924 = vmatprep.mubr.bf16.mxu0 %v5045
        %5925 = vmatmul.mubr.bf16.gmra.mxu0 %v5044
        %v5926 = vpop.f32.mrf.mxu0
        %v5927 = vadd.f32 %v5225, %v5926
        %v5928 = vpop.f32.mrf.mxu0
        %v5929 = vadd.f32 %v5229, %v5928
        %v5930 = vpop.f32.mrf.mxu0
        %v5931 = vadd.f32 %v5225, %v5930
        %v5932 = vpop.f32.mrf.mxu0
        %v5933 = vadd.f32 %v5229, %v5932
        %5934 = vmatprep.mubr.bf16.mxu0 %v5053
        %5935 = vmatmul.mubr.bf16.gmra.mxu0 %v5052
        %v5936 = vpop.f32.mrf.mxu0
        %v5937 = vadd.f32 %v5225, %v5936
        %v5938 = vpop.f32.mrf.mxu0
        %v5939 = vadd.f32 %v5229, %v5938
        %v5940 = vpop.f32.mrf.mxu0
        %v5941 = vadd.f32 %v5225, %v5940
        %v5942 = vpop.f32.mrf.mxu0
        %v5943 = vadd.f32 %v5229, %v5942
        %5944 = vmatprep.mubr.bf16.mxu0 %v5061
        %5945 = vmatmul.mubr.bf16.gmra.mxu0 %v5060
        %v5946 = vpop.f32.mrf.mxu0
        %v5947 = vadd.f32 %v5225, %v5946
        %v5948 = vpop.f32.mrf.mxu0
        %v5949 = vadd.f32 %v5229, %v5948
        %v5950 = vpop.f32.mrf.mxu0
        %v5951 = vadd.f32 %v5225, %v5950
        %v5952 = vpop.f32.mrf.mxu0
        %v5953 = vadd.f32 %v5229, %v5952
        %5954 = vmatprep.mubr.bf16.mxu0 %v5069
        %5955 = vmatmul.mubr.bf16.gmra.mxu0 %v5068
        %v5956 = vpop.f32.mrf.mxu0
        %v5957 = vadd.f32 %v5225, %v5956
        %v5958 = vpop.f32.mrf.mxu0
        %v5959 = vadd.f32 %v5229, %v5958
        %v5960 = vpop.f32.mrf.mxu0
        %v5961 = vadd.f32 %v5225, %v5960
        %v5962 = vpop.f32.mrf.mxu0
        %v5963 = vadd.f32 %v5229, %v5962
        %5964 = vmatprep.mubr.bf16.mxu0 %v5077
        %5965 = vmatmul.mubr.bf16.gmra.mxu0 %v5076
        %v5966 = vpop.f32.mrf.mxu0
        %v5967 = vadd.f32 %v5225, %v5966
        %v5968 = vpop.f32.mrf.mxu0
        %v5969 = vadd.f32 %v5229, %v5968
        %v5970 = vpop.f32.mrf.mxu0
        %v5971 = vadd.f32 %v5225, %v5970
        %v5972 = vpop.f32.mrf.mxu0
        %v5973 = vadd.f32 %v5229, %v5972
        %5974 = vmatprep.mubr.bf16.mxu0 %v5085
        %5975 = vmatmul.mubr.bf16.gmra.mxu0 %v5084
        %v5976 = vpop.f32.mrf.mxu0
        %v5977 = vadd.f32 %v5225, %v5976
        %v5978 = vpop.f32.mrf.mxu0
        %v5979 = vadd.f32 %v5229, %v5978
        %v5980 = vpop.f32.mrf.mxu0
        %v5981 = vadd.f32 %v5225, %v5980
        %v5982 = vpop.f32.mrf.mxu0
        %v5983 = vadd.f32 %v5229, %v5982
        %5984 = vdwg.mxu0
        %5985 = vmatprep.subr.bf16.mxu0 %v5663
        %5986 = vmatpush1.bf16.msra.mxu0 %v5662
        %5987 = vmatprep.subr.bf16.mxu0 %v5661
        %5988 = vmatpush1.bf16.msra.mxu0 %v5660
        %5989 = vmatprep.subr.bf16.mxu0 %v5659
        %5990 = vmatpush1.bf16.msra.mxu0 %v5658
        %5991 = vmatprep.subr.bf16.mxu0 %v5657
        %5992 = vmatpush1.bf16.msra.mxu0 %v5656
        %5993 = vmatprep.subr.bf16.mxu0 %v5655
        %5994 = vmatpush1.bf16.msra.mxu0 %v5654
        %5995 = vmatprep.subr.bf16.mxu0 %v5653
        %5996 = vmatpush1.bf16.msra.mxu0 %v5652
        %5997 = vmatprep.subr.bf16.mxu0 %v5651
        %5998 = vmatpush1.bf16.msra.mxu0 %v5650
        %5999 = vmatprep.subr.bf16.mxu0 %v5649
        %6000 = vmatpush1.bf16.msra.mxu0 %v5648
        %6001 = vmatprep.subr.bf16.mxu0 %v5679
        %6002 = vmatpush2.bf16.msra.mxu0 %v5678
        %6003 = vmatprep.subr.bf16.mxu0 %v5677
        %6004 = vmatpush2.bf16.msra.mxu0 %v5676
        %6005 = vmatprep.subr.bf16.mxu0 %v5675
        %6006 = vmatpush2.bf16.msra.mxu0 %v5674
        %6007 = vmatprep.subr.bf16.mxu0 %v5673
        %6008 = vmatpush2.bf16.msra.mxu0 %v5672
        %6009 = vmatprep.subr.bf16.mxu0 %v5671
        %6010 = vmatpush2.bf16.msra.mxu0 %v5670
        %6011 = vmatprep.subr.bf16.mxu0 %v5669
        %6012 = vmatpush2.bf16.msra.mxu0 %v5668
        %6013 = vmatprep.subr.bf16.mxu0 %v5667
        %6014 = vmatpush2.bf16.msra.mxu0 %v5666
        %6015 = vmatprep.subr.bf16.mxu0 %v5665
        %6016 = vmatpush2.bf16.msra.mxu0 %v5664
        %6017 = vmatprep.mubr.bf16.mxu0 %v5031
        %6018 = vmatmul.mubr.bf16.gmra.mxu0 %v5030
        %v6019 = vpop.f32.mrf.mxu0
        %v6020 = vadd.f32 %v5907, %v6019
        %v6021 = vpop.f32.mrf.mxu0
        %v6022 = vadd.f32 %v5909, %v6021
        %v6023 = vpop.f32.mrf.mxu0
        %v6024 = vadd.f32 %v5911, %v6023
        %v6025 = vpop.f32.mrf.mxu0
        %v6026 = vadd.f32 %v5913, %v6025
        %6027 = vmatprep.mubr.bf16.mxu0 %v5039
        %6028 = vmatmul.mubr.bf16.gmra.mxu0 %v5038
        %v6029 = vpop.f32.mrf.mxu0
        %v6030 = vadd.f32 %v5917, %v6029
        %v6031 = vpop.f32.mrf.mxu0
        %v6032 = vadd.f32 %v5919, %v6031
        %v6033 = vpop.f32.mrf.mxu0
        %v6034 = vadd.f32 %v5921, %v6033
        %v6035 = vpop.f32.mrf.mxu0
        %v6036 = vadd.f32 %v5923, %v6035
        %6037 = vmatprep.mubr.bf16.mxu0 %v5047
        %6038 = vmatmul.mubr.bf16.gmra.mxu0 %v5046
        %v6039 = vpop.f32.mrf.mxu0
        %v6040 = vadd.f32 %v5927, %v6039
        %v6041 = vpop.f32.mrf.mxu0
        %v6042 = vadd.f32 %v5929, %v6041
        %v6043 = vpop.f32.mrf.mxu0
        %v6044 = vadd.f32 %v5931, %v6043
        %v6045 = vpop.f32.mrf.mxu0
        %v6046 = vadd.f32 %v5933, %v6045
        %6047 = vmatprep.mubr.bf16.mxu0 %v5055
        %6048 = vmatmul.mubr.bf16.gmra.mxu0 %v5054
        %v6049 = vpop.f32.mrf.mxu0
        %v6050 = vadd.f32 %v5937, %v6049
        %v6051 = vpop.f32.mrf.mxu0
        %v6052 = vadd.f32 %v5939, %v6051
        %v6053 = vpop.f32.mrf.mxu0
        %v6054 = vadd.f32 %v5941, %v6053
        %v6055 = vpop.f32.mrf.mxu0
        %v6056 = vadd.f32 %v5943, %v6055
        %6057 = vmatprep.mubr.bf16.mxu0 %v5063
        %6058 = vmatmul.mubr.bf16.gmra.mxu0 %v5062
        %v6059 = vpop.f32.mrf.mxu0
        %v6060 = vadd.f32 %v5947, %v6059
        %v6061 = vpop.f32.mrf.mxu0
        %v6062 = vadd.f32 %v5949, %v6061
        %v6063 = vpop.f32.mrf.mxu0
        %v6064 = vadd.f32 %v5951, %v6063
        %v6065 = vpop.f32.mrf.mxu0
        %v6066 = vadd.f32 %v5953, %v6065
        %6067 = vmatprep.mubr.bf16.mxu0 %v5071
        %6068 = vmatmul.mubr.bf16.gmra.mxu0 %v5070
        %v6069 = vpop.f32.mrf.mxu0
        %v6070 = vadd.f32 %v5957, %v6069
        %v6071 = vpop.f32.mrf.mxu0
        %v6072 = vadd.f32 %v5959, %v6071
        %v6073 = vpop.f32.mrf.mxu0
        %v6074 = vadd.f32 %v5961, %v6073
        %v6075 = vpop.f32.mrf.mxu0
        %v6076 = vadd.f32 %v5963, %v6075
        %6077 = vmatprep.mubr.bf16.mxu0 %v5079
        %6078 = vmatmul.mubr.bf16.gmra.mxu0 %v5078
        %v6079 = vpop.f32.mrf.mxu0
        %v6080 = vadd.f32 %v5967, %v6079
        %v6081 = vpop.f32.mrf.mxu0
        %v6082 = vadd.f32 %v5969, %v6081
        %v6083 = vpop.f32.mrf.mxu0
        %v6084 = vadd.f32 %v5971, %v6083
        %v6085 = vpop.f32.mrf.mxu0
        %v6086 = vadd.f32 %v5973, %v6085
        %6087 = vmatprep.mubr.bf16.mxu0 %v5087
        %6088 = vmatmul.mubr.bf16.gmra.mxu0 %v5086
        %v6089 = vpop.f32.mrf.mxu0
        %v6090 = vadd.f32 %v5977, %v6089
        %v6091 = vpop.f32.mrf.mxu0
        %v6092 = vadd.f32 %v5979, %v6091
        %v6093 = vpop.f32.mrf.mxu0
        %v6094 = vadd.f32 %v5981, %v6093
        %v6095 = vpop.f32.mrf.mxu0
        %v6096 = vadd.f32 %v5983, %v6095
        %6097 = vdwg.mxu0
        %6098 = vmatprep.subr.bf16.mxu0 %v5695
        %6099 = vmatpush1.bf16.msra.mxu0 %v5694
        %6100 = vmatprep.subr.bf16.mxu0 %v5693
        %6101 = vmatpush1.bf16.msra.mxu0 %v5692
        %6102 = vmatprep.subr.bf16.mxu0 %v5691
        %6103 = vmatpush1.bf16.msra.mxu0 %v5690
        %6104 = vmatprep.subr.bf16.mxu0 %v5689
        %6105 = vmatpush1.bf16.msra.mxu0 %v5688
        %6106 = vmatprep.subr.bf16.mxu0 %v5687
        %6107 = vmatpush1.bf16.msra.mxu0 %v5686
        %6108 = vmatprep.subr.bf16.mxu0 %v5685
        %6109 = vmatpush1.bf16.msra.mxu0 %v5684
        %6110 = vmatprep.subr.bf16.mxu0 %v5683
        %6111 = vmatpush1.bf16.msra.mxu0 %v5682
        %6112 = vmatprep.subr.bf16.mxu0 %v5681
        %6113 = vmatpush1.bf16.msra.mxu0 %v5680
        %6114 = vmatprep.subr.bf16.mxu0 %v5711
        %6115 = vmatpush2.bf16.msra.mxu0 %v5710
        %6116 = vmatprep.subr.bf16.mxu0 %v5709
        %6117 = vmatpush2.bf16.msra.mxu0 %v5708
        %6118 = vmatprep.subr.bf16.mxu0 %v5707
        %6119 = vmatpush2.bf16.msra.mxu0 %v5706
        %6120 = vmatprep.subr.bf16.mxu0 %v5705
        %6121 = vmatpush2.bf16.msra.mxu0 %v5704
        %6122 = vmatprep.subr.bf16.mxu0 %v5703
        %6123 = vmatpush2.bf16.msra.mxu0 %v5702
        %6124 = vmatprep.subr.bf16.mxu0 %v5701
        %6125 = vmatpush2.bf16.msra.mxu0 %v5700
        %6126 = vmatprep.subr.bf16.mxu0 %v5699
        %6127 = vmatpush2.bf16.msra.mxu0 %v5698
        %6128 = vmatprep.subr.bf16.mxu0 %v5697
        %6129 = vmatpush2.bf16.msra.mxu0 %v5696
        %6130 = vmatprep.mubr.bf16.mxu0 %v5033
        %6131 = vmatmul.mubr.bf16.gmra.mxu0 %v5032
        %v6132 = vpop.f32.mrf.mxu0
        %v6133 = vadd.f32 %v6020, %v6132
        %v6134 = vpop.f32.mrf.mxu0
        %v6135 = vadd.f32 %v6022, %v6134
        %v6136 = vpop.f32.mrf.mxu0
        %v6137 = vadd.f32 %v6024, %v6136
        %v6138 = vpop.f32.mrf.mxu0
        %v6139 = vadd.f32 %v6026, %v6138
        %6140 = vmatprep.mubr.bf16.mxu0 %v5041
        %6141 = vmatmul.mubr.bf16.gmra.mxu0 %v5040
        %v6142 = vpop.f32.mrf.mxu0
        %v6143 = vadd.f32 %v6030, %v6142
        %v6144 = vpop.f32.mrf.mxu0
        %v6145 = vadd.f32 %v6032, %v6144
        %v6146 = vpop.f32.mrf.mxu0
        %v6147 = vadd.f32 %v6034, %v6146
        %v6148 = vpop.f32.mrf.mxu0
        %v6149 = vadd.f32 %v6036, %v6148
        %6150 = vmatprep.mubr.bf16.mxu0 %v5049
        %6151 = vmatmul.mubr.bf16.gmra.mxu0 %v5048
        %v6152 = vpop.f32.mrf.mxu0
        %v6153 = vadd.f32 %v6040, %v6152
        %v6154 = vpop.f32.mrf.mxu0
        %v6155 = vadd.f32 %v6042, %v6154
        %v6156 = vpop.f32.mrf.mxu0
        %v6157 = vadd.f32 %v6044, %v6156
        %v6158 = vpop.f32.mrf.mxu0
        %v6159 = vadd.f32 %v6046, %v6158
        %6160 = vmatprep.mubr.bf16.mxu0 %v5057
        %6161 = vmatmul.mubr.bf16.gmra.mxu0 %v5056
        %v6162 = vpop.f32.mrf.mxu0
        %v6163 = vadd.f32 %v6050, %v6162
        %v6164 = vpop.f32.mrf.mxu0
        %v6165 = vadd.f32 %v6052, %v6164
        %v6166 = vpop.f32.mrf.mxu0
        %v6167 = vadd.f32 %v6054, %v6166
        %v6168 = vpop.f32.mrf.mxu0
        %v6169 = vadd.f32 %v6056, %v6168
        %6170 = vmatprep.mubr.bf16.mxu0 %v5065
        %6171 = vmatmul.mubr.bf16.gmra.mxu0 %v5064
        %v6172 = vpop.f32.mrf.mxu0
        %v6173 = vadd.f32 %v6060, %v6172
        %v6174 = vpop.f32.mrf.mxu0
        %v6175 = vadd.f32 %v6062, %v6174
        %v6176 = vpop.f32.mrf.mxu0
        %v6177 = vadd.f32 %v6064, %v6176
        %v6178 = vpop.f32.mrf.mxu0
        %v6179 = vadd.f32 %v6066, %v6178
        %6180 = vmatprep.mubr.bf16.mxu0 %v5073
        %6181 = vmatmul.mubr.bf16.gmra.mxu0 %v5072
        %v6182 = vpop.f32.mrf.mxu0
        %v6183 = vadd.f32 %v6070, %v6182
        %v6184 = vpop.f32.mrf.mxu0
        %v6185 = vadd.f32 %v6072, %v6184
        %v6186 = vpop.f32.mrf.mxu0
        %v6187 = vadd.f32 %v6074, %v6186
        %v6188 = vpop.f32.mrf.mxu0
        %v6189 = vadd.f32 %v6076, %v6188
        %6190 = vmatprep.mubr.bf16.mxu0 %v5081
        %6191 = vmatmul.mubr.bf16.gmra.mxu0 %v5080
        %v6192 = vpop.f32.mrf.mxu0
        %v6193 = vadd.f32 %v6080, %v6192
        %v6194 = vpop.f32.mrf.mxu0
        %v6195 = vadd.f32 %v6082, %v6194
        %v6196 = vpop.f32.mrf.mxu0
        %v6197 = vadd.f32 %v6084, %v6196
        %v6198 = vpop.f32.mrf.mxu0
        %v6199 = vadd.f32 %v6086, %v6198
        %6200 = vmatprep.mubr.bf16.mxu0 %v5089
        %6201 = vmatmul.mubr.bf16.gmra.mxu0 %v5088
        %v6202 = vpop.f32.mrf.mxu0
        %v6203 = vadd.f32 %v6090, %v6202
        %v6204 = vpop.f32.mrf.mxu0
        %v6205 = vadd.f32 %v6092, %v6204
        %v6206 = vpop.f32.mrf.mxu0
        %v6207 = vadd.f32 %v6094, %v6206
        %v6208 = vpop.f32.mrf.mxu0
        %v6209 = vadd.f32 %v6096, %v6208
        %6210 = vdwg.mxu0
        %6211 = vmatprep.subr.bf16.mxu0 %v5727
        %6212 = vmatpush1.bf16.msra.mxu0 %v5726
        %6213 = vmatprep.subr.bf16.mxu0 %v5725
        %6214 = vmatpush1.bf16.msra.mxu0 %v5724
        %6215 = vmatprep.subr.bf16.mxu0 %v5723
        %6216 = vmatpush1.bf16.msra.mxu0 %v5722
        %6217 = vmatprep.subr.bf16.mxu0 %v5721
        %6218 = vmatpush1.bf16.msra.mxu0 %v5720
        %6219 = vmatprep.subr.bf16.mxu0 %v5719
        %6220 = vmatpush1.bf16.msra.mxu0 %v5718
        %6221 = vmatprep.subr.bf16.mxu0 %v5717
        %6222 = vmatpush1.bf16.msra.mxu0 %v5716
        %6223 = vmatprep.subr.bf16.mxu0 %v5715
        %6224 = vmatpush1.bf16.msra.mxu0 %v5714
        %6225 = vmatprep.subr.bf16.mxu0 %v5713
        %6226 = vmatpush1.bf16.msra.mxu0 %v5712
        %6227 = vmatprep.subr.bf16.mxu0 %v5743
        %6228 = vmatpush2.bf16.msra.mxu0 %v5742
        %6229 = vmatprep.subr.bf16.mxu0 %v5741
        %6230 = vmatpush2.bf16.msra.mxu0 %v5740
        %6231 = vmatprep.subr.bf16.mxu0 %v5739
        %6232 = vmatpush2.bf16.msra.mxu0 %v5738
        %6233 = vmatprep.subr.bf16.mxu0 %v5737
        %6234 = vmatpush2.bf16.msra.mxu0 %v5736
        %6235 = vmatprep.subr.bf16.mxu0 %v5735
        %6236 = vmatpush2.bf16.msra.mxu0 %v5734
        %6237 = vmatprep.subr.bf16.mxu0 %v5733
        %6238 = vmatpush2.bf16.msra.mxu0 %v5732
        %6239 = vmatprep.subr.bf16.mxu0 %v5731
        %6240 = vmatpush2.bf16.msra.mxu0 %v5730
        %6241 = vmatprep.subr.bf16.mxu0 %v5729
        %6242 = vmatpush2.bf16.msra.mxu0 %v5728
        %6243 = vmatprep.mubr.bf16.mxu0 %v5035
        %6244 = vmatmul.mubr.bf16.gmra.mxu0 %v5034
        %v6245 = vpop.f32.mrf.mxu0
        %v6246 = vadd.f32 %v6133, %v6245
        %v6247 = vpop.f32.mrf.mxu0
        %v6248 = vadd.f32 %v6135, %v6247
        %v6249 = vpop.f32.mrf.mxu0
        %v6250 = vadd.f32 %v6137, %v6249
        %v6251 = vpop.f32.mrf.mxu0
        %v6252 = vadd.f32 %v6139, %v6251
        %6253 = vmatprep.mubr.bf16.mxu0 %v5043
        %6254 = vmatmul.mubr.bf16.gmra.mxu0 %v5042
        %v6255 = vpop.f32.mrf.mxu0
        %v6256 = vadd.f32 %v6143, %v6255
        %v6257 = vpop.f32.mrf.mxu0
        %v6258 = vadd.f32 %v6145, %v6257
        %v6259 = vpop.f32.mrf.mxu0
        %v6260 = vadd.f32 %v6147, %v6259
        %v6261 = vpop.f32.mrf.mxu0
        %v6262 = vadd.f32 %v6149, %v6261
        %6263 = vmatprep.mubr.bf16.mxu0 %v5051
        %6264 = vmatmul.mubr.bf16.gmra.mxu0 %v5050
        %v6265 = vpop.f32.mrf.mxu0
        %v6266 = vadd.f32 %v6153, %v6265
        %v6267 = vpop.f32.mrf.mxu0
        %v6268 = vadd.f32 %v6155, %v6267
        %v6269 = vpop.f32.mrf.mxu0
        %v6270 = vadd.f32 %v6157, %v6269
        %v6271 = vpop.f32.mrf.mxu0
        %v6272 = vadd.f32 %v6159, %v6271
        %6273 = vmatprep.mubr.bf16.mxu0 %v5059
        %6274 = vmatmul.mubr.bf16.gmra.mxu0 %v5058
        %v6275 = vpop.f32.mrf.mxu0
        %v6276 = vadd.f32 %v6163, %v6275
        %v6277 = vpop.f32.mrf.mxu0
        %v6278 = vadd.f32 %v6165, %v6277
        %v6279 = vpop.f32.mrf.mxu0
        %v6280 = vadd.f32 %v6167, %v6279
        %v6281 = vpop.f32.mrf.mxu0
        %v6282 = vadd.f32 %v6169, %v6281
        %6283 = vmatprep.mubr.bf16.mxu0 %v5067
        %6284 = vmatmul.mubr.bf16.gmra.mxu0 %v5066
        %v6285 = vpop.f32.mrf.mxu0
        %v6286 = vadd.f32 %v6173, %v6285
        %v6287 = vpop.f32.mrf.mxu0
        %v6288 = vadd.f32 %v6175, %v6287
        %v6289 = vpop.f32.mrf.mxu0
        %v6290 = vadd.f32 %v6177, %v6289
        %v6291 = vpop.f32.mrf.mxu0
        %v6292 = vadd.f32 %v6179, %v6291
        %6293 = vmatprep.mubr.bf16.mxu0 %v5075
        %6294 = vmatmul.mubr.bf16.gmra.mxu0 %v5074
        %v6295 = vpop.f32.mrf.mxu0
        %v6296 = vadd.f32 %v6183, %v6295
        %v6297 = vpop.f32.mrf.mxu0
        %v6298 = vadd.f32 %v6185, %v6297
        %v6299 = vpop.f32.mrf.mxu0
        %v6300 = vadd.f32 %v6187, %v6299
        %v6301 = vpop.f32.mrf.mxu0
        %v6302 = vadd.f32 %v6189, %v6301
        %6303 = vmatprep.mubr.bf16.mxu0 %v5083
        %6304 = vmatmul.mubr.bf16.gmra.mxu0 %v5082
        %v6305 = vpop.f32.mrf.mxu0
        %v6306 = vadd.f32 %v6193, %v6305
        %v6307 = vpop.f32.mrf.mxu0
        %v6308 = vadd.f32 %v6195, %v6307
        %v6309 = vpop.f32.mrf.mxu0
        %v6310 = vadd.f32 %v6197, %v6309
        %v6311 = vpop.f32.mrf.mxu0
        %v6312 = vadd.f32 %v6199, %v6311
        %6313 = vmatprep.mubr.bf16.mxu0 %v5091
        %6314 = vmatmul.mubr.bf16.gmra.mxu0 %v5090
        %v6315 = vpop.f32.mrf.mxu0
        %v6316 = vadd.f32 %v6203, %v6315
        %v6317 = vpop.f32.mrf.mxu0
        %v6318 = vadd.f32 %v6205, %v6317
        %v6319 = vpop.f32.mrf.mxu0
        %v6320 = vadd.f32 %v6207, %v6319
        %v6321 = vpop.f32.mrf.mxu0
        %v6322 = vadd.f32 %v6209, %v6321
        %6323 = vdwg.mxu0
        %v6324 = vld [vmem:[%s6] sm:$0x3]
        %v6326 = vlaneseq
        %v6327 = vshrl.u32 %v6326, 7
        %v6328 = vsub.s32 0, %v6327
        %v6329 = vrot.slane %v6324, %v6328
        %v6330 = vlaneseq
        %v6331 = vshrl.u32 %v6330, 7
        %v6332 = vsub.s32 1, %v6331
        %v6333 = vrot.slane %v6324, %v6332
        %v6336 = vmul.f32 %v6246, %v6329
        %v6337 = vmul.f32 %v6248, %v6333
        %v6338 = vmul.f32 %v6250, %v6329
        %v6339 = vmul.f32 %v6252, %v6333
        %v6340 = vmul.f32 %v6256, %v6329
        %v6341 = vmul.f32 %v6258, %v6333
        %v6342 = vmul.f32 %v6260, %v6329
        %v6343 = vmul.f32 %v6262, %v6333
        %v6344 = vmul.f32 %v6266, %v6329
        %v6345 = vmul.f32 %v6268, %v6333
        %v6346 = vmul.f32 %v6270, %v6329
        %v6347 = vmul.f32 %v6272, %v6333
        %v6348 = vmul.f32 %v6276, %v6329
        %v6349 = vmul.f32 %v6278, %v6333
        %v6350 = vmul.f32 %v6280, %v6329
        %v6351 = vmul.f32 %v6282, %v6333
        %v6352 = vmul.f32 %v6286, %v6329
        %v6353 = vmul.f32 %v6288, %v6333
        %v6354 = vmul.f32 %v6290, %v6329
        %v6355 = vmul.f32 %v6292, %v6333
        %v6356 = vmul.f32 %v6296, %v6329
        %v6357 = vmul.f32 %v6298, %v6333
        %v6358 = vmul.f32 %v6300, %v6329
        %v6359 = vmul.f32 %v6302, %v6333
        %v6360 = vmul.f32 %v6306, %v6329
        %v6361 = vmul.f32 %v6308, %v6333
        %v6362 = vmul.f32 %v6310, %v6329
        %v6363 = vmul.f32 %v6312, %v6333
        %v6364 = vmul.f32 %v6316, %v6329
        %v6365 = vmul.f32 %v6318, %v6333
        %v6366 = vmul.f32 %v6320, %v6329
        %v6367 = vmul.f32 %v6322, %v6333
        %v6368 = vld [vmem:[%s7] sm:$0x3]
        %v6370 = vlaneseq
        %v6371 = vshrl.u32 %v6370, 7
        %v6372 = vsub.s32 0, %v6371
        %v6373 = vrot.slane %v6368, %v6372
        %v6374 = vlaneseq
        %v6375 = vshrl.u32 %v6374, 7
        %v6376 = vsub.s32 1, %v6375
        %v6377 = vrot.slane %v6368, %v6376
        %v6380 = vadd.f32 %v6336, %v6373
        %v6381 = vadd.f32 %v6337, %v6377
        %v6382 = vadd.f32 %v6338, %v6373
        %v6383 = vadd.f32 %v6339, %v6377
        %v6384 = vadd.f32 %v6340, %v6373
        %v6385 = vadd.f32 %v6341, %v6377
        %v6386 = vadd.f32 %v6342, %v6373
        %v6387 = vadd.f32 %v6343, %v6377
        %v6388 = vadd.f32 %v6344, %v6373
        %v6389 = vadd.f32 %v6345, %v6377
        %v6390 = vadd.f32 %v6346, %v6373
        %v6391 = vadd.f32 %v6347, %v6377
        %v6392 = vadd.f32 %v6348, %v6373
        %v6393 = vadd.f32 %v6349, %v6377
        %v6394 = vadd.f32 %v6350, %v6373
        %v6395 = vadd.f32 %v6351, %v6377
        %v6396 = vadd.f32 %v6352, %v6373
        %v6397 = vadd.f32 %v6353, %v6377
        %v6398 = vadd.f32 %v6354, %v6373
        %v6399 = vadd.f32 %v6355, %v6377
        %v6400 = vadd.f32 %v6356, %v6373
        %v6401 = vadd.f32 %v6357, %v6377
        %v6402 = vadd.f32 %v6358, %v6373
        %v6403 = vadd.f32 %v6359, %v6377
        %v6404 = vadd.f32 %v6360, %v6373
        %v6405 = vadd.f32 %v6361, %v6377
        %v6406 = vadd.f32 %v6362, %v6373
        %v6407 = vadd.f32 %v6363, %v6377
        %v6408 = vadd.f32 %v6364, %v6373
        %v6409 = vadd.f32 %v6365, %v6377
        %v6410 = vadd.f32 %v6366, %v6373
        %v6411 = vadd.f32 %v6367, %v6377
        %v6412 = vmax.f32 %v6380, 0.0
        %v6413 = vmax.f32 %v6381, 0.0
        %v6414 = vmax.f32 %v6382, 0.0
        %v6415 = vmax.f32 %v6383, 0.0
        %v6416 = vmax.f32 %v6384, 0.0
        %v6417 = vmax.f32 %v6385, 0.0
        %v6418 = vmax.f32 %v6386, 0.0
        %v6419 = vmax.f32 %v6387, 0.0
        %v6420 = vmax.f32 %v6388, 0.0
        %v6421 = vmax.f32 %v6389, 0.0
        %v6422 = vmax.f32 %v6390, 0.0
        %v6423 = vmax.f32 %v6391, 0.0
        %v6424 = vmax.f32 %v6392, 0.0
        %v6425 = vmax.f32 %v6393, 0.0
        %v6426 = vmax.f32 %v6394, 0.0
        %v6427 = vmax.f32 %v6395, 0.0
        %v6428 = vmax.f32 %v6396, 0.0
        %v6429 = vmax.f32 %v6397, 0.0
        %v6430 = vmax.f32 %v6398, 0.0
        %v6431 = vmax.f32 %v6399, 0.0
        %v6432 = vmax.f32 %v6400, 0.0
        %v6433 = vmax.f32 %v6401, 0.0
        %v6434 = vmax.f32 %v6402, 0.0
        %v6435 = vmax.f32 %v6403, 0.0
        %v6436 = vmax.f32 %v6404, 0.0
        %v6437 = vmax.f32 %v6405, 0.0
        %v6438 = vmax.f32 %v6406, 0.0
        %v6439 = vmax.f32 %v6407, 0.0
        %v6440 = vmax.f32 %v6408, 0.0
        %v6441 = vmax.f32 %v6409, 0.0
        %v6442 = vmax.f32 %v6410, 0.0
        %v6443 = vmax.f32 %v6411, 0.0
        %6444 = vst [vmem:[%s354] sm:$0xff] %v6412
        %6445 = vst [vmem:[%s354 + $0x8] sm:$0xff] %v6413
        %6446 = vst [vmem:[%s354 + $0x10] sm:$0xff] %v6414
        %6447 = vst [vmem:[%s354 + $0x18] sm:$0xff] %v6415
        %6448 = vst [vmem:[%s354 + $0x20] sm:$0xff] %v6416
        %6449 = vst [vmem:[%s354 + $0x28] sm:$0xff] %v6417
        %6450 = vst [vmem:[%s354 + $0x30] sm:$0xff] %v6418
        %6451 = vst [vmem:[%s354 + $0x38] sm:$0xff] %v6419
        %6452 = vst [vmem:[%s354 + $0x40] sm:$0xff] %v6420
        %6453 = vst [vmem:[%s354 + $0x48] sm:$0xff] %v6421
        %6454 = vst [vmem:[%s354 + $0x50] sm:$0xff] %v6422
        %6455 = vst [vmem:[%s354 + $0x58] sm:$0xff] %v6423
        %6456 = vst [vmem:[%s354 + $0x60] sm:$0xff] %v6424
        %6457 = vst [vmem:[%s354 + $0x68] sm:$0xff] %v6425
        %6458 = vst [vmem:[%s354 + $0x70] sm:$0xff] %v6426
        %6459 = vst [vmem:[%s354 + $0x78] sm:$0xff] %v6427
        %6460 = vst [vmem:[%s354 + $0x80] sm:$0xff] %v6428
        %6461 = vst [vmem:[%s354 + $0x88] sm:$0xff] %v6429
        %6462 = vst [vmem:[%s354 + $0x90] sm:$0xff] %v6430
        %6463 = vst [vmem:[%s354 + $0x98] sm:$0xff] %v6431
        %6464 = vst [vmem:[%s354 + $0xa0] sm:$0xff] %v6432
        %6465 = vst [vmem:[%s354 + $0xa8] sm:$0xff] %v6433
        %6466 = vst [vmem:[%s354 + $0xb0] sm:$0xff] %v6434
        %6467 = vst [vmem:[%s354 + $0xb8] sm:$0xff] %v6435
        %6468 = vst [vmem:[%s354 + $0xc0] sm:$0xff] %v6436
        %6469 = vst [vmem:[%s354 + $0xc8] sm:$0xff] %v6437
        %6470 = vst [vmem:[%s354 + $0xd0] sm:$0xff] %v6438
        %6471 = vst [vmem:[%s354 + $0xd8] sm:$0xff] %v6439
        %6472 = vst [vmem:[%s354 + $0xe0] sm:$0xff] %v6440
        %6473 = vst [vmem:[%s354 + $0xe8] sm:$0xff] %v6441
        %6474 = vst [vmem:[%s354 + $0xf0] sm:$0xff] %v6442
        %6475 = vst [vmem:[%s354 + $0xf8] sm:$0xff] %v6443
        %s6476 = sand.u32 %s246, 1
        %s6477 = scalar_lea.sflag [#allocation3], %s6476
        %s6478 = sand.u32 %s246, 1
        %s6479 = smul.addr %s6478, 256
        %s6480 = scalar_lea.vmem [#allocation2], %s6479
        // Predicated region
        $region57: #{aspp_forward.1} parent=55 // pred_check
          %p6481 = pneg %p256
        $region58: #{aspp_forward.1} parent=55 // pred_check_branch
          %6483 = sbr.rel (%p6481) target = $region60
        $region59: #{aspp_forward.1} parent=55 // pred_region
          %s6484 = smul.u32 %s27, 2
          %s6485 = sadd.s32 %s6484, %s28
          %s6486 = smul.u32 16, %s6485
          %s6488 = ssub.s32 4096, 4096
          %6489 = vsyncadd %s6477, %s6488
          %s6490 = smul.addr %s6486, 2
          %s6491 = smul.addr %s6490, 128
          %s6492 = scalar_lea.hbm %s9, %s6491
          %s6493 = sshll.u32 %s6480, 4
          %s6494 = int_to_ptr.vmem [resolvable:$true] %s6493
          %6499 = dma.vmem_to_hbm [thread:$0]  %s6494, 4096, %s6492, %s6477, 256, 256, 16
        $region60: #{aspp_forward.1} parent=55 // pred_fallthru
          _
      $region56: #{aspp_forward.1} parent=5 // pred_fallthru
        _
      %p6500 = scmp.le.s32.totalorder 2, %s18
      // Predicated region
      $region61: #{aspp_forward.1} parent=5 // pred_check
        %p6501 = pneg %p6500
      $region62: #{aspp_forward.1} parent=5 // pred_check_branch
        %6503 = sbr.rel (%p6501) target = $region64
      $region63: #{aspp_forward.1} parent=5 // pred_region
        %s6504 = ssub.s32 %s18, 2
        // Predicated region
        $region65: #{aspp_forward.1} parent=63 // pred_check
          %p6505 = pneg %p262
        $region66: #{aspp_forward.1} parent=63 // pred_check_branch
          %6507 = sbr.rel (%p6505) target = $region68
        $region67: #{aspp_forward.1} parent=63 // pred_region
          %s6508 = sand.u32 %s247, 1
          %s6509 = scalar_lea.sflag [#allocation3], %s6508
          %s6510 = sand.u32 %s247, 1
          %s6511 = smul.addr %s6510, 256
          %s6512 = scalar_lea.vmem [#allocation2], %s6511
          %6513 = dma.done %s6509, 4096
        $region68: #{aspp_forward.1} parent=63 // pred_fallthru
          _
      $region64: #{aspp_forward.1} parent=5 // pred_fallthru
        _
    $region6: #{aspp_forward.1} parent=1 // loop_footer
      %s22 = sadd.s32 1, %s18
    $region7: #{aspp_forward.1} parent=1 // loop_footer_branch
      %17 = sbr.rel target = $region3
    $region8: #{aspp_forward.1} parent=1 // loop_exit
      _
    %6514 = vsyncpa [#allocation3], 1
    %s6515 = scalar_lea.sflag [#allocation3], 1
    %6516 = vsyncpa %s6515, 1

</llo_original>
